<compile_context>
chip_gen: v5e
topology: v5e:2x2
jax: 0.10.0
libtpu: 0.0.40
codegen_flags: <defaults>
</compile_context>

<pallas_src>
import functools

import numpy as np

import jax
import jax.numpy as jnp
from jax.experimental import pallas as pl
from jax.experimental.pallas import tpu as pltpu


# ---------------------------------------------------------------------------
# Fused forward kernel: 3 convs + fc1 + fc2, all VMEM-resident.
# ---------------------------------------------------------------------------
def _policy_fused_kernel(x_ref,
                         r1_ref, g1_ref, b1_ref,
                         r2_ref, g2_ref, b2_ref,
                         r3_ref, g3_ref, b3_ref,
                         rf_ref, gf_ref, bf_ref,
                         wo_ref, bo_ref,
                         o_ref, *, skip_r):
    """One grid step pushes TB frames end-to-end through the network."""

    def conv_stage(y, r_ref, g_ref, b_ref, skip_row_select):
        y16 = y.astype(jnp.bfloat16)
        acc = None
        for i in range(g_ref.shape[0]):          # unrolled over kernel rows
            if skip_row_select:                  # R_i is the identity (1x1 stage)
                rows16 = y16
            else:
                rows16 = jnp.dot(r_ref[i], y16,
                                 preferred_element_type=jnp.float32
                                 ).astype(jnp.bfloat16)
            t = jnp.dot(rows16, g_ref[i], preferred_element_type=jnp.float32)
            acc = t if acc is None else acc + t
        return jnp.maximum(acc + b_ref[...], 0.0)         # bias + ReLU in f32

    y = x_ref[...]                                         # (TB*H, W*C) bf16
    y = conv_stage(y, r1_ref, g1_ref, b1_ref, skip_r[0])   # conv1 + ReLU
    y = conv_stage(y, r2_ref, g2_ref, b2_ref, skip_r[1])   # conv2 + ReLU
    y = conv_stage(y, r3_ref, g3_ref, b3_ref, skip_r[2])   # conv3 + ReLU
    y = conv_stage(y, rf_ref, gf_ref, bf_ref, skip_r[3])   # fc1 (NCHW flatten folded in)
    # fc2 (64 -> 1): VPU multiply + lane reduction, then sigmoid, all f32.
    logits = jnp.sum(y * wo_ref[...], axis=1, keepdims=True) + bo_ref[...]
    o_ref[...] = jax.nn.sigmoid(logits).astype(o_ref.dtype)


# ---------------------------------------------------------------------------
# Parameter init (PyTorch layouts) and one-time operand preprocessing.
# ---------------------------------------------------------------------------
def _conv_out_hw(h, w, k, s):
    return (h - k) // s + 1, (w - k) // s + 1


def init_policy_params(key, input_shape):
    """Raw parameters in the PyTorch layouts (OIHW convs, (out, in) linears)."""
    C, H, W = input_shape
    h1, w1 = _conv_out_hw(H, W, 8, 4)
    h2, w2 = _conv_out_hw(h1, w1, 4, 2)
    h3, w3 = _conv_out_hw(h2, w2, 3, 1)
    conv_out_size = 64 * h3 * w3

    keys = jax.random.split(key, 10)

    def winit(k, shape, fan_in):
        return jax.random.normal(k, shape, jnp.float32) * (1.0 / np.sqrt(fan_in))

    params = {
        "c1_w": winit(keys[0], (32, C, 8, 8), C * 64),
        "c1_b": winit(keys[1], (32,), C * 64),
        "c2_w": winit(keys[2], (64, 32, 4, 4), 32 * 16),
        "c2_b": winit(keys[3], (64,), 32 * 16),
        "c3_w": winit(keys[4], (64, 64, 3, 3), 64 * 9),
        "c3_b": winit(keys[5], (64,), 64 * 9),
        "fc1_w": winit(keys[6], (64, conv_out_size), conv_out_size),
        "fc1_b": winit(keys[7], (64,), conv_out_size),
        "fc2_w": winit(keys[8], (1, 64), 64),
        "fc2_b": winit(keys[9], (1,), 64),
    }
    return params, conv_out_size


def _expand_conv_layer(w, b, h_in, w_in, c_in, stride, tb):
    """Build (R, G, bias) for one conv layer in the rows=(b,oh), cols=(ow,c) layout.

    R[i]  : (tb*OH, tb*H_in)    one-hot, picks input row stride*oh+i per frame.
    G[i]  : (W_in*C_in, OW*OC)  kernel-row-i weight expanded over the W window.
    bias  : (1, OW*OC)          per-channel bias tiled over OW.
    """
    w = np.asarray(w, np.float32)
    b = np.asarray(b, np.float32)
    oc, c_in_w, kh, kw = w.shape
    assert c_in_w == c_in
    oh = (h_in - kh) // stride + 1
    ow_n = (w_in - kw) // stride + 1

    r = np.zeros((kh, tb * oh, tb * h_in), np.float32)
    for i in range(kh):
        for bb in range(tb):
            for o in range(oh):
                r[i, bb * oh + o, bb * h_in + stride * o + i] = 1.0

    g = np.zeros((kh, w_in * c_in, ow_n * oc), np.float32)
    for i in range(kh):
        for o in range(ow_n):
            for j in range(kw):
                wi = stride * o + j
                g[i, wi * c_in:(wi + 1) * c_in, o * oc:(o + 1) * oc] = w[:, :, i, j].T

    bias = np.tile(b, ow_n).reshape(1, ow_n * oc)
    skip_r = (kh == 1 and h_in == 1 and oh == 1)       # R is the identity
    return (jnp.asarray(r, jnp.bfloat16), jnp.asarray(g, jnp.bfloat16),
            jnp.asarray(bias, jnp.float32), skip_r, (oh, ow_n, oc))


def build_policy_constants(params, input_shape, batch_tile=8):
    """One-time preprocessing of the weights into the kernel's operand form."""
    C, H, W = input_shape
    tb = batch_tile

    r1, g1, b1, s1, (h1, w1, oc1) = _expand_conv_layer(
        params["c1_w"], params["c1_b"], H, W, C, 4, tb)
    r2, g2, b2, s2, (h2, w2, oc2) = _expand_conv_layer(
        params["c2_w"], params["c2_b"], h1, w1, oc1, 2, tb)
    r3, g3, b3, s3, (h3, w3, oc3) = _expand_conv_layer(
        params["c3_w"], params["c3_b"], h2, w2, oc2, 1, tb)

    # fc1 on the NCHW-flattened conv output == a conv whose kernel covers the
    # whole remaining (h3, w3) extent; the flatten permutation is folded into G.
    fc1_w_conv = np.asarray(params["fc1_w"], np.float32).reshape(64, oc3, h3, w3)
    rf, gf, bf, sf, (hf, wf, _) = _expand_conv_layer(
        fc1_w_conv, params["fc1_b"], h3, w3, oc3, 1, tb)
    assert hf == 1 and wf == 1

    arrays = (r1, g1, b1, r2, g2, b2, r3, g3, b3, rf, gf, bf,
              jnp.asarray(params["fc2_w"], jnp.float32).reshape(1, 64),
              jnp.asarray(params["fc2_b"], jnp.float32).reshape(1, 1))
    return {"TB": tb, "C": C, "H": H, "W": W,
            "arrays": arrays, "skip_r": (s1, s2, s3, sf)}


# ---------------------------------------------------------------------------
# Forward pass wrapper.
# ---------------------------------------------------------------------------
def _const_index_map(ndim):
    def index_map(i):
        return (0,) * ndim
    return index_map


def policy_forward(consts, x_nchw):
    """Pallas-backed forward: x is NCHW float32, returns (B, 1) float32."""
    B, C, H, W = x_nchw.shape
    assert (C, H, W) == (consts["C"], consts["H"], consts["W"])
    tb = consts["TB"]
    nb = -(-B // tb)
    bp = nb * tb

    # Only per-call XLA glue: NCHW -> NHWC folded to 2-D (rows=(b,h), cols=(w,c))
    # plus a bf16 cast (and batch padding to a tile multiple when needed).
    # TODO(synk): this input relayout stays as one XLA transpose on the raw input.
    x2d = jnp.transpose(x_nchw, (0, 2, 3, 1)).reshape(B * H, W * C)
    if bp != B:
        x2d = jnp.pad(x2d, ((0, (bp - B) * H), (0, 0)))
    x2d = x2d.astype(jnp.bfloat16)

    arrays = consts["arrays"]
    kernel = functools.partial(_policy_fused_kernel, skip_r=consts["skip_r"])

    in_specs = [pl.BlockSpec((tb * H, W * C), lambda i: (i, 0))]
    in_specs += [pl.BlockSpec(a.shape, _const_index_map(a.ndim)) for a in arrays]

    out = pl.pallas_call(
        kernel,
        out_shape=jax.ShapeDtypeStruct((bp, 1), jnp.float32),
        grid=(nb,),
        in_specs=in_specs,
        out_specs=pl.BlockSpec((tb, 1), lambda i: (i, 0)),
        compiler_params=pltpu.CompilerParams(
            dimension_semantics=("parallel",)),
    )(x2d, *arrays)
    return out[:B]


# ---------------------------------------------------------------------------
# Pure-JAX reference (correctness check only).
# ---------------------------------------------------------------------------
def policy_forward_ref(params, x_nchw):
    def conv(x, w, b, s):
        y = jax.lax.conv_general_dilated(
            x, w, window_strides=(s, s), padding="VALID",
            dimension_numbers=("NCHW", "OIHW", "NCHW"))
        return jax.nn.relu(y + b[None, :, None, None])

    h = conv(x_nchw, params["c1_w"], params["c1_b"], 4)
    h = conv(h, params["c2_w"], params["c2_b"], 2)
    h = conv(h, params["c3_w"], params["c3_b"], 1)
    flat = h.reshape(x_nchw.shape[0], -1)
    h = jax.nn.relu(flat @ params["fc1_w"].T + params["fc1_b"])
    return jax.nn.sigmoid(h @ params["fc2_w"].T + params["fc2_b"])


if __name__ == "__main__":
    # 2 stacked frames, 40x40 spatial (smallest-ish size surviving the conv stack).
    B, C, H, W = 2, 2, 40, 40
    key = jax.random.PRNGKey(0)
    pkey, xkey = jax.random.split(key)

    params, conv_out_size = init_policy_params(pkey, (C, H, W))
    consts = build_policy_constants(params, (C, H, W), batch_tile=8)
    x = jax.random.normal(xkey, (B, C, H, W), jnp.float32)

    fwd = jax.jit(lambda xx: policy_forward(consts, xx))
    out = jax.block_until_ready(fwd(x))

    ref = jax.block_until_ready(policy_forward_ref(params, x))
    assert out.shape == (B, 1), out.shape
    # bf16 MXU matmuls with f32 accumulate -> relaxed tolerance vs the f32 reference.
    assert jnp.allclose(out, ref, atol=5e-2, rtol=5e-2), (out, ref)

    print("KERNEL_OK")
</pallas_src>

<mosaic_0001>
module attributes {stable_mosaic.version = 11 : i64} {
  func.func @_policy_fused_kernel(%arg0: i32, %arg1: memref<320x80xbf16, #tpu.memory_space<vmem>>, %arg2: memref<8x72x320xbf16, #tpu.memory_space<vmem>>, %arg3: memref<8x80x288xbf16, #tpu.memory_space<vmem>>, %arg4: memref<1x288xf32, #tpu.memory_space<vmem>>, %arg5: memref<4x24x72xbf16, #tpu.memory_space<vmem>>, %arg6: memref<4x288x192xbf16, #tpu.memory_space<vmem>>, %arg7: memref<1x192xf32, #tpu.memory_space<vmem>>, %arg8: memref<3x8x24xbf16, #tpu.memory_space<vmem>>, %arg9: memref<3x192x64xbf16, #tpu.memory_space<vmem>>, %arg10: memref<1x64xf32, #tpu.memory_space<vmem>>, %arg11: memref<1x8x8xbf16, #tpu.memory_space<vmem>>, %arg12: memref<1x64x64xbf16, #tpu.memory_space<vmem>>, %arg13: memref<1x64xf32, #tpu.memory_space<vmem>>, %arg14: memref<1x64xf32, #tpu.memory_space<vmem>>, %arg15: memref<1x1xf32, #tpu.memory_space<vmem>>, %arg16: memref<8x1xf32, #tpu.memory_space<vmem>>) attributes {dimension_semantics = [#tpu.dimension_semantics<parallel>], iteration_bounds = array<i64: 1>, scalar_prefetch = 0 : i64, scratch_operands = 0 : i64, tpu.core_type = #tpu.core_type<tc>, window_params = [{transform_indices = @transform_0, window_bounds = array<i64: 320, 80>}, {pipeline_mode = #tpu.pipeline_mode<synchronous>, transform_indices = @transform_1, window_bounds = array<i64: 8, 72, 320>}, {pipeline_mode = #tpu.pipeline_mode<synchronous>, transform_indices = @transform_2, window_bounds = array<i64: 8, 80, 288>}, {pipeline_mode = #tpu.pipeline_mode<synchronous>, transform_indices = @transform_3, window_bounds = array<i64: 1, 288>}, {pipeline_mode = #tpu.pipeline_mode<synchronous>, transform_indices = @transform_4, window_bounds = array<i64: 4, 24, 72>}, {pipeline_mode = #tpu.pipeline_mode<synchronous>, transform_indices = @transform_5, window_bounds = array<i64: 4, 288, 192>}, {pipeline_mode = #tpu.pipeline_mode<synchronous>, transform_indices = @transform_6, window_bounds = array<i64: 1, 192>}, {pipeline_mode = #tpu.pipeline_mode<synchronous>, transform_indices = @transform_7, window_bounds = array<i64: 3, 8, 24>}, {pipeline_mode = #tpu.pipeline_mode<synchronous>, transform_indices = @transform_8, window_bounds = array<i64: 3, 192, 64>}, {pipeline_mode = #tpu.pipeline_mode<synchronous>, transform_indices = @transform_9, window_bounds = array<i64: 1, 64>}, {pipeline_mode = #tpu.pipeline_mode<synchronous>, transform_indices = @transform_10, window_bounds = array<i64: 1, 8, 8>}, {pipeline_mode = #tpu.pipeline_mode<synchronous>, transform_indices = @transform_11, window_bounds = array<i64: 1, 64, 64>}, {pipeline_mode = #tpu.pipeline_mode<synchronous>, transform_indices = @transform_12, window_bounds = array<i64: 1, 64>}, {pipeline_mode = #tpu.pipeline_mode<synchronous>, transform_indices = @transform_13, window_bounds = array<i64: 1, 64>}, {pipeline_mode = #tpu.pipeline_mode<synchronous>, transform_indices = @transform_14, window_bounds = array<i64: 1, 1>}, {transform_indices = @transform_15, window_bounds = array<i64: 8, 1>}]} {
    %c0 = arith.constant 0 : index
    %c0_0 = arith.constant 0 : index
    %0 = vector.load %arg1[%c0, %c0_0] : memref<320x80xbf16, #tpu.memory_space<vmem>>, vector<320x80xbf16>
    %c0_1 = arith.constant 0 : index
    %c0_2 = arith.constant 0 : index
    %c0_3 = arith.constant 0 : index
    %1 = vector.load %arg2[%c0_1, %c0_2, %c0_3] : memref<8x72x320xbf16, #tpu.memory_space<vmem>>, vector<1x72x320xbf16>
    %2 = vector.shape_cast %1 : vector<1x72x320xbf16> to vector<72x320xbf16>
    %cst = arith.constant dense<0.000000e+00> : vector<72x80xf32>
    %3 = tpu.matmul %2, %0, %cst {dimension_numbers = #tpu.dot_dimension_numbers<[1], [0], [0], [1], [0, 0, 1, 1], [], []>} : vector<72x320xbf16>, vector<320x80xbf16>, vector<72x80xf32> -> vector<72x80xf32>
    %4 = arith.truncf %3 : vector<72x80xf32> to vector<72x80xbf16>
    %c0_4 = arith.constant 0 : index
    %c0_5 = arith.constant 0 : index
    %c0_6 = arith.constant 0 : index
    %5 = vector.load %arg3[%c0_4, %c0_5, %c0_6] : memref<8x80x288xbf16, #tpu.memory_space<vmem>>, vector<1x80x288xbf16>
    %6 = vector.shape_cast %5 : vector<1x80x288xbf16> to vector<80x288xbf16>
    %cst_7 = arith.constant dense<0.000000e+00> : vector<72x288xf32>
    %7 = tpu.matmul %4, %6, %cst_7 {dimension_numbers = #tpu.dot_dimension_numbers<[1], [0], [0], [1], [0, 0, 1, 1], [], []>} : vector<72x80xbf16>, vector<80x288xbf16>, vector<72x288xf32> -> vector<72x288xf32>
    %c1 = arith.constant 1 : index
    %c0_8 = arith.constant 0 : index
    %c0_9 = arith.constant 0 : index
    %8 = vector.load %arg2[%c1, %c0_8, %c0_9] : memref<8x72x320xbf16, #tpu.memory_space<vmem>>, vector<1x72x320xbf16>
    %9 = vector.shape_cast %8 : vector<1x72x320xbf16> to vector<72x320xbf16>
    %cst_10 = arith.constant dense<0.000000e+00> : vector<72x80xf32>
    %10 = tpu.matmul %9, %0, %cst_10 {dimension_numbers = #tpu.dot_dimension_numbers<[1], [0], [0], [1], [0, 0, 1, 1], [], []>} : vector<72x320xbf16>, vector<320x80xbf16>, vector<72x80xf32> -> vector<72x80xf32>
    %11 = arith.truncf %10 : vector<72x80xf32> to vector<72x80xbf16>
    %c1_11 = arith.constant 1 : index
    %c0_12 = arith.constant 0 : index
    %c0_13 = arith.constant 0 : index
    %12 = vector.load %arg3[%c1_11, %c0_12, %c0_13] : memref<8x80x288xbf16, #tpu.memory_space<vmem>>, vector<1x80x288xbf16>
    %13 = vector.shape_cast %12 : vector<1x80x288xbf16> to vector<80x288xbf16>
    %cst_14 = arith.constant dense<0.000000e+00> : vector<72x288xf32>
    %14 = tpu.matmul %11, %13, %cst_14 {dimension_numbers = #tpu.dot_dimension_numbers<[1], [0], [0], [1], [0, 0, 1, 1], [], []>} : vector<72x80xbf16>, vector<80x288xbf16>, vector<72x288xf32> -> vector<72x288xf32>
    %15 = arith.addf %7, %14 : vector<72x288xf32>
    %c2 = arith.constant 2 : index
    %c0_15 = arith.constant 0 : index
    %c0_16 = arith.constant 0 : index
    %16 = vector.load %arg2[%c2, %c0_15, %c0_16] : memref<8x72x320xbf16, #tpu.memory_space<vmem>>, vector<1x72x320xbf16>
    %17 = vector.shape_cast %16 : vector<1x72x320xbf16> to vector<72x320xbf16>
    %cst_17 = arith.constant dense<0.000000e+00> : vector<72x80xf32>
    %18 = tpu.matmul %17, %0, %cst_17 {dimension_numbers = #tpu.dot_dimension_numbers<[1], [0], [0], [1], [0, 0, 1, 1], [], []>} : vector<72x320xbf16>, vector<320x80xbf16>, vector<72x80xf32> -> vector<72x80xf32>
    %19 = arith.truncf %18 : vector<72x80xf32> to vector<72x80xbf16>
    %c2_18 = arith.constant 2 : index
    %c0_19 = arith.constant 0 : index
    %c0_20 = arith.constant 0 : index
    %20 = vector.load %arg3[%c2_18, %c0_19, %c0_20] : memref<8x80x288xbf16, #tpu.memory_space<vmem>>, vector<1x80x288xbf16>
    %21 = vector.shape_cast %20 : vector<1x80x288xbf16> to vector<80x288xbf16>
    %cst_21 = arith.constant dense<0.000000e+00> : vector<72x288xf32>
    %22 = tpu.matmul %19, %21, %cst_21 {dimension_numbers = #tpu.dot_dimension_numbers<[1], [0], [0], [1], [0, 0, 1, 1], [], []>} : vector<72x80xbf16>, vector<80x288xbf16>, vector<72x288xf32> -> vector<72x288xf32>
    %23 = arith.addf %15, %22 : vector<72x288xf32>
    %c3 = arith.constant 3 : index
    %c0_22 = arith.constant 0 : index
    %c0_23 = arith.constant 0 : index
    %24 = vector.load %arg2[%c3, %c0_22, %c0_23] : memref<8x72x320xbf16, #tpu.memory_space<vmem>>, vector<1x72x320xbf16>
    %25 = vector.shape_cast %24 : vector<1x72x320xbf16> to vector<72x320xbf16>
    %cst_24 = arith.constant dense<0.000000e+00> : vector<72x80xf32>
    %26 = tpu.matmul %25, %0, %cst_24 {dimension_numbers = #tpu.dot_dimension_numbers<[1], [0], [0], [1], [0, 0, 1, 1], [], []>} : vector<72x320xbf16>, vector<320x80xbf16>, vector<72x80xf32> -> vector<72x80xf32>
    %27 = arith.truncf %26 : vector<72x80xf32> to vector<72x80xbf16>
    %c3_25 = arith.constant 3 : index
    %c0_26 = arith.constant 0 : index
    %c0_27 = arith.constant 0 : index
    %28 = vector.load %arg3[%c3_25, %c0_26, %c0_27] : memref<8x80x288xbf16, #tpu.memory_space<vmem>>, vector<1x80x288xbf16>
    %29 = vector.shape_cast %28 : vector<1x80x288xbf16> to vector<80x288xbf16>
    %cst_28 = arith.constant dense<0.000000e+00> : vector<72x288xf32>
    %30 = tpu.matmul %27, %29, %cst_28 {dimension_numbers = #tpu.dot_dimension_numbers<[1], [0], [0], [1], [0, 0, 1, 1], [], []>} : vector<72x80xbf16>, vector<80x288xbf16>, vector<72x288xf32> -> vector<72x288xf32>
    %31 = arith.addf %23, %30 : vector<72x288xf32>
    %c4 = arith.constant 4 : index
    %c0_29 = arith.constant 0 : index
    %c0_30 = arith.constant 0 : index
    %32 = vector.load %arg2[%c4, %c0_29, %c0_30] : memref<8x72x320xbf16, #tpu.memory_space<vmem>>, vector<1x72x320xbf16>
    %33 = vector.shape_cast %32 : vector<1x72x320xbf16> to vector<72x320xbf16>
    %cst_31 = arith.constant dense<0.000000e+00> : vector<72x80xf32>
    %34 = tpu.matmul %33, %0, %cst_31 {dimension_numbers = #tpu.dot_dimension_numbers<[1], [0], [0], [1], [0, 0, 1, 1], [], []>} : vector<72x320xbf16>, vector<320x80xbf16>, vector<72x80xf32> -> vector<72x80xf32>
    %35 = arith.truncf %34 : vector<72x80xf32> to vector<72x80xbf16>
    %c4_32 = arith.constant 4 : index
    %c0_33 = arith.constant 0 : index
    %c0_34 = arith.constant 0 : index
    %36 = vector.load %arg3[%c4_32, %c0_33, %c0_34] : memref<8x80x288xbf16, #tpu.memory_space<vmem>>, vector<1x80x288xbf16>
    %37 = vector.shape_cast %36 : vector<1x80x288xbf16> to vector<80x288xbf16>
    %cst_35 = arith.constant dense<0.000000e+00> : vector<72x288xf32>
    %38 = tpu.matmul %35, %37, %cst_35 {dimension_numbers = #tpu.dot_dimension_numbers<[1], [0], [0], [1], [0, 0, 1, 1], [], []>} : vector<72x80xbf16>, vector<80x288xbf16>, vector<72x288xf32> -> vector<72x288xf32>
    %39 = arith.addf %31, %38 : vector<72x288xf32>
    %c5 = arith.constant 5 : index
    %c0_36 = arith.constant 0 : index
    %c0_37 = arith.constant 0 : index
    %40 = vector.load %arg2[%c5, %c0_36, %c0_37] : memref<8x72x320xbf16, #tpu.memory_space<vmem>>, vector<1x72x320xbf16>
    %41 = vector.shape_cast %40 : vector<1x72x320xbf16> to vector<72x320xbf16>
    %cst_38 = arith.constant dense<0.000000e+00> : vector<72x80xf32>
    %42 = tpu.matmul %41, %0, %cst_38 {dimension_numbers = #tpu.dot_dimension_numbers<[1], [0], [0], [1], [0, 0, 1, 1], [], []>} : vector<72x320xbf16>, vector<320x80xbf16>, vector<72x80xf32> -> vector<72x80xf32>
    %43 = arith.truncf %42 : vector<72x80xf32> to vector<72x80xbf16>
    %c5_39 = arith.constant 5 : index
    %c0_40 = arith.constant 0 : index
    %c0_41 = arith.constant 0 : index
    %44 = vector.load %arg3[%c5_39, %c0_40, %c0_41] : memref<8x80x288xbf16, #tpu.memory_space<vmem>>, vector<1x80x288xbf16>
    %45 = vector.shape_cast %44 : vector<1x80x288xbf16> to vector<80x288xbf16>
    %cst_42 = arith.constant dense<0.000000e+00> : vector<72x288xf32>
    %46 = tpu.matmul %43, %45, %cst_42 {dimension_numbers = #tpu.dot_dimension_numbers<[1], [0], [0], [1], [0, 0, 1, 1], [], []>} : vector<72x80xbf16>, vector<80x288xbf16>, vector<72x288xf32> -> vector<72x288xf32>
    %47 = arith.addf %39, %46 : vector<72x288xf32>
    %c6 = arith.constant 6 : index
    %c0_43 = arith.constant 0 : index
    %c0_44 = arith.constant 0 : index
    %48 = vector.load %arg2[%c6, %c0_43, %c0_44] : memref<8x72x320xbf16, #tpu.memory_space<vmem>>, vector<1x72x320xbf16>
    %49 = vector.shape_cast %48 : vector<1x72x320xbf16> to vector<72x320xbf16>
    %cst_45 = arith.constant dense<0.000000e+00> : vector<72x80xf32>
    %50 = tpu.matmul %49, %0, %cst_45 {dimension_numbers = #tpu.dot_dimension_numbers<[1], [0], [0], [1], [0, 0, 1, 1], [], []>} : vector<72x320xbf16>, vector<320x80xbf16>, vector<72x80xf32> -> vector<72x80xf32>
    %51 = arith.truncf %50 : vector<72x80xf32> to vector<72x80xbf16>
    %c6_46 = arith.constant 6 : index
    %c0_47 = arith.constant 0 : index
    %c0_48 = arith.constant 0 : index
    %52 = vector.load %arg3[%c6_46, %c0_47, %c0_48] : memref<8x80x288xbf16, #tpu.memory_space<vmem>>, vector<1x80x288xbf16>
    %53 = vector.shape_cast %52 : vector<1x80x288xbf16> to vector<80x288xbf16>
    %cst_49 = arith.constant dense<0.000000e+00> : vector<72x288xf32>
    %54 = tpu.matmul %51, %53, %cst_49 {dimension_numbers = #tpu.dot_dimension_numbers<[1], [0], [0], [1], [0, 0, 1, 1], [], []>} : vector<72x80xbf16>, vector<80x288xbf16>, vector<72x288xf32> -> vector<72x288xf32>
    %55 = arith.addf %47, %54 : vector<72x288xf32>
    %c7 = arith.constant 7 : index
    %c0_50 = arith.constant 0 : index
    %c0_51 = arith.constant 0 : index
    %56 = vector.load %arg2[%c7, %c0_50, %c0_51] : memref<8x72x320xbf16, #tpu.memory_space<vmem>>, vector<1x72x320xbf16>
    %57 = vector.shape_cast %56 : vector<1x72x320xbf16> to vector<72x320xbf16>
    %cst_52 = arith.constant dense<0.000000e+00> : vector<72x80xf32>
    %58 = tpu.matmul %57, %0, %cst_52 {dimension_numbers = #tpu.dot_dimension_numbers<[1], [0], [0], [1], [0, 0, 1, 1], [], []>} : vector<72x320xbf16>, vector<320x80xbf16>, vector<72x80xf32> -> vector<72x80xf32>
    %59 = arith.truncf %58 : vector<72x80xf32> to vector<72x80xbf16>
    %c7_53 = arith.constant 7 : index
    %c0_54 = arith.constant 0 : index
    %c0_55 = arith.constant 0 : index
    %60 = vector.load %arg3[%c7_53, %c0_54, %c0_55] : memref<8x80x288xbf16, #tpu.memory_space<vmem>>, vector<1x80x288xbf16>
    %61 = vector.shape_cast %60 : vector<1x80x288xbf16> to vector<80x288xbf16>
    %cst_56 = arith.constant dense<0.000000e+00> : vector<72x288xf32>
    %62 = tpu.matmul %59, %61, %cst_56 {dimension_numbers = #tpu.dot_dimension_numbers<[1], [0], [0], [1], [0, 0, 1, 1], [], []>} : vector<72x80xbf16>, vector<80x288xbf16>, vector<72x288xf32> -> vector<72x288xf32>
    %63 = arith.addf %55, %62 : vector<72x288xf32>
    %c0_57 = arith.constant 0 : index
    %c0_58 = arith.constant 0 : index
    %64 = vector.load %arg4[%c0_57, %c0_58] : memref<1x288xf32, #tpu.memory_space<vmem>>, vector<1x288xf32>
    %65 = vector.broadcast %64 : vector<1x288xf32> to vector<72x288xf32>
    %66 = arith.addf %63, %65 : vector<72x288xf32>
    %cst_59 = arith.constant 0.000000e+00 : f32
    %67 = vector.broadcast %cst_59 : f32 to vector<72x288xf32>
    %68 = arith.maximumf %66, %67 : vector<72x288xf32>
    %69 = arith.truncf %68 : vector<72x288xf32> to vector<72x288xbf16>
    %c0_60 = arith.constant 0 : index
    %c0_61 = arith.constant 0 : index
    %c0_62 = arith.constant 0 : index
    %70 = vector.load %arg5[%c0_60, %c0_61, %c0_62] : memref<4x24x72xbf16, #tpu.memory_space<vmem>>, vector<1x24x72xbf16>
    %71 = vector.shape_cast %70 : vector<1x24x72xbf16> to vector<24x72xbf16>
    %cst_63 = arith.constant dense<0.000000e+00> : vector<24x288xf32>
    %72 = tpu.matmul %71, %69, %cst_63 {dimension_numbers = #tpu.dot_dimension_numbers<[1], [0], [0], [1], [0, 0, 1, 1], [], []>} : vector<24x72xbf16>, vector<72x288xbf16>, vector<24x288xf32> -> vector<24x288xf32>
    %73 = arith.truncf %72 : vector<24x288xf32> to vector<24x288xbf16>
    %c0_64 = arith.constant 0 : index
    %c0_65 = arith.constant 0 : index
    %c0_66 = arith.constant 0 : index
    %74 = vector.load %arg6[%c0_64, %c0_65, %c0_66] : memref<4x288x192xbf16, #tpu.memory_space<vmem>>, vector<1x288x192xbf16>
    %75 = vector.shape_cast %74 : vector<1x288x192xbf16> to vector<288x192xbf16>
    %cst_67 = arith.constant dense<0.000000e+00> : vector<24x192xf32>
    %76 = tpu.matmul %73, %75, %cst_67 {dimension_numbers = #tpu.dot_dimension_numbers<[1], [0], [0], [1], [0, 0, 1, 1], [], []>} : vector<24x288xbf16>, vector<288x192xbf16>, vector<24x192xf32> -> vector<24x192xf32>
    %c1_68 = arith.constant 1 : index
    %c0_69 = arith.constant 0 : index
    %c0_70 = arith.constant 0 : index
    %77 = vector.load %arg5[%c1_68, %c0_69, %c0_70] : memref<4x24x72xbf16, #tpu.memory_space<vmem>>, vector<1x24x72xbf16>
    %78 = vector.shape_cast %77 : vector<1x24x72xbf16> to vector<24x72xbf16>
    %cst_71 = arith.constant dense<0.000000e+00> : vector<24x288xf32>
    %79 = tpu.matmul %78, %69, %cst_71 {dimension_numbers = #tpu.dot_dimension_numbers<[1], [0], [0], [1], [0, 0, 1, 1], [], []>} : vector<24x72xbf16>, vector<72x288xbf16>, vector<24x288xf32> -> vector<24x288xf32>
    %80 = arith.truncf %79 : vector<24x288xf32> to vector<24x288xbf16>
    %c1_72 = arith.constant 1 : index
    %c0_73 = arith.constant 0 : index
    %c0_74 = arith.constant 0 : index
    %81 = vector.load %arg6[%c1_72, %c0_73, %c0_74] : memref<4x288x192xbf16, #tpu.memory_space<vmem>>, vector<1x288x192xbf16>
    %82 = vector.shape_cast %81 : vector<1x288x192xbf16> to vector<288x192xbf16>
    %cst_75 = arith.constant dense<0.000000e+00> : vector<24x192xf32>
    %83 = tpu.matmul %80, %82, %cst_75 {dimension_numbers = #tpu.dot_dimension_numbers<[1], [0], [0], [1], [0, 0, 1, 1], [], []>} : vector<24x288xbf16>, vector<288x192xbf16>, vector<24x192xf32> -> vector<24x192xf32>
    %84 = arith.addf %76, %83 : vector<24x192xf32>
    %c2_76 = arith.constant 2 : index
    %c0_77 = arith.constant 0 : index
    %c0_78 = arith.constant 0 : index
    %85 = vector.load %arg5[%c2_76, %c0_77, %c0_78] : memref<4x24x72xbf16, #tpu.memory_space<vmem>>, vector<1x24x72xbf16>
    %86 = vector.shape_cast %85 : vector<1x24x72xbf16> to vector<24x72xbf16>
    %cst_79 = arith.constant dense<0.000000e+00> : vector<24x288xf32>
    %87 = tpu.matmul %86, %69, %cst_79 {dimension_numbers = #tpu.dot_dimension_numbers<[1], [0], [0], [1], [0, 0, 1, 1], [], []>} : vector<24x72xbf16>, vector<72x288xbf16>, vector<24x288xf32> -> vector<24x288xf32>
    %88 = arith.truncf %87 : vector<24x288xf32> to vector<24x288xbf16>
    %c2_80 = arith.constant 2 : index
    %c0_81 = arith.constant 0 : index
    %c0_82 = arith.constant 0 : index
    %89 = vector.load %arg6[%c2_80, %c0_81, %c0_82] : memref<4x288x192xbf16, #tpu.memory_space<vmem>>, vector<1x288x192xbf16>
    %90 = vector.shape_cast %89 : vector<1x288x192xbf16> to vector<288x192xbf16>
    %cst_83 = arith.constant dense<0.000000e+00> : vector<24x192xf32>
    %91 = tpu.matmul %88, %90, %cst_83 {dimension_numbers = #tpu.dot_dimension_numbers<[1], [0], [0], [1], [0, 0, 1, 1], [], []>} : vector<24x288xbf16>, vector<288x192xbf16>, vector<24x192xf32> -> vector<24x192xf32>
    %92 = arith.addf %84, %91 : vector<24x192xf32>
    %c3_84 = arith.constant 3 : index
    %c0_85 = arith.constant 0 : index
    %c0_86 = arith.constant 0 : index
    %93 = vector.load %arg5[%c3_84, %c0_85, %c0_86] : memref<4x24x72xbf16, #tpu.memory_space<vmem>>, vector<1x24x72xbf16>
    %94 = vector.shape_cast %93 : vector<1x24x72xbf16> to vector<24x72xbf16>
    %cst_87 = arith.constant dense<0.000000e+00> : vector<24x288xf32>
    %95 = tpu.matmul %94, %69, %cst_87 {dimension_numbers = #tpu.dot_dimension_numbers<[1], [0], [0], [1], [0, 0, 1, 1], [], []>} : vector<24x72xbf16>, vector<72x288xbf16>, vector<24x288xf32> -> vector<24x288xf32>
    %96 = arith.truncf %95 : vector<24x288xf32> to vector<24x288xbf16>
    %c3_88 = arith.constant 3 : index
    %c0_89 = arith.constant 0 : index
    %c0_90 = arith.constant 0 : index
    %97 = vector.load %arg6[%c3_88, %c0_89, %c0_90] : memref<4x288x192xbf16, #tpu.memory_space<vmem>>, vector<1x288x192xbf16>
    %98 = vector.shape_cast %97 : vector<1x288x192xbf16> to vector<288x192xbf16>
    %cst_91 = arith.constant dense<0.000000e+00> : vector<24x192xf32>
    %99 = tpu.matmul %96, %98, %cst_91 {dimension_numbers = #tpu.dot_dimension_numbers<[1], [0], [0], [1], [0, 0, 1, 1], [], []>} : vector<24x288xbf16>, vector<288x192xbf16>, vector<24x192xf32> -> vector<24x192xf32>
    %100 = arith.addf %92, %99 : vector<24x192xf32>
    %c0_92 = arith.constant 0 : index
    %c0_93 = arith.constant 0 : index
    %101 = vector.load %arg7[%c0_92, %c0_93] : memref<1x192xf32, #tpu.memory_space<vmem>>, vector<1x192xf32>
    %102 = vector.broadcast %101 : vector<1x192xf32> to vector<24x192xf32>
    %103 = arith.addf %100, %102 : vector<24x192xf32>
    %cst_94 = arith.constant 0.000000e+00 : f32
    %104 = vector.broadcast %cst_94 : f32 to vector<24x192xf32>
    %105 = arith.maximumf %103, %104 : vector<24x192xf32>
    %106 = arith.truncf %105 : vector<24x192xf32> to vector<24x192xbf16>
    %c0_95 = arith.constant 0 : index
    %c0_96 = arith.constant 0 : index
    %c0_97 = arith.constant 0 : index
    %107 = vector.load %arg8[%c0_95, %c0_96, %c0_97] : memref<3x8x24xbf16, #tpu.memory_space<vmem>>, vector<1x8x24xbf16>
    %108 = vector.shape_cast %107 : vector<1x8x24xbf16> to vector<8x24xbf16>
    %cst_98 = arith.constant dense<0.000000e+00> : vector<8x192xf32>
    %109 = tpu.matmul %108, %106, %cst_98 {dimension_numbers = #tpu.dot_dimension_numbers<[1], [0], [0], [1], [0, 0, 1, 1], [], []>} : vector<8x24xbf16>, vector<24x192xbf16>, vector<8x192xf32> -> vector<8x192xf32>
    %110 = arith.truncf %109 : vector<8x192xf32> to vector<8x192xbf16>
    %c0_99 = arith.constant 0 : index
    %c0_100 = arith.constant 0 : index
    %c0_101 = arith.constant 0 : index
    %111 = vector.load %arg9[%c0_99, %c0_100, %c0_101] : memref<3x192x64xbf16, #tpu.memory_space<vmem>>, vector<1x192x64xbf16>
    %112 = vector.shape_cast %111 : vector<1x192x64xbf16> to vector<192x64xbf16>
    %cst_102 = arith.constant dense<0.000000e+00> : vector<8x64xf32>
    %113 = tpu.matmul %110, %112, %cst_102 {dimension_numbers = #tpu.dot_dimension_numbers<[1], [0], [0], [1], [0, 0, 1, 1], [], []>} : vector<8x192xbf16>, vector<192x64xbf16>, vector<8x64xf32> -> vector<8x64xf32>
    %c1_103 = arith.constant 1 : index
    %c0_104 = arith.constant 0 : index
    %c0_105 = arith.constant 0 : index
    %114 = vector.load %arg8[%c1_103, %c0_104, %c0_105] : memref<3x8x24xbf16, #tpu.memory_space<vmem>>, vector<1x8x24xbf16>
    %115 = vector.shape_cast %114 : vector<1x8x24xbf16> to vector<8x24xbf16>
    %cst_106 = arith.constant dense<0.000000e+00> : vector<8x192xf32>
    %116 = tpu.matmul %115, %106, %cst_106 {dimension_numbers = #tpu.dot_dimension_numbers<[1], [0], [0], [1], [0, 0, 1, 1], [], []>} : vector<8x24xbf16>, vector<24x192xbf16>, vector<8x192xf32> -> vector<8x192xf32>
    %117 = arith.truncf %116 : vector<8x192xf32> to vector<8x192xbf16>
    %c1_107 = arith.constant 1 : index
    %c0_108 = arith.constant 0 : index
    %c0_109 = arith.constant 0 : index
    %118 = vector.load %arg9[%c1_107, %c0_108, %c0_109] : memref<3x192x64xbf16, #tpu.memory_space<vmem>>, vector<1x192x64xbf16>
    %119 = vector.shape_cast %118 : vector<1x192x64xbf16> to vector<192x64xbf16>
    %cst_110 = arith.constant dense<0.000000e+00> : vector<8x64xf32>
    %120 = tpu.matmul %117, %119, %cst_110 {dimension_numbers = #tpu.dot_dimension_numbers<[1], [0], [0], [1], [0, 0, 1, 1], [], []>} : vector<8x192xbf16>, vector<192x64xbf16>, vector<8x64xf32> -> vector<8x64xf32>
    %121 = arith.addf %113, %120 : vector<8x64xf32>
    %c2_111 = arith.constant 2 : index
    %c0_112 = arith.constant 0 : index
    %c0_113 = arith.constant 0 : index
    %122 = vector.load %arg8[%c2_111, %c0_112, %c0_113] : memref<3x8x24xbf16, #tpu.memory_space<vmem>>, vector<1x8x24xbf16>
    %123 = vector.shape_cast %122 : vector<1x8x24xbf16> to vector<8x24xbf16>
    %cst_114 = arith.constant dense<0.000000e+00> : vector<8x192xf32>
    %124 = tpu.matmul %123, %106, %cst_114 {dimension_numbers = #tpu.dot_dimension_numbers<[1], [0], [0], [1], [0, 0, 1, 1], [], []>} : vector<8x24xbf16>, vector<24x192xbf16>, vector<8x192xf32> -> vector<8x192xf32>
    %125 = arith.truncf %124 : vector<8x192xf32> to vector<8x192xbf16>
    %c2_115 = arith.constant 2 : index
    %c0_116 = arith.constant 0 : index
    %c0_117 = arith.constant 0 : index
    %126 = vector.load %arg9[%c2_115, %c0_116, %c0_117] : memref<3x192x64xbf16, #tpu.memory_space<vmem>>, vector<1x192x64xbf16>
    %127 = vector.shape_cast %126 : vector<1x192x64xbf16> to vector<192x64xbf16>
    %cst_118 = arith.constant dense<0.000000e+00> : vector<8x64xf32>
    %128 = tpu.matmul %125, %127, %cst_118 {dimension_numbers = #tpu.dot_dimension_numbers<[1], [0], [0], [1], [0, 0, 1, 1], [], []>} : vector<8x192xbf16>, vector<192x64xbf16>, vector<8x64xf32> -> vector<8x64xf32>
    %129 = arith.addf %121, %128 : vector<8x64xf32>
    %c0_119 = arith.constant 0 : index
    %c0_120 = arith.constant 0 : index
    %130 = vector.load %arg10[%c0_119, %c0_120] : memref<1x64xf32, #tpu.memory_space<vmem>>, vector<1x64xf32>
    %131 = vector.broadcast %130 : vector<1x64xf32> to vector<8x64xf32>
    %132 = arith.addf %129, %131 : vector<8x64xf32>
    %cst_121 = arith.constant 0.000000e+00 : f32
    %133 = vector.broadcast %cst_121 : f32 to vector<8x64xf32>
    %134 = arith.maximumf %132, %133 : vector<8x64xf32>
    %135 = arith.truncf %134 : vector<8x64xf32> to vector<8x64xbf16>
    %c0_122 = arith.constant 0 : index
    %c0_123 = arith.constant 0 : index
    %c0_124 = arith.constant 0 : index
    %136 = vector.load %arg12[%c0_122, %c0_123, %c0_124] : memref<1x64x64xbf16, #tpu.memory_space<vmem>>, vector<1x64x64xbf16>
    %137 = vector.shape_cast %136 : vector<1x64x64xbf16> to vector<64x64xbf16>
    %cst_125 = arith.constant dense<0.000000e+00> : vector<8x64xf32>
    %138 = tpu.matmul %135, %137, %cst_125 {dimension_numbers = #tpu.dot_dimension_numbers<[1], [0], [0], [1], [0, 0, 1, 1], [], []>} : vector<8x64xbf16>, vector<64x64xbf16>, vector<8x64xf32> -> vector<8x64xf32>
    %c0_126 = arith.constant 0 : index
    %c0_127 = arith.constant 0 : index
    %139 = vector.load %arg13[%c0_126, %c0_127] : memref<1x64xf32, #tpu.memory_space<vmem>>, vector<1x64xf32>
    %140 = vector.broadcast %139 : vector<1x64xf32> to vector<8x64xf32>
    %141 = arith.addf %138, %140 : vector<8x64xf32>
    %cst_128 = arith.constant 0.000000e+00 : f32
    %142 = vector.broadcast %cst_128 : f32 to vector<8x64xf32>
    %143 = arith.maximumf %141, %142 : vector<8x64xf32>
    %c0_129 = arith.constant 0 : index
    %c0_130 = arith.constant 0 : index
    %144 = vector.load %arg14[%c0_129, %c0_130] : memref<1x64xf32, #tpu.memory_space<vmem>>, vector<1x64xf32>
    %145 = vector.broadcast %144 : vector<1x64xf32> to vector<8x64xf32>
    %146 = arith.mulf %143, %145 : vector<8x64xf32>
    %cst_131 = arith.constant dense<0.000000e+00> : vector<8xf32>
    %147 = vector.multi_reduction <add>, %146, %cst_131 [1] : vector<8x64xf32> to vector<8xf32>
    %148 = vector.shape_cast %147 : vector<8xf32> to vector<8x1xf32>
    %c0_132 = arith.constant 0 : index
    %c0_133 = arith.constant 0 : index
    %149 = vector.load %arg15[%c0_132, %c0_133] : memref<1x1xf32, #tpu.memory_space<vmem>>, vector<1x1xf32>
    %150 = vector.broadcast %149 : vector<1x1xf32> to vector<8x1xf32>
    %151 = arith.addf %148, %150 : vector<8x1xf32>
    %152 = arith.negf %151 : vector<8x1xf32>
    %153 = math.exp %152 : vector<8x1xf32>
    %cst_134 = arith.constant 1.000000e+00 : f32
    %154 = vector.broadcast %cst_134 : f32 to vector<8x1xf32>
    %155 = arith.addf %154, %153 : vector<8x1xf32>
    %156 = arith.divf %154, %155 : vector<8x1xf32>
    %c0_135 = arith.constant 0 : index
    %c0_136 = arith.constant 0 : index
    %157 = vector.load %arg16[%c0_135, %c0_136] : memref<8x1xf32, #tpu.memory_space<vmem>>, vector<8x1xf32>
    tpu.vector_store %arg16[%c0_135, %c0_136], %156 {strides = array<i32>} : memref<8x1xf32, #tpu.memory_space<vmem>>, vector<8x1xf32>,
    return
  }
  func.func @transform_0(%arg0: i32) -> (i32, i32) {
    %c0_i32 = arith.constant 0 : i32
    %c0_i32_0 = arith.constant 0 : i32
    return %arg0, %c0_i32 : i32, i32
  }
  func.func @transform_1(%arg0: i32) -> (i32, i32, i32) {
    %c0_i32 = arith.constant 0 : i32
    %c0_i32_0 = arith.constant 0 : i32
    %c0_i32_1 = arith.constant 0 : i32
    %c0_i32_2 = arith.constant 0 : i32
    return %c0_i32, %c0_i32_0, %c0_i32_1 : i32, i32, i32
  }
  func.func @transform_2(%arg0: i32) -> (i32, i32, i32) {
    %c0_i32 = arith.constant 0 : i32
    %c0_i32_0 = arith.constant 0 : i32
    %c0_i32_1 = arith.constant 0 : i32
    %c0_i32_2 = arith.constant 0 : i32
    return %c0_i32, %c0_i32_0, %c0_i32_1 : i32, i32, i32
  }
  func.func @transform_3(%arg0: i32) -> (i32, i32) {
    %c0_i32 = arith.constant 0 : i32
    %c0_i32_0 = arith.constant 0 : i32
    %c0_i32_1 = arith.constant 0 : i32
    return %c0_i32, %c0_i32_0 : i32, i32
  }
  func.func @transform_4(%arg0: i32) -> (i32, i32, i32) {
    %c0_i32 = arith.constant 0 : i32
    %c0_i32_0 = arith.constant 0 : i32
    %c0_i32_1 = arith.constant 0 : i32
    %c0_i32_2 = arith.constant 0 : i32
    return %c0_i32, %c0_i32_0, %c0_i32_1 : i32, i32, i32
  }
  func.func @transform_5(%arg0: i32) -> (i32, i32, i32) {
    %c0_i32 = arith.constant 0 : i32
    %c0_i32_0 = arith.constant 0 : i32
    %c0_i32_1 = arith.constant 0 : i32
    %c0_i32_2 = arith.constant 0 : i32
    return %c0_i32, %c0_i32_0, %c0_i32_1 : i32, i32, i32
  }
  func.func @transform_6(%arg0: i32) -> (i32, i32) {
    %c0_i32 = arith.constant 0 : i32
    %c0_i32_0 = arith.constant 0 : i32
    %c0_i32_1 = arith.constant 0 : i32
    return %c0_i32, %c0_i32_0 : i32, i32
  }
  func.func @transform_7(%arg0: i32) -> (i32, i32, i32) {
    %c0_i32 = arith.constant 0 : i32
    %c0_i32_0 = arith.constant 0 : i32
    %c0_i32_1 = arith.constant 0 : i32
    %c0_i32_2 = arith.constant 0 : i32
    return %c0_i32, %c0_i32_0, %c0_i32_1 : i32, i32, i32
  }
  func.func @transform_8(%arg0: i32) -> (i32, i32, i32) {
    %c0_i32 = arith.constant 0 : i32
    %c0_i32_0 = arith.constant 0 : i32
    %c0_i32_1 = arith.constant 0 : i32
    %c0_i32_2 = arith.constant 0 : i32
    return %c0_i32, %c0_i32_0, %c0_i32_1 : i32, i32, i32
  }
  func.func @transform_9(%arg0: i32) -> (i32, i32) {
    %c0_i32 = arith.constant 0 : i32
    %c0_i32_0 = arith.constant 0 : i32
    %c0_i32_1 = arith.constant 0 : i32
    return %c0_i32, %c0_i32_0 : i32, i32
  }
  func.func @transform_10(%arg0: i32) -> (i32, i32, i32) {
    %c0_i32 = arith.constant 0 : i32
    %c0_i32_0 = arith.constant 0 : i32
    %c0_i32_1 = arith.constant 0 : i32
    %c0_i32_2 = arith.constant 0 : i32
    return %c0_i32, %c0_i32_0, %c0_i32_1 : i32, i32, i32
  }
  func.func @transform_11(%arg0: i32) -> (i32, i32, i32) {
    %c0_i32 = arith.constant 0 : i32
    %c0_i32_0 = arith.constant 0 : i32
    %c0_i32_1 = arith.constant 0 : i32
    %c0_i32_2 = arith.constant 0 : i32
    return %c0_i32, %c0_i32_0, %c0_i32_1 : i32, i32, i32
  }
  func.func @transform_12(%arg0: i32) -> (i32, i32) {
    %c0_i32 = arith.constant 0 : i32
    %c0_i32_0 = arith.constant 0 : i32
    %c0_i32_1 = arith.constant 0 : i32
    return %c0_i32, %c0_i32_0 : i32, i32
  }
  func.func @transform_13(%arg0: i32) -> (i32, i32) {
    %c0_i32 = arith.constant 0 : i32
    %c0_i32_0 = arith.constant 0 : i32
    %c0_i32_1 = arith.constant 0 : i32
    return %c0_i32, %c0_i32_0 : i32, i32
  }
  func.func @transform_14(%arg0: i32) -> (i32, i32) {
    %c0_i32 = arith.constant 0 : i32
    %c0_i32_0 = arith.constant 0 : i32
    %c0_i32_1 = arith.constant 0 : i32
    return %c0_i32, %c0_i32_0 : i32, i32
  }
  func.func @transform_15(%arg0: i32) -> (i32, i32) {
    %c0_i32 = arith.constant 0 : i32
    %c0_i32_0 = arith.constant 0 : i32
    return %arg0, %c0_i32 : i32, i32
  }
}

</mosaic_0001>

<llo_original>
// kernel: _lambda_.1
$region0: #{_lambda_.1}
  #allocation0 [shape = 'u32[]', space=smem, size = 0x4, offset = 0x4, fixed_abs, tag = 'smem constant byte address 0x4 - core index']
  #allocation1 [shape = 'u32[72,128]{1,0:T(1,128)}', space=vmem, size = 0x9000, scoped, tag = 'internal scratch']
  #allocation2 [shape = 'f32[1,1]{1,0:T(1,128)S(1)}', space=vmem, size = 0x200, scoped, tag = 'scoped memory for _lambda_.1']
  %s0 = inlined_call_operand.vmem [shape: bf16[320,80], index: 0, kind: input, shape index: {}]
  %s1 = inlined_call_operand.hbm [shape: bf16[8,72,320], index: 1, kind: input, shape index: {}]
  %s2 = inlined_call_operand.hbm [shape: bf16[8,80,288], index: 2, kind: input, shape index: {}]
  %s3 = inlined_call_operand.vmem [shape: f32[1,288], index: 3, kind: input, shape index: {}]
  %s4 = inlined_call_operand.vmem [shape: bf16[4,24,72], index: 4, kind: input, shape index: {}]
  %s5 = inlined_call_operand.hbm [shape: bf16[4,288,192], index: 5, kind: input, shape index: {}]
  %s6 = inlined_call_operand.vmem [shape: f32[1,192], index: 6, kind: input, shape index: {}]
  %s7 = inlined_call_operand.vmem [shape: bf16[3,8,24], index: 7, kind: input, shape index: {}]
  %s8 = inlined_call_operand.vmem [shape: bf16[3,192,64], index: 8, kind: input, shape index: {}]
  %s9 = inlined_call_operand.vmem [shape: f32[1,64], index: 9, kind: input, shape index: {}]
  %s10 = inlined_call_operand.vmem [shape: bf16[1,8,8], index: 10, kind: input, shape index: {}]
  %s11 = inlined_call_operand.vmem [shape: bf16[1,64,64], index: 11, kind: input, shape index: {}]
  %s12 = inlined_call_operand.vmem [shape: f32[1,64], index: 12, kind: input, shape index: {}]
  %s13 = inlined_call_operand.vmem [shape: f32[1,64], index: 13, kind: input, shape index: {}]
  %s14 = inlined_call_operand.<no memory space> [shape: f32[1,1], index: 14, kind: input, shape index: {}]
  %s15 = inlined_call_operand.vmem [shape: f32[8,1], index: 15, kind: output, shape index: {}]
  %s16 = sld [smem:[#allocation0]]
  $region82: #{_lambda_.1} parent=0
    _
  %s18 = ssub.s32 1, %s16
  %s19 = scalar_select 0, %s18, %s16
  %v20 = vstv %s14
  %21 = vst [vmem:[#allocation2] sm:$0x1] %v20
  $region1: #{_lambda_.1} parent=0
    #allocation3 [shape = 'u8[442368]{0}', space=vmem, size = 0x6c000, scoped, tag = 'input window, operand 1, single buffered']
    #allocation4 [shape = 's32[1]{0}', space=sflag, size = 0x4, scoped, tag = 'scoped memory for _lambda_.1']
    #allocation5 [shape = 'u8[491520]{0}', space=vmem, size = 0x78000, scoped, tag = 'input window, operand 2, single buffered']
    #allocation6 [shape = 's32[1]{0}', space=sflag, size = 0x4, scoped, tag = 'scoped memory for _lambda_.1']
    #allocation7 [shape = 'u8[589824]{0}', space=vmem, size = 0x90000, scoped, tag = 'input window, operand 5, single buffered']
    %22 = vsyncpa [#allocation4], 0
    %23 = vsyncpa [#allocation6], 0
    // Predicated region
    $region2: #{_lambda_.1} parent=1 // pred_check
      _
    $region3: #{_lambda_.1} parent=1 // pred_check_branch
      %25 = sbr.rel (0) target = $region5
    $region4: #{_lambda_.1} parent=1 // pred_region
      _
    $region5: #{_lambda_.1} parent=1 // pred_fallthru
      _
    // Predicated region
    $region6: #{_lambda_.1} parent=1 // pred_check
      _
    $region7: #{_lambda_.1} parent=1 // pred_check_branch
      %27 = sbr.rel (0) target = $region9
    $region8: #{_lambda_.1} parent=1 // pred_region
      %29 = vsyncadd [#allocation4], 0
      %s30 = sshll.u32 %s1, 4
      %s31 = int_to_ptr.hbm [resolvable:$true] %s30
      %s32 = sshll.u32 [#allocation3], 4
      %s33 = int_to_ptr.vmem [resolvable:$true] %s32
      %38 = dma.hbm_to_vmem [thread:$0]  %s31, 13824, %s33, [#allocation4], 192, 192, 12
    $region9: #{_lambda_.1} parent=1 // pred_fallthru
      _
    // Predicated region
    $region10: #{_lambda_.1} parent=1 // pred_check
      _
    $region11: #{_lambda_.1} parent=1 // pred_check_branch
      %40 = sbr.rel (0) target = $region13
    $region12: #{_lambda_.1} parent=1 // pred_region
      %42 = vsyncadd [#allocation6], 0
      %s43 = sshll.u32 %s2, 4
      %s44 = int_to_ptr.hbm [resolvable:$true] %s43
      %s45 = sshll.u32 [#allocation5], 4
      %s46 = int_to_ptr.vmem [resolvable:$true] %s45
      %51 = dma.hbm_to_vmem [thread:$0]  %s44, 15360, %s46, [#allocation6], 192, 192, 12
    $region13: #{_lambda_.1} parent=1 // pred_fallthru
      _
    // Predicated region
    $region14: #{_lambda_.1} parent=1 // pred_check
      _
    $region15: #{_lambda_.1} parent=1 // pred_check_branch
      %53 = sbr.rel (0) target = $region17
    $region16: #{_lambda_.1} parent=1 // pred_region
      _
    $region17: #{_lambda_.1} parent=1 // pred_fallthru
      _
    // Predicated region
    $region18: #{_lambda_.1} parent=1 // pred_check
      _
    $region19: #{_lambda_.1} parent=1 // pred_check_branch
      %55 = sbr.rel (0) target = $region21
    $region20: #{_lambda_.1} parent=1 // pred_region
      _
    $region21: #{_lambda_.1} parent=1 // pred_fallthru
      _
    // Predicated region
    $region22: #{_lambda_.1} parent=1 // pred_check
      _
    $region23: #{_lambda_.1} parent=1 // pred_check_branch
      %57 = sbr.rel (0) target = $region25
    $region24: #{_lambda_.1} parent=1 // pred_region
      %59 = vsyncadd [#allocation6], 0
      %s60 = sshll.u32 %s5, 4
      %s61 = int_to_ptr.hbm [resolvable:$true] %s60
      %s62 = sshll.u32 [#allocation7], 4
      %s63 = int_to_ptr.vmem [resolvable:$true] %s62
      %68 = dma.hbm_to_vmem [thread:$0]  %s61, 18432, %s63, [#allocation6], 128, 128, 8
    $region25: #{_lambda_.1} parent=1 // pred_fallthru
      _
    // Predicated region
    $region26: #{_lambda_.1} parent=1 // pred_check
      _
    $region27: #{_lambda_.1} parent=1 // pred_check_branch
      %70 = sbr.rel (0) target = $region29
    $region28: #{_lambda_.1} parent=1 // pred_region
      _
    $region29: #{_lambda_.1} parent=1 // pred_fallthru
      _
    // Predicated region
    $region30: #{_lambda_.1} parent=1 // pred_check
      _
    $region31: #{_lambda_.1} parent=1 // pred_check_branch
      %72 = sbr.rel (0) target = $region33
    $region32: #{_lambda_.1} parent=1 // pred_region
      _
    $region33: #{_lambda_.1} parent=1 // pred_fallthru
      _
    // Predicated region
    $region34: #{_lambda_.1} parent=1 // pred_check
      _
    $region35: #{_lambda_.1} parent=1 // pred_check_branch
      %74 = sbr.rel (0) target = $region37
    $region36: #{_lambda_.1} parent=1 // pred_region
      _
    $region37: #{_lambda_.1} parent=1 // pred_fallthru
      _
    // Predicated region
    $region38: #{_lambda_.1} parent=1 // pred_check
      _
    $region39: #{_lambda_.1} parent=1 // pred_check_branch
      %76 = sbr.rel (0) target = $region41
    $region40: #{_lambda_.1} parent=1 // pred_region
      _
    $region41: #{_lambda_.1} parent=1 // pred_fallthru
      _
    // Predicated region
    $region42: #{_lambda_.1} parent=1 // pred_check
      _
    $region43: #{_lambda_.1} parent=1 // pred_check_branch
      %78 = sbr.rel (0) target = $region45
    $region44: #{_lambda_.1} parent=1 // pred_region
      _
    $region45: #{_lambda_.1} parent=1 // pred_fallthru
      _
    // Predicated region
    $region46: #{_lambda_.1} parent=1 // pred_check
      _
    $region47: #{_lambda_.1} parent=1 // pred_check_branch
      %80 = sbr.rel (0) target = $region49
    $region48: #{_lambda_.1} parent=1 // pred_region
      _
    $region49: #{_lambda_.1} parent=1 // pred_fallthru
      _
    // Predicated region
    $region50: #{_lambda_.1} parent=1 // pred_check
      _
    $region51: #{_lambda_.1} parent=1 // pred_check_branch
      %82 = sbr.rel (0) target = $region53
    $region52: #{_lambda_.1} parent=1 // pred_region
      _
    $region53: #{_lambda_.1} parent=1 // pred_fallthru
      _
    // Predicated region
    $region54: #{_lambda_.1} parent=1 // pred_check
      _
    $region55: #{_lambda_.1} parent=1 // pred_check_branch
      %84 = sbr.rel (0) target = $region57
    $region56: #{_lambda_.1} parent=1 // pred_region
      _
    $region57: #{_lambda_.1} parent=1 // pred_fallthru
      _
    // Predicated region
    $region58: #{_lambda_.1} parent=1 // pred_check
      _
    $region59: #{_lambda_.1} parent=1 // pred_check_branch
      %86 = sbr.rel (0) target = $region61
    $region60: #{_lambda_.1} parent=1 // pred_region
      _
    $region61: #{_lambda_.1} parent=1 // pred_fallthru
      _
    // Predicated region
    $region62: #{_lambda_.1} parent=1 // pred_check
      _
    $region63: #{_lambda_.1} parent=1 // pred_check_branch
      %88 = sbr.rel (0) target = $region65
    $region64: #{_lambda_.1} parent=1 // pred_region
      %90 = dma.done [#allocation4], 13824
    $region65: #{_lambda_.1} parent=1 // pred_fallthru
      _
    // Predicated region
    $region66: #{_lambda_.1} parent=1 // pred_check
      _
    $region67: #{_lambda_.1} parent=1 // pred_check_branch
      %92 = sbr.rel (0) target = $region69
    $region68: #{_lambda_.1} parent=1 // pred_region
      %94 = dma.done [#allocation6], 15360
    $region69: #{_lambda_.1} parent=1 // pred_fallthru
      _
    // Predicated region
    $region70: #{_lambda_.1} parent=1 // pred_check
      _
    $region71: #{_lambda_.1} parent=1 // pred_check_branch
      %96 = sbr.rel (0) target = $region73
    $region72: #{_lambda_.1} parent=1 // pred_region
      %98 = dma.done [#allocation6], 18432
    $region73: #{_lambda_.1} parent=1 // pred_fallthru
      _
    %v100 = vld [vmem:[%s0] sm:$0xf]
    %v101 = vld [vmem:[%s0 + $0x4] sm:$0xf]
    %v102 = vld [vmem:[%s0 + $0x8] sm:$0xf]
    %v103 = vld [vmem:[%s0 + $0xc] sm:$0xf]
    %v104 = vld [vmem:[%s0 + $0x10] sm:$0xf]
    %v105 = vld [vmem:[%s0 + $0x14] sm:$0xf]
    %v106 = vld [vmem:[%s0 + $0x18] sm:$0xf]
    %v107 = vld [vmem:[%s0 + $0x1c] sm:$0xf]
    %v108 = vld [vmem:[%s0 + $0x20] sm:$0xf]
    %v109 = vld [vmem:[%s0 + $0x24] sm:$0xf]
    %v110 = vld [vmem:[%s0 + $0x28] sm:$0xf]
    %v111 = vld [vmem:[%s0 + $0x2c] sm:$0xf]
    %v112 = vld [vmem:[%s0 + $0x30] sm:$0xf]
    %v113 = vld [vmem:[%s0 + $0x34] sm:$0xf]
    %v114 = vld [vmem:[%s0 + $0x38] sm:$0xf]
    %v115 = vld [vmem:[%s0 + $0x3c] sm:$0xf]
    %v116 = vld [vmem:[%s0 + $0x40] sm:$0xf]
    %v117 = vld [vmem:[%s0 + $0x44] sm:$0xf]
    %v118 = vld [vmem:[%s0 + $0x48] sm:$0xf]
    %v119 = vld [vmem:[%s0 + $0x4c] sm:$0xf]
    %v120 = vld [vmem:[%s0 + $0x50] sm:$0xf]
    %v121 = vld [vmem:[%s0 + $0x54] sm:$0xf]
    %v122 = vld [vmem:[%s0 + $0x58] sm:$0xf]
    %v123 = vld [vmem:[%s0 + $0x5c] sm:$0xf]
    %v124 = vld [vmem:[%s0 + $0x60] sm:$0xf]
    %v125 = vld [vmem:[%s0 + $0x64] sm:$0xf]
    %v126 = vld [vmem:[%s0 + $0x68] sm:$0xf]
    %v127 = vld [vmem:[%s0 + $0x6c] sm:$0xf]
    %v128 = vld [vmem:[%s0 + $0x70] sm:$0xf]
    %v129 = vld [vmem:[%s0 + $0x74] sm:$0xf]
    %v130 = vld [vmem:[%s0 + $0x78] sm:$0xf]
    %v131 = vld [vmem:[%s0 + $0x7c] sm:$0xf]
    %v132 = vld [vmem:[%s0 + $0x80] sm:$0xf]
    %v133 = vld [vmem:[%s0 + $0x84] sm:$0xf]
    %v134 = vld [vmem:[%s0 + $0x88] sm:$0xf]
    %v135 = vld [vmem:[%s0 + $0x8c] sm:$0xf]
    %v136 = vld [vmem:[%s0 + $0x90] sm:$0xf]
    %v137 = vld [vmem:[%s0 + $0x94] sm:$0xf]
    %v138 = vld [vmem:[%s0 + $0x98] sm:$0xf]
    %v139 = vld [vmem:[%s0 + $0x9c] sm:$0xf]
    %v140 = vld [vmem:[#allocation3] sm:$0xff]
    %v141 = vld [vmem:[#allocation3 + $0x8] sm:$0xf]
    %v142 = vld [vmem:[#allocation3 + $0xc] sm:$0xff]
    %v143 = vld [vmem:[#allocation3 + $0x14] sm:$0xf]
    %v144 = vld [vmem:[#allocation3 + $0x18] sm:$0xff]
    %v145 = vld [vmem:[#allocation3 + $0x20] sm:$0xf]
    %v146 = vld [vmem:[#allocation3 + $0x24] sm:$0xff]
    %v147 = vld [vmem:[#allocation3 + $0x2c] sm:$0xf]
    %v148 = vld [vmem:[#allocation3 + $0x30] sm:$0xff]
    %v149 = vld [vmem:[#allocation3 + $0x38] sm:$0xf]
    %v150 = vld [vmem:[#allocation3 + $0x3c] sm:$0xff]
    %v151 = vld [vmem:[#allocation3 + $0x44] sm:$0xf]
    %v152 = vld [vmem:[#allocation3 + $0x48] sm:$0xff]
    %v153 = vld [vmem:[#allocation3 + $0x50] sm:$0xf]
    %v154 = vld [vmem:[#allocation3 + $0x54] sm:$0xff]
    %v155 = vld [vmem:[#allocation3 + $0x5c] sm:$0xf]
    %v156 = vld [vmem:[#allocation3 + $0x60] sm:$0xff]
    %v157 = vld [vmem:[#allocation3 + $0x68] sm:$0xf]
    %v176 = vunpack.c.l.b16 %v140
    %v177 = vunpack.c.h.b16 %v140
    %v178 = vunpack.c.l.b16 %v141
    %v179 = vunpack.c.l.b16 %v142
    %v180 = vunpack.c.h.b16 %v142
    %v181 = vunpack.c.l.b16 %v143
    %v182 = vunpack.c.l.b16 %v144
    %v183 = vunpack.c.h.b16 %v144
    %v184 = vunpack.c.l.b16 %v145
    %v185 = vunpack.c.l.b16 %v146
    %v186 = vunpack.c.h.b16 %v146
    %v187 = vunpack.c.l.b16 %v147
    %v188 = vunpack.c.l.b16 %v148
    %v189 = vunpack.c.h.b16 %v148
    %v190 = vunpack.c.l.b16 %v149
    %v191 = vunpack.c.l.b16 %v150
    %v192 = vunpack.c.h.b16 %v150
    %v193 = vunpack.c.l.b16 %v151
    %v194 = vunpack.c.l.b16 %v152
    %v195 = vunpack.c.h.b16 %v152
    %v196 = vunpack.c.l.b16 %v153
    %v197 = vunpack.c.l.b16 %v154
    %v198 = vunpack.c.h.b16 %v154
    %v199 = vunpack.c.l.b16 %v155
    %v200 = vunpack.c.l.b16 %v156
    %v201 = vunpack.c.h.b16 %v156
    %v202 = vunpack.c.l.b16 %v157
    %v203 = vpack.c.b16 %v179, %v176
    %v204 = vpack.c.b16 %v180, %v177
    %v205 = vpack.c.b16 %v181, %v178
    %v206 = vpack.c.b16 %v185, %v182
    %v207 = vpack.c.b16 %v186, %v183
    %v208 = vpack.c.b16 %v187, %v184
    %v209 = vpack.c.b16 %v191, %v188
    %v210 = vpack.c.b16 %v192, %v189
    %v211 = vpack.c.b16 %v193, %v190
    %v212 = vpack.c.b16 %v197, %v194
    %v213 = vpack.c.b16 %v198, %v195
    %v214 = vpack.c.b16 %v199, %v196
    %v215 = vpack.c.b16 %v200, %v200
    %v216 = vpack.c.b16 %v201, %v201
    %v217 = vpack.c.b16 %v202, %v202
    %v268 = vunpack.c.l.b16 %v100
    %v269 = vunpack.c.l.b16 %v101
    %v270 = vunpack.c.l.b16 %v102
    %v271 = vunpack.c.l.b16 %v103
    %v272 = vunpack.c.l.b16 %v104
    %v273 = vunpack.c.l.b16 %v105
    %v274 = vunpack.c.l.b16 %v106
    %v275 = vunpack.c.l.b16 %v107
    %v276 = vunpack.c.l.b16 %v108
    %v277 = vunpack.c.l.b16 %v109
    %v278 = vunpack.c.l.b16 %v110
    %v279 = vunpack.c.l.b16 %v111
    %v280 = vunpack.c.l.b16 %v112
    %v281 = vunpack.c.l.b16 %v113
    %v282 = vunpack.c.l.b16 %v114
    %v283 = vunpack.c.l.b16 %v115
    %v284 = vunpack.c.l.b16 %v116
    %v285 = vunpack.c.l.b16 %v117
    %v286 = vunpack.c.l.b16 %v118
    %v287 = vunpack.c.l.b16 %v119
    %v288 = vunpack.c.l.b16 %v120
    %v289 = vunpack.c.l.b16 %v121
    %v290 = vunpack.c.l.b16 %v122
    %v291 = vunpack.c.l.b16 %v123
    %v292 = vunpack.c.l.b16 %v124
    %v293 = vunpack.c.l.b16 %v125
    %v294 = vunpack.c.l.b16 %v126
    %v295 = vunpack.c.l.b16 %v127
    %v296 = vunpack.c.l.b16 %v128
    %v297 = vunpack.c.l.b16 %v129
    %v298 = vunpack.c.l.b16 %v130
    %v299 = vunpack.c.l.b16 %v131
    %v300 = vunpack.c.l.b16 %v132
    %v301 = vunpack.c.l.b16 %v133
    %v302 = vunpack.c.l.b16 %v134
    %v303 = vunpack.c.l.b16 %v135
    %v304 = vunpack.c.l.b16 %v136
    %v305 = vunpack.c.l.b16 %v137
    %v306 = vunpack.c.l.b16 %v138
    %v307 = vunpack.c.l.b16 %v139
    %v308 = vpack.c.b16 %v269, %v268
    %v309 = vpack.c.b16 %v271, %v270
    %v310 = vpack.c.b16 %v273, %v272
    %v311 = vpack.c.b16 %v275, %v274
    %v312 = vpack.c.b16 %v277, %v276
    %v313 = vpack.c.b16 %v279, %v278
    %v314 = vpack.c.b16 %v281, %v280
    %v315 = vpack.c.b16 %v283, %v282
    %v316 = vpack.c.b16 %v285, %v284
    %v317 = vpack.c.b16 %v287, %v286
    %v318 = vpack.c.b16 %v289, %v288
    %v319 = vpack.c.b16 %v291, %v290
    %v320 = vpack.c.b16 %v293, %v292
    %v321 = vpack.c.b16 %v295, %v294
    %v322 = vpack.c.b16 %v297, %v296
    %v323 = vpack.c.b16 %v299, %v298
    %v324 = vpack.c.b16 %v301, %v300
    %v325 = vpack.c.b16 %v303, %v302
    %v326 = vpack.c.b16 %v305, %v304
    %v327 = vpack.c.b16 %v307, %v306
    %vm348 = vcmask 523264
    %v350 = vsel %vm348, %v205, 0
    %v353 = vsel %vm348, %v208, 0
    %v356 = vsel %vm348, %v211, 0
    %v359 = vsel %vm348, %v214, 0
    %v362 = vsel %vm348, %v217, 0
    %364 = vmatpush.bf16.msra.mxu0 %v315
    %365 = vmatpush.bf16.msra.mxu0 %v314
    %366 = vmatpush.bf16.msra.mxu0 %v313
    %367 = vmatpush.bf16.msra.mxu0 %v312
    %368 = vmatpush.bf16.msra.mxu0 %v311
    %369 = vmatpush.bf16.msra.mxu0 %v310
    %370 = vmatpush.bf16.msra.mxu0 %v309
    %371 = vmatpush.bf16.msra.mxu0 %v308
    %372 = vmatmul.bf16.gmra.mxu0 %v203
    %v373 = vpop.f32.mrf.mxu0
    %v374 = vadd.f32 0.0, %v373
    %v375 = vpop.f32.mrf.mxu0
    %v376 = vadd.f32 0.0, %v375
    %377 = vmatmul.bf16.gmra.mxu0 %v206
    %v378 = vpop.f32.mrf.mxu0
    %v379 = vadd.f32 0.0, %v378
    %v380 = vpop.f32.mrf.mxu0
    %v381 = vadd.f32 0.0, %v380
    %382 = vmatmul.bf16.gmra.mxu0 %v209
    %v383 = vpop.f32.mrf.mxu0
    %v384 = vadd.f32 0.0, %v383
    %v385 = vpop.f32.mrf.mxu0
    %v386 = vadd.f32 0.0, %v385
    %387 = vmatmul.bf16.gmra.mxu0 %v212
    %v388 = vpop.f32.mrf.mxu0
    %v389 = vadd.f32 0.0, %v388
    %v390 = vpop.f32.mrf.mxu0
    %v391 = vadd.f32 0.0, %v390
    %392 = vmatmul.bf16.gmra.mxu0 %v215
    %v393 = vpop.f32.mrf.mxu0
    %v394 = vadd.f32 0.0, %v393
    %v395 = vpop.f32.mrf.mxu0
    %396 = vdwg.mxu0
    %397 = vmatpush.bf16.msra.mxu0 %v323
    %398 = vmatpush.bf16.msra.mxu0 %v322
    %399 = vmatpush.bf16.msra.mxu0 %v321
    %400 = vmatpush.bf16.msra.mxu0 %v320
    %401 = vmatpush.bf16.msra.mxu0 %v319
    %402 = vmatpush.bf16.msra.mxu0 %v318
    %403 = vmatpush.bf16.msra.mxu0 %v317
    %404 = vmatpush.bf16.msra.mxu0 %v316
    %405 = vmatmul.bf16.gmra.mxu0 %v204
    %v406 = vpop.f32.mrf.mxu0
    %v407 = vadd.f32 %v374, %v406
    %v408 = vpop.f32.mrf.mxu0
    %v409 = vadd.f32 %v376, %v408
    %410 = vmatmul.bf16.gmra.mxu0 %v207
    %v411 = vpop.f32.mrf.mxu0
    %v412 = vadd.f32 %v379, %v411
    %v413 = vpop.f32.mrf.mxu0
    %v414 = vadd.f32 %v381, %v413
    %415 = vmatmul.bf16.gmra.mxu0 %v210
    %v416 = vpop.f32.mrf.mxu0
    %v417 = vadd.f32 %v384, %v416
    %v418 = vpop.f32.mrf.mxu0
    %v419 = vadd.f32 %v386, %v418
    %420 = vmatmul.bf16.gmra.mxu0 %v213
    %v421 = vpop.f32.mrf.mxu0
    %v422 = vadd.f32 %v389, %v421
    %v423 = vpop.f32.mrf.mxu0
    %v424 = vadd.f32 %v391, %v423
    %425 = vmatmul.bf16.gmra.mxu0 %v216
    %v426 = vpop.f32.mrf.mxu0
    %v427 = vadd.f32 %v394, %v426
    %v428 = vpop.f32.mrf.mxu0
    %429 = vdwg.mxu0
    %430 = vmatpush.bf16.msra.mxu0 0
    %431 = vmatpush.bf16.msra.mxu0 0
    %432 = vmatpush.bf16.msra.mxu0 0
    %433 = vmatpush.bf16.msra.mxu0 0
    %434 = vmatpush.bf16.msra.mxu0 %v327
    %435 = vmatpush.bf16.msra.mxu0 %v326
    %436 = vmatpush.bf16.msra.mxu0 %v325
    %437 = vmatpush.bf16.msra.mxu0 %v324
    %438 = vmatmul.bf16.gmra.mxu0 %v350
    %v439 = vpop.f32.mrf.mxu0
    %v440 = vadd.f32 %v407, %v439
    %v441 = vpop.f32.mrf.mxu0
    %v442 = vadd.f32 %v409, %v441
    %443 = vmatmul.bf16.gmra.mxu0 %v353
    %v444 = vpop.f32.mrf.mxu0
    %v445 = vadd.f32 %v412, %v444
    %v446 = vpop.f32.mrf.mxu0
    %v447 = vadd.f32 %v414, %v446
    %448 = vmatmul.bf16.gmra.mxu0 %v356
    %v449 = vpop.f32.mrf.mxu0
    %v450 = vadd.f32 %v417, %v449
    %v451 = vpop.f32.mrf.mxu0
    %v452 = vadd.f32 %v419, %v451
    %453 = vmatmul.bf16.gmra.mxu0 %v359
    %v454 = vpop.f32.mrf.mxu0
    %v455 = vadd.f32 %v422, %v454
    %v456 = vpop.f32.mrf.mxu0
    %v457 = vadd.f32 %v424, %v456
    %458 = vmatmul.bf16.gmra.mxu0 %v362
    %v459 = vpop.f32.mrf.mxu0
    %v460 = vadd.f32 %v427, %v459
    %v461 = vpop.f32.mrf.mxu0
    %462 = vdwg.mxu0
    %v463 = vpack.c.bf16 %v442, %v440
    %v464 = vpack.c.bf16 %v447, %v445
    %v465 = vpack.c.bf16 %v452, %v450
    %v466 = vpack.c.bf16 %v457, %v455
    %v467 = vpack.c.bf16 %v460, %v460
    %v468 = vld [vmem:[#allocation5] sm:$0xff]
    %v469 = vld [vmem:[#allocation5 + $0x8] sm:$0xf]
    %v470 = vld [vmem:[#allocation5 + $0xc] sm:$0xff]
    %v471 = vld [vmem:[#allocation5 + $0x14] sm:$0xf]
    %v472 = vld [vmem:[#allocation5 + $0x18] sm:$0xff]
    %v473 = vld [vmem:[#allocation5 + $0x20] sm:$0xf]
    %v474 = vld [vmem:[#allocation5 + $0x24] sm:$0xff]
    %v475 = vld [vmem:[#allocation5 + $0x2c] sm:$0xf]
    %v476 = vld [vmem:[#allocation5 + $0x30] sm:$0xff]
    %v477 = vld [vmem:[#allocation5 + $0x38] sm:$0xf]
    %v478 = vld [vmem:[#allocation5 + $0x3c] sm:$0xff]
    %v479 = vld [vmem:[#allocation5 + $0x44] sm:$0xf]
    %v480 = vld [vmem:[#allocation5 + $0x48] sm:$0xff]
    %v481 = vld [vmem:[#allocation5 + $0x50] sm:$0xf]
    %v482 = vld [vmem:[#allocation5 + $0x54] sm:$0xff]
    %v483 = vld [vmem:[#allocation5 + $0x5c] sm:$0xf]
    %v484 = vld [vmem:[#allocation5 + $0x60] sm:$0xff]
    %v485 = vld [vmem:[#allocation5 + $0x68] sm:$0xf]
    %v486 = vld [vmem:[#allocation5 + $0x6c] sm:$0xff]
    %v487 = vld [vmem:[#allocation5 + $0x74] sm:$0xf]
    %s488 = scalar_lea.vmem [#allocation3], 108
    %v489 = vld [vmem:[%s488] sm:$0xff]
    %v490 = vld [vmem:[%s488 + $0x8] sm:$0xf]
    %v491 = vld [vmem:[%s488 + $0xc] sm:$0xff]
    %v492 = vld [vmem:[%s488 + $0x14] sm:$0xf]
    %v493 = vld [vmem:[%s488 + $0x18] sm:$0xff]
    %v494 = vld [vmem:[%s488 + $0x20] sm:$0xf]
    %v495 = vld [vmem:[%s488 + $0x24] sm:$0xff]
    %v496 = vld [vmem:[%s488 + $0x2c] sm:$0xf]
    %v497 = vld [vmem:[%s488 + $0x30] sm:$0xff]
    %v498 = vld [vmem:[%s488 + $0x38] sm:$0xf]
    %v499 = vld [vmem:[%s488 + $0x3c] sm:$0xff]
    %v500 = vld [vmem:[%s488 + $0x44] sm:$0xf]
    %v501 = vld [vmem:[%s488 + $0x48] sm:$0xff]
    %v502 = vld [vmem:[%s488 + $0x50] sm:$0xf]
    %v503 = vld [vmem:[%s488 + $0x54] sm:$0xff]
    %v504 = vld [vmem:[%s488 + $0x5c] sm:$0xf]
    %v505 = vld [vmem:[%s488 + $0x60] sm:$0xff]
    %v506 = vld [vmem:[%s488 + $0x68] sm:$0xf]
    %v525 = vunpack.c.l.b16 %v489
    %v526 = vunpack.c.h.b16 %v489
    %v527 = vunpack.c.l.b16 %v490
    %v528 = vunpack.c.l.b16 %v491
    %v529 = vunpack.c.h.b16 %v491
    %v530 = vunpack.c.l.b16 %v492
    %v531 = vunpack.c.l.b16 %v493
    %v532 = vunpack.c.h.b16 %v493
    %v533 = vunpack.c.l.b16 %v494
    %v534 = vunpack.c.l.b16 %v495
    %v535 = vunpack.c.h.b16 %v495
    %v536 = vunpack.c.l.b16 %v496
    %v537 = vunpack.c.l.b16 %v497
    %v538 = vunpack.c.h.b16 %v497
    %v539 = vunpack.c.l.b16 %v498
    %v540 = vunpack.c.l.b16 %v499
    %v541 = vunpack.c.h.b16 %v499
    %v542 = vunpack.c.l.b16 %v500
    %v543 = vunpack.c.l.b16 %v501
    %v544 = vunpack.c.h.b16 %v501
    %v545 = vunpack.c.l.b16 %v502
    %v546 = vunpack.c.l.b16 %v503
    %v547 = vunpack.c.h.b16 %v503
    %v548 = vunpack.c.l.b16 %v504
    %v549 = vunpack.c.l.b16 %v505
    %v550 = vunpack.c.h.b16 %v505
    %v551 = vunpack.c.l.b16 %v506
    %v552 = vpack.c.b16 %v528, %v525
    %v553 = vpack.c.b16 %v529, %v526
    %v554 = vpack.c.b16 %v530, %v527
    %v555 = vpack.c.b16 %v534, %v531
    %v556 = vpack.c.b16 %v535, %v532
    %v557 = vpack.c.b16 %v536, %v533
    %v558 = vpack.c.b16 %v540, %v537
    %v559 = vpack.c.b16 %v541, %v538
    %v560 = vpack.c.b16 %v542, %v539
    %v561 = vpack.c.b16 %v546, %v543
    %v562 = vpack.c.b16 %v547, %v544
    %v563 = vpack.c.b16 %v548, %v545
    %v564 = vpack.c.b16 %v549, %v549
    %v565 = vpack.c.b16 %v550, %v550
    %v566 = vpack.c.b16 %v551, %v551
    %v578 = vsel %vm348, %v554, 0
    %v581 = vsel %vm348, %v557, 0
    %v584 = vsel %vm348, %v560, 0
    %v587 = vsel %vm348, %v563, 0
    %v590 = vsel %vm348, %v566, 0
    %592 = vmatpush.bf16.msra.mxu0 %v315
    %593 = vmatpush.bf16.msra.mxu0 %v314
    %594 = vmatpush.bf16.msra.mxu0 %v313
    %595 = vmatpush.bf16.msra.mxu0 %v312
    %596 = vmatpush.bf16.msra.mxu0 %v311
    %597 = vmatpush.bf16.msra.mxu0 %v310
    %598 = vmatpush.bf16.msra.mxu0 %v309
    %599 = vmatpush.bf16.msra.mxu0 %v308
    %600 = vmatmul.bf16.gmra.mxu0 %v552
    %v601 = vpop.f32.mrf.mxu0
    %v602 = vadd.f32 0.0, %v601
    %v603 = vpop.f32.mrf.mxu0
    %v604 = vadd.f32 0.0, %v603
    %605 = vmatmul.bf16.gmra.mxu0 %v555
    %v606 = vpop.f32.mrf.mxu0
    %v607 = vadd.f32 0.0, %v606
    %v608 = vpop.f32.mrf.mxu0
    %v609 = vadd.f32 0.0, %v608
    %610 = vmatmul.bf16.gmra.mxu0 %v558
    %v611 = vpop.f32.mrf.mxu0
    %v612 = vadd.f32 0.0, %v611
    %v613 = vpop.f32.mrf.mxu0
    %v614 = vadd.f32 0.0, %v613
    %615 = vmatmul.bf16.gmra.mxu0 %v561
    %v616 = vpop.f32.mrf.mxu0
    %v617 = vadd.f32 0.0, %v616
    %v618 = vpop.f32.mrf.mxu0
    %v619 = vadd.f32 0.0, %v618
    %620 = vmatmul.bf16.gmra.mxu0 %v564
    %v621 = vpop.f32.mrf.mxu0
    %v622 = vadd.f32 0.0, %v621
    %v623 = vpop.f32.mrf.mxu0
    %624 = vdwg.mxu0
    %625 = vmatpush.bf16.msra.mxu0 %v323
    %626 = vmatpush.bf16.msra.mxu0 %v322
    %627 = vmatpush.bf16.msra.mxu0 %v321
    %628 = vmatpush.bf16.msra.mxu0 %v320
    %629 = vmatpush.bf16.msra.mxu0 %v319
    %630 = vmatpush.bf16.msra.mxu0 %v318
    %631 = vmatpush.bf16.msra.mxu0 %v317
    %632 = vmatpush.bf16.msra.mxu0 %v316
    %633 = vmatmul.bf16.gmra.mxu0 %v553
    %v634 = vpop.f32.mrf.mxu0
    %v635 = vadd.f32 %v602, %v634
    %v636 = vpop.f32.mrf.mxu0
    %v637 = vadd.f32 %v604, %v636
    %638 = vmatmul.bf16.gmra.mxu0 %v556
    %v639 = vpop.f32.mrf.mxu0
    %v640 = vadd.f32 %v607, %v639
    %v641 = vpop.f32.mrf.mxu0
    %v642 = vadd.f32 %v609, %v641
    %643 = vmatmul.bf16.gmra.mxu0 %v559
    %v644 = vpop.f32.mrf.mxu0
    %v645 = vadd.f32 %v612, %v644
    %v646 = vpop.f32.mrf.mxu0
    %v647 = vadd.f32 %v614, %v646
    %648 = vmatmul.bf16.gmra.mxu0 %v562
    %v649 = vpop.f32.mrf.mxu0
    %v650 = vadd.f32 %v617, %v649
    %v651 = vpop.f32.mrf.mxu0
    %v652 = vadd.f32 %v619, %v651
    %653 = vmatmul.bf16.gmra.mxu0 %v565
    %v654 = vpop.f32.mrf.mxu0
    %v655 = vadd.f32 %v622, %v654
    %v656 = vpop.f32.mrf.mxu0
    %657 = vdwg.mxu0
    %658 = vmatpush.bf16.msra.mxu0 0
    %659 = vmatpush.bf16.msra.mxu0 0
    %660 = vmatpush.bf16.msra.mxu0 0
    %661 = vmatpush.bf16.msra.mxu0 0
    %662 = vmatpush.bf16.msra.mxu0 %v327
    %663 = vmatpush.bf16.msra.mxu0 %v326
    %664 = vmatpush.bf16.msra.mxu0 %v325
    %665 = vmatpush.bf16.msra.mxu0 %v324
    %666 = vmatmul.bf16.gmra.mxu0 %v578
    %v667 = vpop.f32.mrf.mxu0
    %v668 = vadd.f32 %v635, %v667
    %v669 = vpop.f32.mrf.mxu0
    %v670 = vadd.f32 %v637, %v669
    %671 = vmatmul.bf16.gmra.mxu0 %v581
    %v672 = vpop.f32.mrf.mxu0
    %v673 = vadd.f32 %v640, %v672
    %v674 = vpop.f32.mrf.mxu0
    %v675 = vadd.f32 %v642, %v674
    %676 = vmatmul.bf16.gmra.mxu0 %v584
    %v677 = vpop.f32.mrf.mxu0
    %v678 = vadd.f32 %v645, %v677
    %v679 = vpop.f32.mrf.mxu0
    %v680 = vadd.f32 %v647, %v679
    %681 = vmatmul.bf16.gmra.mxu0 %v587
    %v682 = vpop.f32.mrf.mxu0
    %v683 = vadd.f32 %v650, %v682
    %v684 = vpop.f32.mrf.mxu0
    %v685 = vadd.f32 %v652, %v684
    %686 = vmatmul.bf16.gmra.mxu0 %v590
    %v687 = vpop.f32.mrf.mxu0
    %v688 = vadd.f32 %v655, %v687
    %v689 = vpop.f32.mrf.mxu0
    %690 = vdwg.mxu0
    %v691 = vpack.c.bf16 %v670, %v668
    %v692 = vpack.c.bf16 %v675, %v673
    %v693 = vpack.c.bf16 %v680, %v678
    %v694 = vpack.c.bf16 %v685, %v683
    %v695 = vpack.c.bf16 %v688, %v688
    %s696 = scalar_lea.vmem [#allocation5], 120
    %v697 = vld [vmem:[%s696] sm:$0xff]
    %v698 = vld [vmem:[%s696 + $0x8] sm:$0xf]
    %v699 = vld [vmem:[%s696 + $0xc] sm:$0xff]
    %v700 = vld [vmem:[%s696 + $0x14] sm:$0xf]
    %v701 = vld [vmem:[%s696 + $0x18] sm:$0xff]
    %v702 = vld [vmem:[%s696 + $0x20] sm:$0xf]
    %v703 = vld [vmem:[%s696 + $0x24] sm:$0xff]
    %v704 = vld [vmem:[%s696 + $0x2c] sm:$0xf]
    %v705 = vld [vmem:[%s696 + $0x30] sm:$0xff]
    %v706 = vld [vmem:[%s696 + $0x38] sm:$0xf]
    %v707 = vld [vmem:[%s696 + $0x3c] sm:$0xff]
    %v708 = vld [vmem:[%s696 + $0x44] sm:$0xf]
    %v709 = vld [vmem:[%s696 + $0x48] sm:$0xff]
    %v710 = vld [vmem:[%s696 + $0x50] sm:$0xf]
    %v711 = vld [vmem:[%s696 + $0x54] sm:$0xff]
    %v712 = vld [vmem:[%s696 + $0x5c] sm:$0xf]
    %v713 = vld [vmem:[%s696 + $0x60] sm:$0xff]
    %v714 = vld [vmem:[%s696 + $0x68] sm:$0xf]
    %v715 = vld [vmem:[%s696 + $0x6c] sm:$0xff]
    %v716 = vld [vmem:[%s696 + $0x74] sm:$0xf]
    %v737 = vunpack.c.l.b16 %v697
    %v738 = vunpack.c.h.b16 %v697
    %v739 = vunpack.c.l.b16 %v698
    %v740 = vunpack.c.l.b16 %v699
    %v741 = vunpack.c.h.b16 %v699
    %v742 = vunpack.c.l.b16 %v700
    %v743 = vunpack.c.l.b16 %v701
    %v744 = vunpack.c.h.b16 %v701
    %v745 = vunpack.c.l.b16 %v702
    %v746 = vunpack.c.l.b16 %v703
    %v747 = vunpack.c.h.b16 %v703
    %v748 = vunpack.c.l.b16 %v704
    %v749 = vunpack.c.l.b16 %v705
    %v750 = vunpack.c.h.b16 %v705
    %v751 = vunpack.c.l.b16 %v706
    %v752 = vunpack.c.l.b16 %v707
    %v753 = vunpack.c.h.b16 %v707
    %v754 = vunpack.c.l.b16 %v708
    %v755 = vunpack.c.l.b16 %v709
    %v756 = vunpack.c.h.b16 %v709
    %v757 = vunpack.c.l.b16 %v710
    %v758 = vunpack.c.l.b16 %v711
    %v759 = vunpack.c.h.b16 %v711
    %v760 = vunpack.c.l.b16 %v712
    %v761 = vunpack.c.l.b16 %v713
    %v762 = vunpack.c.h.b16 %v713
    %v763 = vunpack.c.l.b16 %v714
    %v764 = vunpack.c.l.b16 %v715
    %v765 = vunpack.c.h.b16 %v715
    %v766 = vunpack.c.l.b16 %v716
    %v767 = vpack.c.b16 %v740, %v737
    %v768 = vpack.c.b16 %v741, %v738
    %v769 = vpack.c.b16 %v742, %v739
    %v770 = vpack.c.b16 %v746, %v743
    %v771 = vpack.c.b16 %v747, %v744
    %v772 = vpack.c.b16 %v748, %v745
    %v773 = vpack.c.b16 %v752, %v749
    %v774 = vpack.c.b16 %v753, %v750
    %v775 = vpack.c.b16 %v754, %v751
    %v776 = vpack.c.b16 %v758, %v755
    %v777 = vpack.c.b16 %v759, %v756
    %v778 = vpack.c.b16 %v760, %v757
    %v779 = vpack.c.b16 %v764, %v761
    %v780 = vpack.c.b16 %v765, %v762
    %v781 = vpack.c.b16 %v766, %v763
    %vm797 = vcmask 654336
    %v799 = vsel %vm797, %v691, 0
    %v802 = vsel %vm797, %v692, 0
    %v805 = vsel %vm797, %v693, 0
    %v808 = vsel %vm797, %v694, 0
    %v811 = vsel %vm797, %v695, 0
    %813 = vmatpush.bf16.msra.mxu0 0
    %814 = vmatpush.bf16.msra.mxu0 0
    %815 = vmatpush.bf16.msra.mxu0 0
    %816 = vmatpush.bf16.msra.mxu0 %v779
    %817 = vmatpush.bf16.msra.mxu0 %v776
    %818 = vmatpush.bf16.msra.mxu0 %v773
    %819 = vmatpush.bf16.msra.mxu0 %v770
    %820 = vmatpush.bf16.msra.mxu0 %v767
    %821 = vmatmul.bf16.gmra.mxu0 %v799
    %v822 = vpop.f32.mrf.mxu0
    %v823 = vadd.f32 0.0, %v822
    %v824 = vpop.f32.mrf.mxu0
    %v825 = vadd.f32 0.0, %v824
    %826 = vmatmul.bf16.gmra.mxu0 %v802
    %v827 = vpop.f32.mrf.mxu0
    %v828 = vadd.f32 0.0, %v827
    %v829 = vpop.f32.mrf.mxu0
    %v830 = vadd.f32 0.0, %v829
    %831 = vmatmul.bf16.gmra.mxu0 %v805
    %v832 = vpop.f32.mrf.mxu0
    %v833 = vadd.f32 0.0, %v832
    %v834 = vpop.f32.mrf.mxu0
    %v835 = vadd.f32 0.0, %v834
    %836 = vmatmul.bf16.gmra.mxu0 %v808
    %v837 = vpop.f32.mrf.mxu0
    %v838 = vadd.f32 0.0, %v837
    %v839 = vpop.f32.mrf.mxu0
    %v840 = vadd.f32 0.0, %v839
    %841 = vmatmul.bf16.gmra.mxu0 %v811
    %v842 = vpop.f32.mrf.mxu0
    %v843 = vadd.f32 0.0, %v842
    %v844 = vpop.f32.mrf.mxu0
    %845 = vdwg.mxu0
    %846 = vmatpush.bf16.msra.mxu0 0
    %847 = vmatpush.bf16.msra.mxu0 0
    %848 = vmatpush.bf16.msra.mxu0 0
    %849 = vmatpush.bf16.msra.mxu0 %v780
    %850 = vmatpush.bf16.msra.mxu0 %v777
    %851 = vmatpush.bf16.msra.mxu0 %v774
    %852 = vmatpush.bf16.msra.mxu0 %v771
    %853 = vmatpush.bf16.msra.mxu0 %v768
    %854 = vmatmul.bf16.gmra.mxu0 %v799
    %v855 = vpop.f32.mrf.mxu0
    %v856 = vadd.f32 0.0, %v855
    %v857 = vpop.f32.mrf.mxu0
    %v858 = vadd.f32 0.0, %v857
    %859 = vmatmul.bf16.gmra.mxu0 %v802
    %v860 = vpop.f32.mrf.mxu0
    %v861 = vadd.f32 0.0, %v860
    %v862 = vpop.f32.mrf.mxu0
    %v863 = vadd.f32 0.0, %v862
    %864 = vmatmul.bf16.gmra.mxu0 %v805
    %v865 = vpop.f32.mrf.mxu0
    %v866 = vadd.f32 0.0, %v865
    %v867 = vpop.f32.mrf.mxu0
    %v868 = vadd.f32 0.0, %v867
    %869 = vmatmul.bf16.gmra.mxu0 %v808
    %v870 = vpop.f32.mrf.mxu0
    %v871 = vadd.f32 0.0, %v870
    %v872 = vpop.f32.mrf.mxu0
    %v873 = vadd.f32 0.0, %v872
    %874 = vmatmul.bf16.gmra.mxu0 %v811
    %v875 = vpop.f32.mrf.mxu0
    %v876 = vadd.f32 0.0, %v875
    %v877 = vpop.f32.mrf.mxu0
    %878 = vdwg.mxu0
    %879 = vmatpush.bf16.msra.mxu0 0
    %880 = vmatpush.bf16.msra.mxu0 0
    %881 = vmatpush.bf16.msra.mxu0 0
    %882 = vmatpush.bf16.msra.mxu0 %v781
    %883 = vmatpush.bf16.msra.mxu0 %v778
    %884 = vmatpush.bf16.msra.mxu0 %v775
    %885 = vmatpush.bf16.msra.mxu0 %v772
    %886 = vmatpush.bf16.msra.mxu0 %v769
    %887 = vmatmul.bf16.gmra.mxu0 %v799
    %v888 = vpop.f32.mrf.mxu0
    %v889 = vadd.f32 0.0, %v888
    %v890 = vpop.f32.mrf.mxu0
    %v891 = vadd.f32 0.0, %v890
    %892 = vmatmul.bf16.gmra.mxu0 %v802
    %v893 = vpop.f32.mrf.mxu0
    %v894 = vadd.f32 0.0, %v893
    %v895 = vpop.f32.mrf.mxu0
    %v896 = vadd.f32 0.0, %v895
    %897 = vmatmul.bf16.gmra.mxu0 %v805
    %v898 = vpop.f32.mrf.mxu0
    %v899 = vadd.f32 0.0, %v898
    %v900 = vpop.f32.mrf.mxu0
    %v901 = vadd.f32 0.0, %v900
    %902 = vmatmul.bf16.gmra.mxu0 %v808
    %v903 = vpop.f32.mrf.mxu0
    %v904 = vadd.f32 0.0, %v903
    %v905 = vpop.f32.mrf.mxu0
    %v906 = vadd.f32 0.0, %v905
    %907 = vmatmul.bf16.gmra.mxu0 %v811
    %v908 = vpop.f32.mrf.mxu0
    %v909 = vadd.f32 0.0, %v908
    %v910 = vpop.f32.mrf.mxu0
    %911 = vdwg.mxu0
    %v932 = vunpack.c.l.b16 %v468
    %v933 = vunpack.c.h.b16 %v468
    %v934 = vunpack.c.l.b16 %v469
    %v935 = vunpack.c.l.b16 %v470
    %v936 = vunpack.c.h.b16 %v470
    %v937 = vunpack.c.l.b16 %v471
    %v938 = vunpack.c.l.b16 %v472
    %v939 = vunpack.c.h.b16 %v472
    %v940 = vunpack.c.l.b16 %v473
    %v941 = vunpack.c.l.b16 %v474
    %v942 = vunpack.c.h.b16 %v474
    %v943 = vunpack.c.l.b16 %v475
    %v944 = vunpack.c.l.b16 %v476
    %v945 = vunpack.c.h.b16 %v476
    %v946 = vunpack.c.l.b16 %v477
    %v947 = vunpack.c.l.b16 %v478
    %v948 = vunpack.c.h.b16 %v478
    %v949 = vunpack.c.l.b16 %v479
    %v950 = vunpack.c.l.b16 %v480
    %v951 = vunpack.c.h.b16 %v480
    %v952 = vunpack.c.l.b16 %v481
    %v953 = vunpack.c.l.b16 %v482
    %v954 = vunpack.c.h.b16 %v482
    %v955 = vunpack.c.l.b16 %v483
    %v956 = vunpack.c.l.b16 %v484
    %v957 = vunpack.c.h.b16 %v484
    %v958 = vunpack.c.l.b16 %v485
    %v959 = vunpack.c.l.b16 %v486
    %v960 = vunpack.c.h.b16 %v486
    %v961 = vunpack.c.l.b16 %v487
    %v962 = vpack.c.b16 %v935, %v932
    %v963 = vpack.c.b16 %v936, %v933
    %v964 = vpack.c.b16 %v937, %v934
    %v965 = vpack.c.b16 %v941, %v938
    %v966 = vpack.c.b16 %v942, %v939
    %v967 = vpack.c.b16 %v943, %v940
    %v968 = vpack.c.b16 %v947, %v944
    %v969 = vpack.c.b16 %v948, %v945
    %v970 = vpack.c.b16 %v949, %v946
    %v971 = vpack.c.b16 %v953, %v950
    %v972 = vpack.c.b16 %v954, %v951
    %v973 = vpack.c.b16 %v955, %v952
    %v974 = vpack.c.b16 %v959, %v956
    %v975 = vpack.c.b16 %v960, %v957
    %v976 = vpack.c.b16 %v961, %v958
    %v993 = vsel %vm797, %v463, 0
    %v996 = vsel %vm797, %v464, 0
    %v999 = vsel %vm797, %v465, 0
    %v1002 = vsel %vm797, %v466, 0
    %v1005 = vsel %vm797, %v467, 0
    %1007 = vmatpush.bf16.msra.mxu0 0
    %1008 = vmatpush.bf16.msra.mxu0 0
    %1009 = vmatpush.bf16.msra.mxu0 0
    %1010 = vmatpush.bf16.msra.mxu0 %v974
    %1011 = vmatpush.bf16.msra.mxu0 %v971
    %1012 = vmatpush.bf16.msra.mxu0 %v968
    %1013 = vmatpush.bf16.msra.mxu0 %v965
    %1014 = vmatpush.bf16.msra.mxu0 %v962
    %1015 = vmatmul.bf16.gmra.mxu0 %v993
    %v1016 = vpop.f32.mrf.mxu0
    %v1017 = vadd.f32 %v823, %v1016
    %v1018 = vpop.f32.mrf.mxu0
    %v1019 = vadd.f32 %v825, %v1018
    %1020 = vmatmul.bf16.gmra.mxu0 %v996
    %v1021 = vpop.f32.mrf.mxu0
    %v1022 = vadd.f32 %v828, %v1021
    %v1023 = vpop.f32.mrf.mxu0
    %v1024 = vadd.f32 %v830, %v1023
    %1025 = vmatmul.bf16.gmra.mxu0 %v999
    %v1026 = vpop.f32.mrf.mxu0
    %v1027 = vadd.f32 %v833, %v1026
    %v1028 = vpop.f32.mrf.mxu0
    %v1029 = vadd.f32 %v835, %v1028
    %1030 = vmatmul.bf16.gmra.mxu0 %v1002
    %v1031 = vpop.f32.mrf.mxu0
    %v1032 = vadd.f32 %v838, %v1031
    %v1033 = vpop.f32.mrf.mxu0
    %v1034 = vadd.f32 %v840, %v1033
    %1035 = vmatmul.bf16.gmra.mxu0 %v1005
    %v1036 = vpop.f32.mrf.mxu0
    %v1037 = vadd.f32 %v843, %v1036
    %v1038 = vpop.f32.mrf.mxu0
    %1039 = vdwg.mxu0
    %1040 = vmatpush.bf16.msra.mxu0 0
    %1041 = vmatpush.bf16.msra.mxu0 0
    %1042 = vmatpush.bf16.msra.mxu0 0
    %1043 = vmatpush.bf16.msra.mxu0 %v975
    %1044 = vmatpush.bf16.msra.mxu0 %v972
    %1045 = vmatpush.bf16.msra.mxu0 %v969
    %1046 = vmatpush.bf16.msra.mxu0 %v966
    %1047 = vmatpush.bf16.msra.mxu0 %v963
    %1048 = vmatmul.bf16.gmra.mxu0 %v993
    %v1049 = vpop.f32.mrf.mxu0
    %v1050 = vadd.f32 %v856, %v1049
    %v1051 = vpop.f32.mrf.mxu0
    %v1052 = vadd.f32 %v858, %v1051
    %1053 = vmatmul.bf16.gmra.mxu0 %v996
    %v1054 = vpop.f32.mrf.mxu0
    %v1055 = vadd.f32 %v861, %v1054
    %v1056 = vpop.f32.mrf.mxu0
    %v1057 = vadd.f32 %v863, %v1056
    %1058 = vmatmul.bf16.gmra.mxu0 %v999
    %v1059 = vpop.f32.mrf.mxu0
    %v1060 = vadd.f32 %v866, %v1059
    %v1061 = vpop.f32.mrf.mxu0
    %v1062 = vadd.f32 %v868, %v1061
    %1063 = vmatmul.bf16.gmra.mxu0 %v1002
    %v1064 = vpop.f32.mrf.mxu0
    %v1065 = vadd.f32 %v871, %v1064
    %v1066 = vpop.f32.mrf.mxu0
    %v1067 = vadd.f32 %v873, %v1066
    %1068 = vmatmul.bf16.gmra.mxu0 %v1005
    %v1069 = vpop.f32.mrf.mxu0
    %v1070 = vadd.f32 %v876, %v1069
    %v1071 = vpop.f32.mrf.mxu0
    %1072 = vdwg.mxu0
    %1073 = vmatpush.bf16.msra.mxu0 0
    %1074 = vmatpush.bf16.msra.mxu0 0
    %1075 = vmatpush.bf16.msra.mxu0 0
    %1076 = vmatpush.bf16.msra.mxu0 %v976
    %1077 = vmatpush.bf16.msra.mxu0 %v973
    %1078 = vmatpush.bf16.msra.mxu0 %v970
    %1079 = vmatpush.bf16.msra.mxu0 %v967
    %1080 = vmatpush.bf16.msra.mxu0 %v964
    %1081 = vmatmul.bf16.gmra.mxu0 %v993
    %v1082 = vpop.f32.mrf.mxu0
    %v1083 = vadd.f32 %v889, %v1082
    %v1084 = vpop.f32.mrf.mxu0
    %v1085 = vadd.f32 %v891, %v1084
    %1086 = vmatmul.bf16.gmra.mxu0 %v996
    %v1087 = vpop.f32.mrf.mxu0
    %v1088 = vadd.f32 %v894, %v1087
    %v1089 = vpop.f32.mrf.mxu0
    %v1090 = vadd.f32 %v896, %v1089
    %1091 = vmatmul.bf16.gmra.mxu0 %v999
    %v1092 = vpop.f32.mrf.mxu0
    %v1093 = vadd.f32 %v899, %v1092
    %v1094 = vpop.f32.mrf.mxu0
    %v1095 = vadd.f32 %v901, %v1094
    %1096 = vmatmul.bf16.gmra.mxu0 %v1002
    %v1097 = vpop.f32.mrf.mxu0
    %v1098 = vadd.f32 %v904, %v1097
    %v1099 = vpop.f32.mrf.mxu0
    %v1100 = vadd.f32 %v906, %v1099
    %1101 = vmatmul.bf16.gmra.mxu0 %v1005
    %v1102 = vpop.f32.mrf.mxu0
    %v1103 = vadd.f32 %v909, %v1102
    %v1104 = vpop.f32.mrf.mxu0
    %1105 = vdwg.mxu0
    %s1106 = scalar_lea.vmem [#allocation3], 216
    %v1107 = vld [vmem:[%s1106] sm:$0xff]
    %v1108 = vld [vmem:[%s1106 + $0x8] sm:$0xf]
    %v1109 = vld [vmem:[%s1106 + $0xc] sm:$0xff]
    %v1110 = vld [vmem:[%s1106 + $0x14] sm:$0xf]
    %v1111 = vld [vmem:[%s1106 + $0x18] sm:$0xff]
    %v1112 = vld [vmem:[%s1106 + $0x20] sm:$0xf]
    %v1113 = vld [vmem:[%s1106 + $0x24] sm:$0xff]
    %v1114 = vld [vmem:[%s1106 + $0x2c] sm:$0xf]
    %v1115 = vld [vmem:[%s1106 + $0x30] sm:$0xff]
    %v1116 = vld [vmem:[%s1106 + $0x38] sm:$0xf]
    %v1117 = vld [vmem:[%s1106 + $0x3c] sm:$0xff]
    %v1118 = vld [vmem:[%s1106 + $0x44] sm:$0xf]
    %v1119 = vld [vmem:[%s1106 + $0x48] sm:$0xff]
    %v1120 = vld [vmem:[%s1106 + $0x50] sm:$0xf]
    %v1121 = vld [vmem:[%s1106 + $0x54] sm:$0xff]
    %v1122 = vld [vmem:[%s1106 + $0x5c] sm:$0xf]
    %v1123 = vld [vmem:[%s1106 + $0x60] sm:$0xff]
    %v1124 = vld [vmem:[%s1106 + $0x68] sm:$0xf]
    %v1143 = vunpack.c.l.b16 %v1107
    %v1144 = vunpack.c.h.b16 %v1107
    %v1145 = vunpack.c.l.b16 %v1108
    %v1146 = vunpack.c.l.b16 %v1109
    %v1147 = vunpack.c.h.b16 %v1109
    %v1148 = vunpack.c.l.b16 %v1110
    %v1149 = vunpack.c.l.b16 %v1111
    %v1150 = vunpack.c.h.b16 %v1111
    %v1151 = vunpack.c.l.b16 %v1112
    %v1152 = vunpack.c.l.b16 %v1113
    %v1153 = vunpack.c.h.b16 %v1113
    %v1154 = vunpack.c.l.b16 %v1114
    %v1155 = vunpack.c.l.b16 %v1115
    %v1156 = vunpack.c.h.b16 %v1115
    %v1157 = vunpack.c.l.b16 %v1116
    %v1158 = vunpack.c.l.b16 %v1117
    %v1159 = vunpack.c.h.b16 %v1117
    %v1160 = vunpack.c.l.b16 %v1118
    %v1161 = vunpack.c.l.b16 %v1119
    %v1162 = vunpack.c.h.b16 %v1119
    %v1163 = vunpack.c.l.b16 %v1120
    %v1164 = vunpack.c.l.b16 %v1121
    %v1165 = vunpack.c.h.b16 %v1121
    %v1166 = vunpack.c.l.b16 %v1122
    %v1167 = vunpack.c.l.b16 %v1123
    %v1168 = vunpack.c.h.b16 %v1123
    %v1169 = vunpack.c.l.b16 %v1124
    %v1170 = vpack.c.b16 %v1146, %v1143
    %v1171 = vpack.c.b16 %v1147, %v1144
    %v1172 = vpack.c.b16 %v1148, %v1145
    %v1173 = vpack.c.b16 %v1152, %v1149
    %v1174 = vpack.c.b16 %v1153, %v1150
    %v1175 = vpack.c.b16 %v1154, %v1151
    %v1176 = vpack.c.b16 %v1158, %v1155
    %v1177 = vpack.c.b16 %v1159, %v1156
    %v1178 = vpack.c.b16 %v1160, %v1157
    %v1179 = vpack.c.b16 %v1164, %v1161
    %v1180 = vpack.c.b16 %v1165, %v1162
    %v1181 = vpack.c.b16 %v1166, %v1163
    %v1182 = vpack.c.b16 %v1167, %v1167
    %v1183 = vpack.c.b16 %v1168, %v1168
    %v1184 = vpack.c.b16 %v1169, %v1169
    %v1196 = vsel %vm348, %v1172, 0
    %v1199 = vsel %vm348, %v1175, 0
    %v1202 = vsel %vm348, %v1178, 0
    %v1205 = vsel %vm348, %v1181, 0
    %v1208 = vsel %vm348, %v1184, 0
    %1210 = vmatpush.bf16.msra.mxu0 %v315
    %1211 = vmatpush.bf16.msra.mxu0 %v314
    %1212 = vmatpush.bf16.msra.mxu0 %v313
    %1213 = vmatpush.bf16.msra.mxu0 %v312
    %1214 = vmatpush.bf16.msra.mxu0 %v311
    %1215 = vmatpush.bf16.msra.mxu0 %v310
    %1216 = vmatpush.bf16.msra.mxu0 %v309
    %1217 = vmatpush.bf16.msra.mxu0 %v308
    %1218 = vmatmul.bf16.gmra.mxu0 %v1170
    %v1219 = vpop.f32.mrf.mxu0
    %v1220 = vadd.f32 0.0, %v1219
    %v1221 = vpop.f32.mrf.mxu0
    %v1222 = vadd.f32 0.0, %v1221
    %1223 = vmatmul.bf16.gmra.mxu0 %v1173
    %v1224 = vpop.f32.mrf.mxu0
    %v1225 = vadd.f32 0.0, %v1224
    %v1226 = vpop.f32.mrf.mxu0
    %v1227 = vadd.f32 0.0, %v1226
    %1228 = vmatmul.bf16.gmra.mxu0 %v1176
    %v1229 = vpop.f32.mrf.mxu0
    %v1230 = vadd.f32 0.0, %v1229
    %v1231 = vpop.f32.mrf.mxu0
    %v1232 = vadd.f32 0.0, %v1231
    %1233 = vmatmul.bf16.gmra.mxu0 %v1179
    %v1234 = vpop.f32.mrf.mxu0
    %v1235 = vadd.f32 0.0, %v1234
    %v1236 = vpop.f32.mrf.mxu0
    %v1237 = vadd.f32 0.0, %v1236
    %1238 = vmatmul.bf16.gmra.mxu0 %v1182
    %v1239 = vpop.f32.mrf.mxu0
    %v1240 = vadd.f32 0.0, %v1239
    %v1241 = vpop.f32.mrf.mxu0
    %1242 = vdwg.mxu0
    %1243 = vmatpush.bf16.msra.mxu0 %v323
    %1244 = vmatpush.bf16.msra.mxu0 %v322
    %1245 = vmatpush.bf16.msra.mxu0 %v321
    %1246 = vmatpush.bf16.msra.mxu0 %v320
    %1247 = vmatpush.bf16.msra.mxu0 %v319
    %1248 = vmatpush.bf16.msra.mxu0 %v318
    %1249 = vmatpush.bf16.msra.mxu0 %v317
    %1250 = vmatpush.bf16.msra.mxu0 %v316
    %1251 = vmatmul.bf16.gmra.mxu0 %v1171
    %v1252 = vpop.f32.mrf.mxu0
    %v1253 = vadd.f32 %v1220, %v1252
    %v1254 = vpop.f32.mrf.mxu0
    %v1255 = vadd.f32 %v1222, %v1254
    %1256 = vmatmul.bf16.gmra.mxu0 %v1174
    %v1257 = vpop.f32.mrf.mxu0
    %v1258 = vadd.f32 %v1225, %v1257
    %v1259 = vpop.f32.mrf.mxu0
    %v1260 = vadd.f32 %v1227, %v1259
    %1261 = vmatmul.bf16.gmra.mxu0 %v1177
    %v1262 = vpop.f32.mrf.mxu0
    %v1263 = vadd.f32 %v1230, %v1262
    %v1264 = vpop.f32.mrf.mxu0
    %v1265 = vadd.f32 %v1232, %v1264
    %1266 = vmatmul.bf16.gmra.mxu0 %v1180
    %v1267 = vpop.f32.mrf.mxu0
    %v1268 = vadd.f32 %v1235, %v1267
    %v1269 = vpop.f32.mrf.mxu0
    %v1270 = vadd.f32 %v1237, %v1269
    %1271 = vmatmul.bf16.gmra.mxu0 %v1183
    %v1272 = vpop.f32.mrf.mxu0
    %v1273 = vadd.f32 %v1240, %v1272
    %v1274 = vpop.f32.mrf.mxu0
    %1275 = vdwg.mxu0
    %1276 = vmatpush.bf16.msra.mxu0 0
    %1277 = vmatpush.bf16.msra.mxu0 0
    %1278 = vmatpush.bf16.msra.mxu0 0
    %1279 = vmatpush.bf16.msra.mxu0 0
    %1280 = vmatpush.bf16.msra.mxu0 %v327
    %1281 = vmatpush.bf16.msra.mxu0 %v326
    %1282 = vmatpush.bf16.msra.mxu0 %v325
    %1283 = vmatpush.bf16.msra.mxu0 %v324
    %1284 = vmatmul.bf16.gmra.mxu0 %v1196
    %v1285 = vpop.f32.mrf.mxu0
    %v1286 = vadd.f32 %v1253, %v1285
    %v1287 = vpop.f32.mrf.mxu0
    %v1288 = vadd.f32 %v1255, %v1287
    %1289 = vmatmul.bf16.gmra.mxu0 %v1199
    %v1290 = vpop.f32.mrf.mxu0
    %v1291 = vadd.f32 %v1258, %v1290
    %v1292 = vpop.f32.mrf.mxu0
    %v1293 = vadd.f32 %v1260, %v1292
    %1294 = vmatmul.bf16.gmra.mxu0 %v1202
    %v1295 = vpop.f32.mrf.mxu0
    %v1296 = vadd.f32 %v1263, %v1295
    %v1297 = vpop.f32.mrf.mxu0
    %v1298 = vadd.f32 %v1265, %v1297
    %1299 = vmatmul.bf16.gmra.mxu0 %v1205
    %v1300 = vpop.f32.mrf.mxu0
    %v1301 = vadd.f32 %v1268, %v1300
    %v1302 = vpop.f32.mrf.mxu0
    %v1303 = vadd.f32 %v1270, %v1302
    %1304 = vmatmul.bf16.gmra.mxu0 %v1208
    %v1305 = vpop.f32.mrf.mxu0
    %v1306 = vadd.f32 %v1273, %v1305
    %v1307 = vpop.f32.mrf.mxu0
    %1308 = vdwg.mxu0
    %v1309 = vpack.c.bf16 %v1288, %v1286
    %v1310 = vpack.c.bf16 %v1293, %v1291
    %v1311 = vpack.c.bf16 %v1298, %v1296
    %v1312 = vpack.c.bf16 %v1303, %v1301
    %v1313 = vpack.c.bf16 %v1306, %v1306
    %s1314 = scalar_lea.vmem [#allocation5], 240
    %v1315 = vld [vmem:[%s1314] sm:$0xff]
    %v1316 = vld [vmem:[%s1314 + $0x8] sm:$0xf]
    %v1317 = vld [vmem:[%s1314 + $0xc] sm:$0xff]
    %v1318 = vld [vmem:[%s1314 + $0x14] sm:$0xf]
    %v1319 = vld [vmem:[%s1314 + $0x18] sm:$0xff]
    %v1320 = vld [vmem:[%s1314 + $0x20] sm:$0xf]
    %v1321 = vld [vmem:[%s1314 + $0x24] sm:$0xff]
    %v1322 = vld [vmem:[%s1314 + $0x2c] sm:$0xf]
    %v1323 = vld [vmem:[%s1314 + $0x30] sm:$0xff]
    %v1324 = vld [vmem:[%s1314 + $0x38] sm:$0xf]
    %v1325 = vld [vmem:[%s1314 + $0x3c] sm:$0xff]
    %v1326 = vld [vmem:[%s1314 + $0x44] sm:$0xf]
    %v1327 = vld [vmem:[%s1314 + $0x48] sm:$0xff]
    %v1328 = vld [vmem:[%s1314 + $0x50] sm:$0xf]
    %v1329 = vld [vmem:[%s1314 + $0x54] sm:$0xff]
    %v1330 = vld [vmem:[%s1314 + $0x5c] sm:$0xf]
    %v1331 = vld [vmem:[%s1314 + $0x60] sm:$0xff]
    %v1332 = vld [vmem:[%s1314 + $0x68] sm:$0xf]
    %v1333 = vld [vmem:[%s1314 + $0x6c] sm:$0xff]
    %v1334 = vld [vmem:[%s1314 + $0x74] sm:$0xf]
    %v1355 = vunpack.c.l.b16 %v1315
    %v1356 = vunpack.c.h.b16 %v1315
    %v1357 = vunpack.c.l.b16 %v1316
    %v1358 = vunpack.c.l.b16 %v1317
    %v1359 = vunpack.c.h.b16 %v1317
    %v1360 = vunpack.c.l.b16 %v1318
    %v1361 = vunpack.c.l.b16 %v1319
    %v1362 = vunpack.c.h.b16 %v1319
    %v1363 = vunpack.c.l.b16 %v1320
    %v1364 = vunpack.c.l.b16 %v1321
    %v1365 = vunpack.c.h.b16 %v1321
    %v1366 = vunpack.c.l.b16 %v1322
    %v1367 = vunpack.c.l.b16 %v1323
    %v1368 = vunpack.c.h.b16 %v1323
    %v1369 = vunpack.c.l.b16 %v1324
    %v1370 = vunpack.c.l.b16 %v1325
    %v1371 = vunpack.c.h.b16 %v1325
    %v1372 = vunpack.c.l.b16 %v1326
    %v1373 = vunpack.c.l.b16 %v1327
    %v1374 = vunpack.c.h.b16 %v1327
    %v1375 = vunpack.c.l.b16 %v1328
    %v1376 = vunpack.c.l.b16 %v1329
    %v1377 = vunpack.c.h.b16 %v1329
    %v1378 = vunpack.c.l.b16 %v1330
    %v1379 = vunpack.c.l.b16 %v1331
    %v1380 = vunpack.c.h.b16 %v1331
    %v1381 = vunpack.c.l.b16 %v1332
    %v1382 = vunpack.c.l.b16 %v1333
    %v1383 = vunpack.c.h.b16 %v1333
    %v1384 = vunpack.c.l.b16 %v1334
    %v1385 = vpack.c.b16 %v1358, %v1355
    %v1386 = vpack.c.b16 %v1359, %v1356
    %v1387 = vpack.c.b16 %v1360, %v1357
    %v1388 = vpack.c.b16 %v1364, %v1361
    %v1389 = vpack.c.b16 %v1365, %v1362
    %v1390 = vpack.c.b16 %v1366, %v1363
    %v1391 = vpack.c.b16 %v1370, %v1367
    %v1392 = vpack.c.b16 %v1371, %v1368
    %v1393 = vpack.c.b16 %v1372, %v1369
    %v1394 = vpack.c.b16 %v1376, %v1373
    %v1395 = vpack.c.b16 %v1377, %v1374
    %v1396 = vpack.c.b16 %v1378, %v1375
    %v1397 = vpack.c.b16 %v1382, %v1379
    %v1398 = vpack.c.b16 %v1383, %v1380
    %v1399 = vpack.c.b16 %v1384, %v1381
    %v1416 = vsel %vm797, %v1309, 0
    %v1419 = vsel %vm797, %v1310, 0
    %v1422 = vsel %vm797, %v1311, 0
    %v1425 = vsel %vm797, %v1312, 0
    %v1428 = vsel %vm797, %v1313, 0
    %1430 = vmatpush.bf16.msra.mxu0 0
    %1431 = vmatpush.bf16.msra.mxu0 0
    %1432 = vmatpush.bf16.msra.mxu0 0
    %1433 = vmatpush.bf16.msra.mxu0 %v1397
    %1434 = vmatpush.bf16.msra.mxu0 %v1394
    %1435 = vmatpush.bf16.msra.mxu0 %v1391
    %1436 = vmatpush.bf16.msra.mxu0 %v1388
    %1437 = vmatpush.bf16.msra.mxu0 %v1385
    %1438 = vmatmul.bf16.gmra.mxu0 %v1416
    %v1439 = vpop.f32.mrf.mxu0
    %v1440 = vadd.f32 0.0, %v1439
    %v1441 = vpop.f32.mrf.mxu0
    %v1442 = vadd.f32 0.0, %v1441
    %1443 = vmatmul.bf16.gmra.mxu0 %v1419
    %v1444 = vpop.f32.mrf.mxu0
    %v1445 = vadd.f32 0.0, %v1444
    %v1446 = vpop.f32.mrf.mxu0
    %v1447 = vadd.f32 0.0, %v1446
    %1448 = vmatmul.bf16.gmra.mxu0 %v1422
    %v1449 = vpop.f32.mrf.mxu0
    %v1450 = vadd.f32 0.0, %v1449
    %v1451 = vpop.f32.mrf.mxu0
    %v1452 = vadd.f32 0.0, %v1451
    %1453 = vmatmul.bf16.gmra.mxu0 %v1425
    %v1454 = vpop.f32.mrf.mxu0
    %v1455 = vadd.f32 0.0, %v1454
    %v1456 = vpop.f32.mrf.mxu0
    %v1457 = vadd.f32 0.0, %v1456
    %1458 = vmatmul.bf16.gmra.mxu0 %v1428
    %v1459 = vpop.f32.mrf.mxu0
    %v1460 = vadd.f32 0.0, %v1459
    %v1461 = vpop.f32.mrf.mxu0
    %1462 = vdwg.mxu0
    %1463 = vmatpush.bf16.msra.mxu0 0
    %1464 = vmatpush.bf16.msra.mxu0 0
    %1465 = vmatpush.bf16.msra.mxu0 0
    %1466 = vmatpush.bf16.msra.mxu0 %v1398
    %1467 = vmatpush.bf16.msra.mxu0 %v1395
    %1468 = vmatpush.bf16.msra.mxu0 %v1392
    %1469 = vmatpush.bf16.msra.mxu0 %v1389
    %1470 = vmatpush.bf16.msra.mxu0 %v1386
    %1471 = vmatmul.bf16.gmra.mxu0 %v1416
    %v1472 = vpop.f32.mrf.mxu0
    %v1473 = vadd.f32 0.0, %v1472
    %v1474 = vpop.f32.mrf.mxu0
    %v1475 = vadd.f32 0.0, %v1474
    %1476 = vmatmul.bf16.gmra.mxu0 %v1419
    %v1477 = vpop.f32.mrf.mxu0
    %v1478 = vadd.f32 0.0, %v1477
    %v1479 = vpop.f32.mrf.mxu0
    %v1480 = vadd.f32 0.0, %v1479
    %1481 = vmatmul.bf16.gmra.mxu0 %v1422
    %v1482 = vpop.f32.mrf.mxu0
    %v1483 = vadd.f32 0.0, %v1482
    %v1484 = vpop.f32.mrf.mxu0
    %v1485 = vadd.f32 0.0, %v1484
    %1486 = vmatmul.bf16.gmra.mxu0 %v1425
    %v1487 = vpop.f32.mrf.mxu0
    %v1488 = vadd.f32 0.0, %v1487
    %v1489 = vpop.f32.mrf.mxu0
    %v1490 = vadd.f32 0.0, %v1489
    %1491 = vmatmul.bf16.gmra.mxu0 %v1428
    %v1492 = vpop.f32.mrf.mxu0
    %v1493 = vadd.f32 0.0, %v1492
    %v1494 = vpop.f32.mrf.mxu0
    %1495 = vdwg.mxu0
    %1496 = vmatpush.bf16.msra.mxu0 0
    %1497 = vmatpush.bf16.msra.mxu0 0
    %1498 = vmatpush.bf16.msra.mxu0 0
    %1499 = vmatpush.bf16.msra.mxu0 %v1399
    %1500 = vmatpush.bf16.msra.mxu0 %v1396
    %1501 = vmatpush.bf16.msra.mxu0 %v1393
    %1502 = vmatpush.bf16.msra.mxu0 %v1390
    %1503 = vmatpush.bf16.msra.mxu0 %v1387
    %1504 = vmatmul.bf16.gmra.mxu0 %v1416
    %v1505 = vpop.f32.mrf.mxu0
    %v1506 = vadd.f32 0.0, %v1505
    %v1507 = vpop.f32.mrf.mxu0
    %v1508 = vadd.f32 0.0, %v1507
    %1509 = vmatmul.bf16.gmra.mxu0 %v1419
    %v1510 = vpop.f32.mrf.mxu0
    %v1511 = vadd.f32 0.0, %v1510
    %v1512 = vpop.f32.mrf.mxu0
    %v1513 = vadd.f32 0.0, %v1512
    %1514 = vmatmul.bf16.gmra.mxu0 %v1422
    %v1515 = vpop.f32.mrf.mxu0
    %v1516 = vadd.f32 0.0, %v1515
    %v1517 = vpop.f32.mrf.mxu0
    %v1518 = vadd.f32 0.0, %v1517
    %1519 = vmatmul.bf16.gmra.mxu0 %v1425
    %v1520 = vpop.f32.mrf.mxu0
    %v1521 = vadd.f32 0.0, %v1520
    %v1522 = vpop.f32.mrf.mxu0
    %v1523 = vadd.f32 0.0, %v1522
    %1524 = vmatmul.bf16.gmra.mxu0 %v1428
    %v1525 = vpop.f32.mrf.mxu0
    %v1526 = vadd.f32 0.0, %v1525
    %v1527 = vpop.f32.mrf.mxu0
    %1528 = vdwg.mxu0
    %v1529 = vadd.f32 %v1017, %v1440
    %v1530 = vadd.f32 %v1050, %v1473
    %v1531 = vadd.f32 %v1083, %v1506
    %v1532 = vadd.f32 %v1019, %v1442
    %v1533 = vadd.f32 %v1052, %v1475
    %v1534 = vadd.f32 %v1085, %v1508
    %v1535 = vadd.f32 %v1022, %v1445
    %v1536 = vadd.f32 %v1055, %v1478
    %v1537 = vadd.f32 %v1088, %v1511
    %v1538 = vadd.f32 %v1024, %v1447
    %v1539 = vadd.f32 %v1057, %v1480
    %v1540 = vadd.f32 %v1090, %v1513
    %v1541 = vadd.f32 %v1027, %v1450
    %v1542 = vadd.f32 %v1060, %v1483
    %v1543 = vadd.f32 %v1093, %v1516
    %v1544 = vadd.f32 %v1029, %v1452
    %v1545 = vadd.f32 %v1062, %v1485
    %v1546 = vadd.f32 %v1095, %v1518
    %v1547 = vadd.f32 %v1032, %v1455
    %v1548 = vadd.f32 %v1065, %v1488
    %v1549 = vadd.f32 %v1098, %v1521
    %v1550 = vadd.f32 %v1034, %v1457
    %v1551 = vadd.f32 %v1067, %v1490
    %v1552 = vadd.f32 %v1100, %v1523
    %v1553 = vadd.f32 %v1037, %v1460
    %v1554 = vadd.f32 %v1070, %v1493
    %v1555 = vadd.f32 %v1103, %v1526
    %s1556 = scalar_lea.vmem [#allocation3], 324
    %v1557 = vld [vmem:[%s1556] sm:$0xff]
    %v1558 = vld [vmem:[%s1556 + $0x8] sm:$0xf]
    %v1559 = vld [vmem:[%s1556 + $0xc] sm:$0xff]
    %v1560 = vld [vmem:[%s1556 + $0x14] sm:$0xf]
    %v1561 = vld [vmem:[%s1556 + $0x18] sm:$0xff]
    %v1562 = vld [vmem:[%s1556 + $0x20] sm:$0xf]
    %v1563 = vld [vmem:[%s1556 + $0x24] sm:$0xff]
    %v1564 = vld [vmem:[%s1556 + $0x2c] sm:$0xf]
    %v1565 = vld [vmem:[%s1556 + $0x30] sm:$0xff]
    %v1566 = vld [vmem:[%s1556 + $0x38] sm:$0xf]
    %v1567 = vld [vmem:[%s1556 + $0x3c] sm:$0xff]
    %v1568 = vld [vmem:[%s1556 + $0x44] sm:$0xf]
    %v1569 = vld [vmem:[%s1556 + $0x48] sm:$0xff]
    %v1570 = vld [vmem:[%s1556 + $0x50] sm:$0xf]
    %v1571 = vld [vmem:[%s1556 + $0x54] sm:$0xff]
    %v1572 = vld [vmem:[%s1556 + $0x5c] sm:$0xf]
    %v1573 = vld [vmem:[%s1556 + $0x60] sm:$0xff]
    %v1574 = vld [vmem:[%s1556 + $0x68] sm:$0xf]
    %v1593 = vunpack.c.l.b16 %v1557
    %v1594 = vunpack.c.h.b16 %v1557
    %v1595 = vunpack.c.l.b16 %v1558
    %v1596 = vunpack.c.l.b16 %v1559
    %v1597 = vunpack.c.h.b16 %v1559
    %v1598 = vunpack.c.l.b16 %v1560
    %v1599 = vunpack.c.l.b16 %v1561
    %v1600 = vunpack.c.h.b16 %v1561
    %v1601 = vunpack.c.l.b16 %v1562
    %v1602 = vunpack.c.l.b16 %v1563
    %v1603 = vunpack.c.h.b16 %v1563
    %v1604 = vunpack.c.l.b16 %v1564
    %v1605 = vunpack.c.l.b16 %v1565
    %v1606 = vunpack.c.h.b16 %v1565
    %v1607 = vunpack.c.l.b16 %v1566
    %v1608 = vunpack.c.l.b16 %v1567
    %v1609 = vunpack.c.h.b16 %v1567
    %v1610 = vunpack.c.l.b16 %v1568
    %v1611 = vunpack.c.l.b16 %v1569
    %v1612 = vunpack.c.h.b16 %v1569
    %v1613 = vunpack.c.l.b16 %v1570
    %v1614 = vunpack.c.l.b16 %v1571
    %v1615 = vunpack.c.h.b16 %v1571
    %v1616 = vunpack.c.l.b16 %v1572
    %v1617 = vunpack.c.l.b16 %v1573
    %v1618 = vunpack.c.h.b16 %v1573
    %v1619 = vunpack.c.l.b16 %v1574
    %v1620 = vpack.c.b16 %v1596, %v1593
    %v1621 = vpack.c.b16 %v1597, %v1594
    %v1622 = vpack.c.b16 %v1598, %v1595
    %v1623 = vpack.c.b16 %v1602, %v1599
    %v1624 = vpack.c.b16 %v1603, %v1600
    %v1625 = vpack.c.b16 %v1604, %v1601
    %v1626 = vpack.c.b16 %v1608, %v1605
    %v1627 = vpack.c.b16 %v1609, %v1606
    %v1628 = vpack.c.b16 %v1610, %v1607
    %v1629 = vpack.c.b16 %v1614, %v1611
    %v1630 = vpack.c.b16 %v1615, %v1612
    %v1631 = vpack.c.b16 %v1616, %v1613
    %v1632 = vpack.c.b16 %v1617, %v1617
    %v1633 = vpack.c.b16 %v1618, %v1618
    %v1634 = vpack.c.b16 %v1619, %v1619
    %v1646 = vsel %vm348, %v1622, 0
    %v1649 = vsel %vm348, %v1625, 0
    %v1652 = vsel %vm348, %v1628, 0
    %v1655 = vsel %vm348, %v1631, 0
    %v1658 = vsel %vm348, %v1634, 0
    %1660 = vmatpush.bf16.msra.mxu0 %v315
    %1661 = vmatpush.bf16.msra.mxu0 %v314
    %1662 = vmatpush.bf16.msra.mxu0 %v313
    %1663 = vmatpush.bf16.msra.mxu0 %v312
    %1664 = vmatpush.bf16.msra.mxu0 %v311
    %1665 = vmatpush.bf16.msra.mxu0 %v310
    %1666 = vmatpush.bf16.msra.mxu0 %v309
    %1667 = vmatpush.bf16.msra.mxu0 %v308
    %1668 = vmatmul.bf16.gmra.mxu0 %v1620
    %v1669 = vpop.f32.mrf.mxu0
    %v1670 = vadd.f32 0.0, %v1669
    %v1671 = vpop.f32.mrf.mxu0
    %v1672 = vadd.f32 0.0, %v1671
    %1673 = vmatmul.bf16.gmra.mxu0 %v1623
    %v1674 = vpop.f32.mrf.mxu0
    %v1675 = vadd.f32 0.0, %v1674
    %v1676 = vpop.f32.mrf.mxu0
    %v1677 = vadd.f32 0.0, %v1676
    %1678 = vmatmul.bf16.gmra.mxu0 %v1626
    %v1679 = vpop.f32.mrf.mxu0
    %v1680 = vadd.f32 0.0, %v1679
    %v1681 = vpop.f32.mrf.mxu0
    %v1682 = vadd.f32 0.0, %v1681
    %1683 = vmatmul.bf16.gmra.mxu0 %v1629
    %v1684 = vpop.f32.mrf.mxu0
    %v1685 = vadd.f32 0.0, %v1684
    %v1686 = vpop.f32.mrf.mxu0
    %v1687 = vadd.f32 0.0, %v1686
    %1688 = vmatmul.bf16.gmra.mxu0 %v1632
    %v1689 = vpop.f32.mrf.mxu0
    %v1690 = vadd.f32 0.0, %v1689
    %v1691 = vpop.f32.mrf.mxu0
    %1692 = vdwg.mxu0
    %1693 = vmatpush.bf16.msra.mxu0 %v323
    %1694 = vmatpush.bf16.msra.mxu0 %v322
    %1695 = vmatpush.bf16.msra.mxu0 %v321
    %1696 = vmatpush.bf16.msra.mxu0 %v320
    %1697 = vmatpush.bf16.msra.mxu0 %v319
    %1698 = vmatpush.bf16.msra.mxu0 %v318
    %1699 = vmatpush.bf16.msra.mxu0 %v317
    %1700 = vmatpush.bf16.msra.mxu0 %v316
    %1701 = vmatmul.bf16.gmra.mxu0 %v1621
    %v1702 = vpop.f32.mrf.mxu0
    %v1703 = vadd.f32 %v1670, %v1702
    %v1704 = vpop.f32.mrf.mxu0
    %v1705 = vadd.f32 %v1672, %v1704
    %1706 = vmatmul.bf16.gmra.mxu0 %v1624
    %v1707 = vpop.f32.mrf.mxu0
    %v1708 = vadd.f32 %v1675, %v1707
    %v1709 = vpop.f32.mrf.mxu0
    %v1710 = vadd.f32 %v1677, %v1709
    %1711 = vmatmul.bf16.gmra.mxu0 %v1627
    %v1712 = vpop.f32.mrf.mxu0
    %v1713 = vadd.f32 %v1680, %v1712
    %v1714 = vpop.f32.mrf.mxu0
    %v1715 = vadd.f32 %v1682, %v1714
    %1716 = vmatmul.bf16.gmra.mxu0 %v1630
    %v1717 = vpop.f32.mrf.mxu0
    %v1718 = vadd.f32 %v1685, %v1717
    %v1719 = vpop.f32.mrf.mxu0
    %v1720 = vadd.f32 %v1687, %v1719
    %1721 = vmatmul.bf16.gmra.mxu0 %v1633
    %v1722 = vpop.f32.mrf.mxu0
    %v1723 = vadd.f32 %v1690, %v1722
    %v1724 = vpop.f32.mrf.mxu0
    %1725 = vdwg.mxu0
    %1726 = vmatpush.bf16.msra.mxu0 0
    %1727 = vmatpush.bf16.msra.mxu0 0
    %1728 = vmatpush.bf16.msra.mxu0 0
    %1729 = vmatpush.bf16.msra.mxu0 0
    %1730 = vmatpush.bf16.msra.mxu0 %v327
    %1731 = vmatpush.bf16.msra.mxu0 %v326
    %1732 = vmatpush.bf16.msra.mxu0 %v325
    %1733 = vmatpush.bf16.msra.mxu0 %v324
    %1734 = vmatmul.bf16.gmra.mxu0 %v1646
    %v1735 = vpop.f32.mrf.mxu0
    %v1736 = vadd.f32 %v1703, %v1735
    %v1737 = vpop.f32.mrf.mxu0
    %v1738 = vadd.f32 %v1705, %v1737
    %1739 = vmatmul.bf16.gmra.mxu0 %v1649
    %v1740 = vpop.f32.mrf.mxu0
    %v1741 = vadd.f32 %v1708, %v1740
    %v1742 = vpop.f32.mrf.mxu0
    %v1743 = vadd.f32 %v1710, %v1742
    %1744 = vmatmul.bf16.gmra.mxu0 %v1652
    %v1745 = vpop.f32.mrf.mxu0
    %v1746 = vadd.f32 %v1713, %v1745
    %v1747 = vpop.f32.mrf.mxu0
    %v1748 = vadd.f32 %v1715, %v1747
    %1749 = vmatmul.bf16.gmra.mxu0 %v1655
    %v1750 = vpop.f32.mrf.mxu0
    %v1751 = vadd.f32 %v1718, %v1750
    %v1752 = vpop.f32.mrf.mxu0
    %v1753 = vadd.f32 %v1720, %v1752
    %1754 = vmatmul.bf16.gmra.mxu0 %v1658
    %v1755 = vpop.f32.mrf.mxu0
    %v1756 = vadd.f32 %v1723, %v1755
    %v1757 = vpop.f32.mrf.mxu0
    %1758 = vdwg.mxu0
    %v1759 = vpack.c.bf16 %v1738, %v1736
    %v1760 = vpack.c.bf16 %v1743, %v1741
    %v1761 = vpack.c.bf16 %v1748, %v1746
    %v1762 = vpack.c.bf16 %v1753, %v1751
    %v1763 = vpack.c.bf16 %v1756, %v1756
    %s1764 = scalar_lea.vmem [#allocation5], 360
    %v1765 = vld [vmem:[%s1764] sm:$0xff]
    %v1766 = vld [vmem:[%s1764 + $0x8] sm:$0xf]
    %v1767 = vld [vmem:[%s1764 + $0xc] sm:$0xff]
    %v1768 = vld [vmem:[%s1764 + $0x14] sm:$0xf]
    %v1769 = vld [vmem:[%s1764 + $0x18] sm:$0xff]
    %v1770 = vld [vmem:[%s1764 + $0x20] sm:$0xf]
    %v1771 = vld [vmem:[%s1764 + $0x24] sm:$0xff]
    %v1772 = vld [vmem:[%s1764 + $0x2c] sm:$0xf]
    %v1773 = vld [vmem:[%s1764 + $0x30] sm:$0xff]
    %v1774 = vld [vmem:[%s1764 + $0x38] sm:$0xf]
    %v1775 = vld [vmem:[%s1764 + $0x3c] sm:$0xff]
    %v1776 = vld [vmem:[%s1764 + $0x44] sm:$0xf]
    %v1777 = vld [vmem:[%s1764 + $0x48] sm:$0xff]
    %v1778 = vld [vmem:[%s1764 + $0x50] sm:$0xf]
    %v1779 = vld [vmem:[%s1764 + $0x54] sm:$0xff]
    %v1780 = vld [vmem:[%s1764 + $0x5c] sm:$0xf]
    %v1781 = vld [vmem:[%s1764 + $0x60] sm:$0xff]
    %v1782 = vld [vmem:[%s1764 + $0x68] sm:$0xf]
    %v1783 = vld [vmem:[%s1764 + $0x6c] sm:$0xff]
    %v1784 = vld [vmem:[%s1764 + $0x74] sm:$0xf]
    %v1805 = vunpack.c.l.b16 %v1765
    %v1806 = vunpack.c.h.b16 %v1765
    %v1807 = vunpack.c.l.b16 %v1766
    %v1808 = vunpack.c.l.b16 %v1767
    %v1809 = vunpack.c.h.b16 %v1767
    %v1810 = vunpack.c.l.b16 %v1768
    %v1811 = vunpack.c.l.b16 %v1769
    %v1812 = vunpack.c.h.b16 %v1769
    %v1813 = vunpack.c.l.b16 %v1770
    %v1814 = vunpack.c.l.b16 %v1771
    %v1815 = vunpack.c.h.b16 %v1771
    %v1816 = vunpack.c.l.b16 %v1772
    %v1817 = vunpack.c.l.b16 %v1773
    %v1818 = vunpack.c.h.b16 %v1773
    %v1819 = vunpack.c.l.b16 %v1774
    %v1820 = vunpack.c.l.b16 %v1775
    %v1821 = vunpack.c.h.b16 %v1775
    %v1822 = vunpack.c.l.b16 %v1776
    %v1823 = vunpack.c.l.b16 %v1777
    %v1824 = vunpack.c.h.b16 %v1777
    %v1825 = vunpack.c.l.b16 %v1778
    %v1826 = vunpack.c.l.b16 %v1779
    %v1827 = vunpack.c.h.b16 %v1779
    %v1828 = vunpack.c.l.b16 %v1780
    %v1829 = vunpack.c.l.b16 %v1781
    %v1830 = vunpack.c.h.b16 %v1781
    %v1831 = vunpack.c.l.b16 %v1782
    %v1832 = vunpack.c.l.b16 %v1783
    %v1833 = vunpack.c.h.b16 %v1783
    %v1834 = vunpack.c.l.b16 %v1784
    %v1835 = vpack.c.b16 %v1808, %v1805
    %v1836 = vpack.c.b16 %v1809, %v1806
    %v1837 = vpack.c.b16 %v1810, %v1807
    %v1838 = vpack.c.b16 %v1814, %v1811
    %v1839 = vpack.c.b16 %v1815, %v1812
    %v1840 = vpack.c.b16 %v1816, %v1813
    %v1841 = vpack.c.b16 %v1820, %v1817
    %v1842 = vpack.c.b16 %v1821, %v1818
    %v1843 = vpack.c.b16 %v1822, %v1819
    %v1844 = vpack.c.b16 %v1826, %v1823
    %v1845 = vpack.c.b16 %v1827, %v1824
    %v1846 = vpack.c.b16 %v1828, %v1825
    %v1847 = vpack.c.b16 %v1832, %v1829
    %v1848 = vpack.c.b16 %v1833, %v1830
    %v1849 = vpack.c.b16 %v1834, %v1831
    %v1866 = vsel %vm797, %v1759, 0
    %v1869 = vsel %vm797, %v1760, 0
    %v1872 = vsel %vm797, %v1761, 0
    %v1875 = vsel %vm797, %v1762, 0
    %v1878 = vsel %vm797, %v1763, 0
    %1880 = vmatpush.bf16.msra.mxu0 0
    %1881 = vmatpush.bf16.msra.mxu0 0
    %1882 = vmatpush.bf16.msra.mxu0 0
    %1883 = vmatpush.bf16.msra.mxu0 %v1847
    %1884 = vmatpush.bf16.msra.mxu0 %v1844
    %1885 = vmatpush.bf16.msra.mxu0 %v1841
    %1886 = vmatpush.bf16.msra.mxu0 %v1838
    %1887 = vmatpush.bf16.msra.mxu0 %v1835
    %1888 = vmatmul.bf16.gmra.mxu0 %v1866
    %v1889 = vpop.f32.mrf.mxu0
    %v1890 = vadd.f32 0.0, %v1889
    %v1891 = vpop.f32.mrf.mxu0
    %v1892 = vadd.f32 0.0, %v1891
    %1893 = vmatmul.bf16.gmra.mxu0 %v1869
    %v1894 = vpop.f32.mrf.mxu0
    %v1895 = vadd.f32 0.0, %v1894
    %v1896 = vpop.f32.mrf.mxu0
    %v1897 = vadd.f32 0.0, %v1896
    %1898 = vmatmul.bf16.gmra.mxu0 %v1872
    %v1899 = vpop.f32.mrf.mxu0
    %v1900 = vadd.f32 0.0, %v1899
    %v1901 = vpop.f32.mrf.mxu0
    %v1902 = vadd.f32 0.0, %v1901
    %1903 = vmatmul.bf16.gmra.mxu0 %v1875
    %v1904 = vpop.f32.mrf.mxu0
    %v1905 = vadd.f32 0.0, %v1904
    %v1906 = vpop.f32.mrf.mxu0
    %v1907 = vadd.f32 0.0, %v1906
    %1908 = vmatmul.bf16.gmra.mxu0 %v1878
    %v1909 = vpop.f32.mrf.mxu0
    %v1910 = vadd.f32 0.0, %v1909
    %v1911 = vpop.f32.mrf.mxu0
    %1912 = vdwg.mxu0
    %1913 = vmatpush.bf16.msra.mxu0 0
    %1914 = vmatpush.bf16.msra.mxu0 0
    %1915 = vmatpush.bf16.msra.mxu0 0
    %1916 = vmatpush.bf16.msra.mxu0 %v1848
    %1917 = vmatpush.bf16.msra.mxu0 %v1845
    %1918 = vmatpush.bf16.msra.mxu0 %v1842
    %1919 = vmatpush.bf16.msra.mxu0 %v1839
    %1920 = vmatpush.bf16.msra.mxu0 %v1836
    %1921 = vmatmul.bf16.gmra.mxu0 %v1866
    %v1922 = vpop.f32.mrf.mxu0
    %v1923 = vadd.f32 0.0, %v1922
    %v1924 = vpop.f32.mrf.mxu0
    %v1925 = vadd.f32 0.0, %v1924
    %1926 = vmatmul.bf16.gmra.mxu0 %v1869
    %v1927 = vpop.f32.mrf.mxu0
    %v1928 = vadd.f32 0.0, %v1927
    %v1929 = vpop.f32.mrf.mxu0
    %v1930 = vadd.f32 0.0, %v1929
    %1931 = vmatmul.bf16.gmra.mxu0 %v1872
    %v1932 = vpop.f32.mrf.mxu0
    %v1933 = vadd.f32 0.0, %v1932
    %v1934 = vpop.f32.mrf.mxu0
    %v1935 = vadd.f32 0.0, %v1934
    %1936 = vmatmul.bf16.gmra.mxu0 %v1875
    %v1937 = vpop.f32.mrf.mxu0
    %v1938 = vadd.f32 0.0, %v1937
    %v1939 = vpop.f32.mrf.mxu0
    %v1940 = vadd.f32 0.0, %v1939
    %1941 = vmatmul.bf16.gmra.mxu0 %v1878
    %v1942 = vpop.f32.mrf.mxu0
    %v1943 = vadd.f32 0.0, %v1942
    %v1944 = vpop.f32.mrf.mxu0
    %1945 = vdwg.mxu0
    %1946 = vmatpush.bf16.msra.mxu0 0
    %1947 = vmatpush.bf16.msra.mxu0 0
    %1948 = vmatpush.bf16.msra.mxu0 0
    %1949 = vmatpush.bf16.msra.mxu0 %v1849
    %1950 = vmatpush.bf16.msra.mxu0 %v1846
    %1951 = vmatpush.bf16.msra.mxu0 %v1843
    %1952 = vmatpush.bf16.msra.mxu0 %v1840
    %1953 = vmatpush.bf16.msra.mxu0 %v1837
    %1954 = vmatmul.bf16.gmra.mxu0 %v1866
    %v1955 = vpop.f32.mrf.mxu0
    %v1956 = vadd.f32 0.0, %v1955
    %v1957 = vpop.f32.mrf.mxu0
    %v1958 = vadd.f32 0.0, %v1957
    %1959 = vmatmul.bf16.gmra.mxu0 %v1869
    %v1960 = vpop.f32.mrf.mxu0
    %v1961 = vadd.f32 0.0, %v1960
    %v1962 = vpop.f32.mrf.mxu0
    %v1963 = vadd.f32 0.0, %v1962
    %1964 = vmatmul.bf16.gmra.mxu0 %v1872
    %v1965 = vpop.f32.mrf.mxu0
    %v1966 = vadd.f32 0.0, %v1965
    %v1967 = vpop.f32.mrf.mxu0
    %v1968 = vadd.f32 0.0, %v1967
    %1969 = vmatmul.bf16.gmra.mxu0 %v1875
    %v1970 = vpop.f32.mrf.mxu0
    %v1971 = vadd.f32 0.0, %v1970
    %v1972 = vpop.f32.mrf.mxu0
    %v1973 = vadd.f32 0.0, %v1972
    %1974 = vmatmul.bf16.gmra.mxu0 %v1878
    %v1975 = vpop.f32.mrf.mxu0
    %v1976 = vadd.f32 0.0, %v1975
    %v1977 = vpop.f32.mrf.mxu0
    %1978 = vdwg.mxu0
    %v1979 = vadd.f32 %v1529, %v1890
    %v1980 = vadd.f32 %v1530, %v1923
    %v1981 = vadd.f32 %v1531, %v1956
    %v1982 = vadd.f32 %v1532, %v1892
    %v1983 = vadd.f32 %v1533, %v1925
    %v1984 = vadd.f32 %v1534, %v1958
    %v1985 = vadd.f32 %v1535, %v1895
    %v1986 = vadd.f32 %v1536, %v1928
    %v1987 = vadd.f32 %v1537, %v1961
    %v1988 = vadd.f32 %v1538, %v1897
    %v1989 = vadd.f32 %v1539, %v1930
    %v1990 = vadd.f32 %v1540, %v1963
    %v1991 = vadd.f32 %v1541, %v1900
    %v1992 = vadd.f32 %v1542, %v1933
    %v1993 = vadd.f32 %v1543, %v1966
    %v1994 = vadd.f32 %v1544, %v1902
    %v1995 = vadd.f32 %v1545, %v1935
    %v1996 = vadd.f32 %v1546, %v1968
    %v1997 = vadd.f32 %v1547, %v1905
    %v1998 = vadd.f32 %v1548, %v1938
    %v1999 = vadd.f32 %v1549, %v1971
    %v2000 = vadd.f32 %v1550, %v1907
    %v2001 = vadd.f32 %v1551, %v1940
    %v2002 = vadd.f32 %v1552, %v1973
    %v2003 = vadd.f32 %v1553, %v1910
    %v2004 = vadd.f32 %v1554, %v1943
    %v2005 = vadd.f32 %v1555, %v1976
    %s2006 = scalar_lea.vmem [#allocation3], 432
    %v2007 = vld [vmem:[%s2006] sm:$0xff]
    %v2008 = vld [vmem:[%s2006 + $0x8] sm:$0xf]
    %v2009 = vld [vmem:[%s2006 + $0xc] sm:$0xff]
    %v2010 = vld [vmem:[%s2006 + $0x14] sm:$0xf]
    %v2011 = vld [vmem:[%s2006 + $0x18] sm:$0xff]
    %v2012 = vld [vmem:[%s2006 + $0x20] sm:$0xf]
    %v2013 = vld [vmem:[%s2006 + $0x24] sm:$0xff]
    %v2014 = vld [vmem:[%s2006 + $0x2c] sm:$0xf]
    %v2015 = vld [vmem:[%s2006 + $0x30] sm:$0xff]
    %v2016 = vld [vmem:[%s2006 + $0x38] sm:$0xf]
    %v2017 = vld [vmem:[%s2006 + $0x3c] sm:$0xff]
    %v2018 = vld [vmem:[%s2006 + $0x44] sm:$0xf]
    %v2019 = vld [vmem:[%s2006 + $0x48] sm:$0xff]
    %v2020 = vld [vmem:[%s2006 + $0x50] sm:$0xf]
    %v2021 = vld [vmem:[%s2006 + $0x54] sm:$0xff]
    %v2022 = vld [vmem:[%s2006 + $0x5c] sm:$0xf]
    %v2023 = vld [vmem:[%s2006 + $0x60] sm:$0xff]
    %v2024 = vld [vmem:[%s2006 + $0x68] sm:$0xf]
    %v2043 = vunpack.c.l.b16 %v2007
    %v2044 = vunpack.c.h.b16 %v2007
    %v2045 = vunpack.c.l.b16 %v2008
    %v2046 = vunpack.c.l.b16 %v2009
    %v2047 = vunpack.c.h.b16 %v2009
    %v2048 = vunpack.c.l.b16 %v2010
    %v2049 = vunpack.c.l.b16 %v2011
    %v2050 = vunpack.c.h.b16 %v2011
    %v2051 = vunpack.c.l.b16 %v2012
    %v2052 = vunpack.c.l.b16 %v2013
    %v2053 = vunpack.c.h.b16 %v2013
    %v2054 = vunpack.c.l.b16 %v2014
    %v2055 = vunpack.c.l.b16 %v2015
    %v2056 = vunpack.c.h.b16 %v2015
    %v2057 = vunpack.c.l.b16 %v2016
    %v2058 = vunpack.c.l.b16 %v2017
    %v2059 = vunpack.c.h.b16 %v2017
    %v2060 = vunpack.c.l.b16 %v2018
    %v2061 = vunpack.c.l.b16 %v2019
    %v2062 = vunpack.c.h.b16 %v2019
    %v2063 = vunpack.c.l.b16 %v2020
    %v2064 = vunpack.c.l.b16 %v2021
    %v2065 = vunpack.c.h.b16 %v2021
    %v2066 = vunpack.c.l.b16 %v2022
    %v2067 = vunpack.c.l.b16 %v2023
    %v2068 = vunpack.c.h.b16 %v2023
    %v2069 = vunpack.c.l.b16 %v2024
    %v2070 = vpack.c.b16 %v2046, %v2043
    %v2071 = vpack.c.b16 %v2047, %v2044
    %v2072 = vpack.c.b16 %v2048, %v2045
    %v2073 = vpack.c.b16 %v2052, %v2049
    %v2074 = vpack.c.b16 %v2053, %v2050
    %v2075 = vpack.c.b16 %v2054, %v2051
    %v2076 = vpack.c.b16 %v2058, %v2055
    %v2077 = vpack.c.b16 %v2059, %v2056
    %v2078 = vpack.c.b16 %v2060, %v2057
    %v2079 = vpack.c.b16 %v2064, %v2061
    %v2080 = vpack.c.b16 %v2065, %v2062
    %v2081 = vpack.c.b16 %v2066, %v2063
    %v2082 = vpack.c.b16 %v2067, %v2067
    %v2083 = vpack.c.b16 %v2068, %v2068
    %v2084 = vpack.c.b16 %v2069, %v2069
    %v2096 = vsel %vm348, %v2072, 0
    %v2099 = vsel %vm348, %v2075, 0
    %v2102 = vsel %vm348, %v2078, 0
    %v2105 = vsel %vm348, %v2081, 0
    %v2108 = vsel %vm348, %v2084, 0
    %2110 = vmatpush.bf16.msra.mxu0 %v315
    %2111 = vmatpush.bf16.msra.mxu0 %v314
    %2112 = vmatpush.bf16.msra.mxu0 %v313
    %2113 = vmatpush.bf16.msra.mxu0 %v312
    %2114 = vmatpush.bf16.msra.mxu0 %v311
    %2115 = vmatpush.bf16.msra.mxu0 %v310
    %2116 = vmatpush.bf16.msra.mxu0 %v309
    %2117 = vmatpush.bf16.msra.mxu0 %v308
    %2118 = vmatmul.bf16.gmra.mxu0 %v2070
    %v2119 = vpop.f32.mrf.mxu0
    %v2120 = vadd.f32 0.0, %v2119
    %v2121 = vpop.f32.mrf.mxu0
    %v2122 = vadd.f32 0.0, %v2121
    %2123 = vmatmul.bf16.gmra.mxu0 %v2073
    %v2124 = vpop.f32.mrf.mxu0
    %v2125 = vadd.f32 0.0, %v2124
    %v2126 = vpop.f32.mrf.mxu0
    %v2127 = vadd.f32 0.0, %v2126
    %2128 = vmatmul.bf16.gmra.mxu0 %v2076
    %v2129 = vpop.f32.mrf.mxu0
    %v2130 = vadd.f32 0.0, %v2129
    %v2131 = vpop.f32.mrf.mxu0
    %v2132 = vadd.f32 0.0, %v2131
    %2133 = vmatmul.bf16.gmra.mxu0 %v2079
    %v2134 = vpop.f32.mrf.mxu0
    %v2135 = vadd.f32 0.0, %v2134
    %v2136 = vpop.f32.mrf.mxu0
    %v2137 = vadd.f32 0.0, %v2136
    %2138 = vmatmul.bf16.gmra.mxu0 %v2082
    %v2139 = vpop.f32.mrf.mxu0
    %v2140 = vadd.f32 0.0, %v2139
    %v2141 = vpop.f32.mrf.mxu0
    %2142 = vdwg.mxu0
    %2143 = vmatpush.bf16.msra.mxu0 %v323
    %2144 = vmatpush.bf16.msra.mxu0 %v322
    %2145 = vmatpush.bf16.msra.mxu0 %v321
    %2146 = vmatpush.bf16.msra.mxu0 %v320
    %2147 = vmatpush.bf16.msra.mxu0 %v319
    %2148 = vmatpush.bf16.msra.mxu0 %v318
    %2149 = vmatpush.bf16.msra.mxu0 %v317
    %2150 = vmatpush.bf16.msra.mxu0 %v316
    %2151 = vmatmul.bf16.gmra.mxu0 %v2071
    %v2152 = vpop.f32.mrf.mxu0
    %v2153 = vadd.f32 %v2120, %v2152
    %v2154 = vpop.f32.mrf.mxu0
    %v2155 = vadd.f32 %v2122, %v2154
    %2156 = vmatmul.bf16.gmra.mxu0 %v2074
    %v2157 = vpop.f32.mrf.mxu0
    %v2158 = vadd.f32 %v2125, %v2157
    %v2159 = vpop.f32.mrf.mxu0
    %v2160 = vadd.f32 %v2127, %v2159
    %2161 = vmatmul.bf16.gmra.mxu0 %v2077
    %v2162 = vpop.f32.mrf.mxu0
    %v2163 = vadd.f32 %v2130, %v2162
    %v2164 = vpop.f32.mrf.mxu0
    %v2165 = vadd.f32 %v2132, %v2164
    %2166 = vmatmul.bf16.gmra.mxu0 %v2080
    %v2167 = vpop.f32.mrf.mxu0
    %v2168 = vadd.f32 %v2135, %v2167
    %v2169 = vpop.f32.mrf.mxu0
    %v2170 = vadd.f32 %v2137, %v2169
    %2171 = vmatmul.bf16.gmra.mxu0 %v2083
    %v2172 = vpop.f32.mrf.mxu0
    %v2173 = vadd.f32 %v2140, %v2172
    %v2174 = vpop.f32.mrf.mxu0
    %2175 = vdwg.mxu0
    %2176 = vmatpush.bf16.msra.mxu0 0
    %2177 = vmatpush.bf16.msra.mxu0 0
    %2178 = vmatpush.bf16.msra.mxu0 0
    %2179 = vmatpush.bf16.msra.mxu0 0
    %2180 = vmatpush.bf16.msra.mxu0 %v327
    %2181 = vmatpush.bf16.msra.mxu0 %v326
    %2182 = vmatpush.bf16.msra.mxu0 %v325
    %2183 = vmatpush.bf16.msra.mxu0 %v324
    %2184 = vmatmul.bf16.gmra.mxu0 %v2096
    %v2185 = vpop.f32.mrf.mxu0
    %v2186 = vadd.f32 %v2153, %v2185
    %v2187 = vpop.f32.mrf.mxu0
    %v2188 = vadd.f32 %v2155, %v2187
    %2189 = vmatmul.bf16.gmra.mxu0 %v2099
    %v2190 = vpop.f32.mrf.mxu0
    %v2191 = vadd.f32 %v2158, %v2190
    %v2192 = vpop.f32.mrf.mxu0
    %v2193 = vadd.f32 %v2160, %v2192
    %2194 = vmatmul.bf16.gmra.mxu0 %v2102
    %v2195 = vpop.f32.mrf.mxu0
    %v2196 = vadd.f32 %v2163, %v2195
    %v2197 = vpop.f32.mrf.mxu0
    %v2198 = vadd.f32 %v2165, %v2197
    %2199 = vmatmul.bf16.gmra.mxu0 %v2105
    %v2200 = vpop.f32.mrf.mxu0
    %v2201 = vadd.f32 %v2168, %v2200
    %v2202 = vpop.f32.mrf.mxu0
    %v2203 = vadd.f32 %v2170, %v2202
    %2204 = vmatmul.bf16.gmra.mxu0 %v2108
    %v2205 = vpop.f32.mrf.mxu0
    %v2206 = vadd.f32 %v2173, %v2205
    %v2207 = vpop.f32.mrf.mxu0
    %2208 = vdwg.mxu0
    %v2209 = vpack.c.bf16 %v2188, %v2186
    %v2210 = vpack.c.bf16 %v2193, %v2191
    %v2211 = vpack.c.bf16 %v2198, %v2196
    %v2212 = vpack.c.bf16 %v2203, %v2201
    %v2213 = vpack.c.bf16 %v2206, %v2206
    %s2214 = scalar_lea.vmem [#allocation5], 480
    %v2215 = vld [vmem:[%s2214] sm:$0xff]
    %v2216 = vld [vmem:[%s2214 + $0x8] sm:$0xf]
    %v2217 = vld [vmem:[%s2214 + $0xc] sm:$0xff]
    %v2218 = vld [vmem:[%s2214 + $0x14] sm:$0xf]
    %v2219 = vld [vmem:[%s2214 + $0x18] sm:$0xff]
    %v2220 = vld [vmem:[%s2214 + $0x20] sm:$0xf]
    %v2221 = vld [vmem:[%s2214 + $0x24] sm:$0xff]
    %v2222 = vld [vmem:[%s2214 + $0x2c] sm:$0xf]
    %v2223 = vld [vmem:[%s2214 + $0x30] sm:$0xff]
    %v2224 = vld [vmem:[%s2214 + $0x38] sm:$0xf]
    %v2225 = vld [vmem:[%s2214 + $0x3c] sm:$0xff]
    %v2226 = vld [vmem:[%s2214 + $0x44] sm:$0xf]
    %v2227 = vld [vmem:[%s2214 + $0x48] sm:$0xff]
    %v2228 = vld [vmem:[%s2214 + $0x50] sm:$0xf]
    %v2229 = vld [vmem:[%s2214 + $0x54] sm:$0xff]
    %v2230 = vld [vmem:[%s2214 + $0x5c] sm:$0xf]
    %v2231 = vld [vmem:[%s2214 + $0x60] sm:$0xff]
    %v2232 = vld [vmem:[%s2214 + $0x68] sm:$0xf]
    %v2233 = vld [vmem:[%s2214 + $0x6c] sm:$0xff]
    %v2234 = vld [vmem:[%s2214 + $0x74] sm:$0xf]
    %v2255 = vunpack.c.l.b16 %v2215
    %v2256 = vunpack.c.h.b16 %v2215
    %v2257 = vunpack.c.l.b16 %v2216
    %v2258 = vunpack.c.l.b16 %v2217
    %v2259 = vunpack.c.h.b16 %v2217
    %v2260 = vunpack.c.l.b16 %v2218
    %v2261 = vunpack.c.l.b16 %v2219
    %v2262 = vunpack.c.h.b16 %v2219
    %v2263 = vunpack.c.l.b16 %v2220
    %v2264 = vunpack.c.l.b16 %v2221
    %v2265 = vunpack.c.h.b16 %v2221
    %v2266 = vunpack.c.l.b16 %v2222
    %v2267 = vunpack.c.l.b16 %v2223
    %v2268 = vunpack.c.h.b16 %v2223
    %v2269 = vunpack.c.l.b16 %v2224
    %v2270 = vunpack.c.l.b16 %v2225
    %v2271 = vunpack.c.h.b16 %v2225
    %v2272 = vunpack.c.l.b16 %v2226
    %v2273 = vunpack.c.l.b16 %v2227
    %v2274 = vunpack.c.h.b16 %v2227
    %v2275 = vunpack.c.l.b16 %v2228
    %v2276 = vunpack.c.l.b16 %v2229
    %v2277 = vunpack.c.h.b16 %v2229
    %v2278 = vunpack.c.l.b16 %v2230
    %v2279 = vunpack.c.l.b16 %v2231
    %v2280 = vunpack.c.h.b16 %v2231
    %v2281 = vunpack.c.l.b16 %v2232
    %v2282 = vunpack.c.l.b16 %v2233
    %v2283 = vunpack.c.h.b16 %v2233
    %v2284 = vunpack.c.l.b16 %v2234
    %v2285 = vpack.c.b16 %v2258, %v2255
    %v2286 = vpack.c.b16 %v2259, %v2256
    %v2287 = vpack.c.b16 %v2260, %v2257
    %v2288 = vpack.c.b16 %v2264, %v2261
    %v2289 = vpack.c.b16 %v2265, %v2262
    %v2290 = vpack.c.b16 %v2266, %v2263
    %v2291 = vpack.c.b16 %v2270, %v2267
    %v2292 = vpack.c.b16 %v2271, %v2268
    %v2293 = vpack.c.b16 %v2272, %v2269
    %v2294 = vpack.c.b16 %v2276, %v2273
    %v2295 = vpack.c.b16 %v2277, %v2274
    %v2296 = vpack.c.b16 %v2278, %v2275
    %v2297 = vpack.c.b16 %v2282, %v2279
    %v2298 = vpack.c.b16 %v2283, %v2280
    %v2299 = vpack.c.b16 %v2284, %v2281
    %v2316 = vsel %vm797, %v2209, 0
    %v2319 = vsel %vm797, %v2210, 0
    %v2322 = vsel %vm797, %v2211, 0
    %v2325 = vsel %vm797, %v2212, 0
    %v2328 = vsel %vm797, %v2213, 0
    %2330 = vmatpush.bf16.msra.mxu0 0
    %2331 = vmatpush.bf16.msra.mxu0 0
    %2332 = vmatpush.bf16.msra.mxu0 0
    %2333 = vmatpush.bf16.msra.mxu0 %v2297
    %2334 = vmatpush.bf16.msra.mxu0 %v2294
    %2335 = vmatpush.bf16.msra.mxu0 %v2291
    %2336 = vmatpush.bf16.msra.mxu0 %v2288
    %2337 = vmatpush.bf16.msra.mxu0 %v2285
    %2338 = vmatmul.bf16.gmra.mxu0 %v2316
    %v2339 = vpop.f32.mrf.mxu0
    %v2340 = vadd.f32 0.0, %v2339
    %v2341 = vpop.f32.mrf.mxu0
    %v2342 = vadd.f32 0.0, %v2341
    %2343 = vmatmul.bf16.gmra.mxu0 %v2319
    %v2344 = vpop.f32.mrf.mxu0
    %v2345 = vadd.f32 0.0, %v2344
    %v2346 = vpop.f32.mrf.mxu0
    %v2347 = vadd.f32 0.0, %v2346
    %2348 = vmatmul.bf16.gmra.mxu0 %v2322
    %v2349 = vpop.f32.mrf.mxu0
    %v2350 = vadd.f32 0.0, %v2349
    %v2351 = vpop.f32.mrf.mxu0
    %v2352 = vadd.f32 0.0, %v2351
    %2353 = vmatmul.bf16.gmra.mxu0 %v2325
    %v2354 = vpop.f32.mrf.mxu0
    %v2355 = vadd.f32 0.0, %v2354
    %v2356 = vpop.f32.mrf.mxu0
    %v2357 = vadd.f32 0.0, %v2356
    %2358 = vmatmul.bf16.gmra.mxu0 %v2328
    %v2359 = vpop.f32.mrf.mxu0
    %v2360 = vadd.f32 0.0, %v2359
    %v2361 = vpop.f32.mrf.mxu0
    %2362 = vdwg.mxu0
    %2363 = vmatpush.bf16.msra.mxu0 0
    %2364 = vmatpush.bf16.msra.mxu0 0
    %2365 = vmatpush.bf16.msra.mxu0 0
    %2366 = vmatpush.bf16.msra.mxu0 %v2298
    %2367 = vmatpush.bf16.msra.mxu0 %v2295
    %2368 = vmatpush.bf16.msra.mxu0 %v2292
    %2369 = vmatpush.bf16.msra.mxu0 %v2289
    %2370 = vmatpush.bf16.msra.mxu0 %v2286
    %2371 = vmatmul.bf16.gmra.mxu0 %v2316
    %v2372 = vpop.f32.mrf.mxu0
    %v2373 = vadd.f32 0.0, %v2372
    %v2374 = vpop.f32.mrf.mxu0
    %v2375 = vadd.f32 0.0, %v2374
    %2376 = vmatmul.bf16.gmra.mxu0 %v2319
    %v2377 = vpop.f32.mrf.mxu0
    %v2378 = vadd.f32 0.0, %v2377
    %v2379 = vpop.f32.mrf.mxu0
    %v2380 = vadd.f32 0.0, %v2379
    %2381 = vmatmul.bf16.gmra.mxu0 %v2322
    %v2382 = vpop.f32.mrf.mxu0
    %v2383 = vadd.f32 0.0, %v2382
    %v2384 = vpop.f32.mrf.mxu0
    %v2385 = vadd.f32 0.0, %v2384
    %2386 = vmatmul.bf16.gmra.mxu0 %v2325
    %v2387 = vpop.f32.mrf.mxu0
    %v2388 = vadd.f32 0.0, %v2387
    %v2389 = vpop.f32.mrf.mxu0
    %v2390 = vadd.f32 0.0, %v2389
    %2391 = vmatmul.bf16.gmra.mxu0 %v2328
    %v2392 = vpop.f32.mrf.mxu0
    %v2393 = vadd.f32 0.0, %v2392
    %v2394 = vpop.f32.mrf.mxu0
    %2395 = vdwg.mxu0
    %2396 = vmatpush.bf16.msra.mxu0 0
    %2397 = vmatpush.bf16.msra.mxu0 0
    %2398 = vmatpush.bf16.msra.mxu0 0
    %2399 = vmatpush.bf16.msra.mxu0 %v2299
    %2400 = vmatpush.bf16.msra.mxu0 %v2296
    %2401 = vmatpush.bf16.msra.mxu0 %v2293
    %2402 = vmatpush.bf16.msra.mxu0 %v2290
    %2403 = vmatpush.bf16.msra.mxu0 %v2287
    %2404 = vmatmul.bf16.gmra.mxu0 %v2316
    %v2405 = vpop.f32.mrf.mxu0
    %v2406 = vadd.f32 0.0, %v2405
    %v2407 = vpop.f32.mrf.mxu0
    %v2408 = vadd.f32 0.0, %v2407
    %2409 = vmatmul.bf16.gmra.mxu0 %v2319
    %v2410 = vpop.f32.mrf.mxu0
    %v2411 = vadd.f32 0.0, %v2410
    %v2412 = vpop.f32.mrf.mxu0
    %v2413 = vadd.f32 0.0, %v2412
    %2414 = vmatmul.bf16.gmra.mxu0 %v2322
    %v2415 = vpop.f32.mrf.mxu0
    %v2416 = vadd.f32 0.0, %v2415
    %v2417 = vpop.f32.mrf.mxu0
    %v2418 = vadd.f32 0.0, %v2417
    %2419 = vmatmul.bf16.gmra.mxu0 %v2325
    %v2420 = vpop.f32.mrf.mxu0
    %v2421 = vadd.f32 0.0, %v2420
    %v2422 = vpop.f32.mrf.mxu0
    %v2423 = vadd.f32 0.0, %v2422
    %2424 = vmatmul.bf16.gmra.mxu0 %v2328
    %v2425 = vpop.f32.mrf.mxu0
    %v2426 = vadd.f32 0.0, %v2425
    %v2427 = vpop.f32.mrf.mxu0
    %2428 = vdwg.mxu0
    %v2429 = vadd.f32 %v1979, %v2340
    %v2430 = vadd.f32 %v1980, %v2373
    %v2431 = vadd.f32 %v1981, %v2406
    %v2432 = vadd.f32 %v1982, %v2342
    %v2433 = vadd.f32 %v1983, %v2375
    %v2434 = vadd.f32 %v1984, %v2408
    %v2435 = vadd.f32 %v1985, %v2345
    %v2436 = vadd.f32 %v1986, %v2378
    %v2437 = vadd.f32 %v1987, %v2411
    %v2438 = vadd.f32 %v1988, %v2347
    %v2439 = vadd.f32 %v1989, %v2380
    %v2440 = vadd.f32 %v1990, %v2413
    %v2441 = vadd.f32 %v1991, %v2350
    %v2442 = vadd.f32 %v1992, %v2383
    %v2443 = vadd.f32 %v1993, %v2416
    %v2444 = vadd.f32 %v1994, %v2352
    %v2445 = vadd.f32 %v1995, %v2385
    %v2446 = vadd.f32 %v1996, %v2418
    %v2447 = vadd.f32 %v1997, %v2355
    %v2448 = vadd.f32 %v1998, %v2388
    %v2449 = vadd.f32 %v1999, %v2421
    %v2450 = vadd.f32 %v2000, %v2357
    %v2451 = vadd.f32 %v2001, %v2390
    %v2452 = vadd.f32 %v2002, %v2423
    %v2453 = vadd.f32 %v2003, %v2360
    %v2454 = vadd.f32 %v2004, %v2393
    %v2455 = vadd.f32 %v2005, %v2426
    %s2456 = scalar_lea.vmem [#allocation3], 540
    %v2457 = vld [vmem:[%s2456] sm:$0xff]
    %v2458 = vld [vmem:[%s2456 + $0x8] sm:$0xf]
    %v2459 = vld [vmem:[%s2456 + $0xc] sm:$0xff]
    %v2460 = vld [vmem:[%s2456 + $0x14] sm:$0xf]
    %v2461 = vld [vmem:[%s2456 + $0x18] sm:$0xff]
    %v2462 = vld [vmem:[%s2456 + $0x20] sm:$0xf]
    %v2463 = vld [vmem:[%s2456 + $0x24] sm:$0xff]
    %v2464 = vld [vmem:[%s2456 + $0x2c] sm:$0xf]
    %v2465 = vld [vmem:[%s2456 + $0x30] sm:$0xff]
    %v2466 = vld [vmem:[%s2456 + $0x38] sm:$0xf]
    %v2467 = vld [vmem:[%s2456 + $0x3c] sm:$0xff]
    %v2468 = vld [vmem:[%s2456 + $0x44] sm:$0xf]
    %v2469 = vld [vmem:[%s2456 + $0x48] sm:$0xff]
    %v2470 = vld [vmem:[%s2456 + $0x50] sm:$0xf]
    %v2471 = vld [vmem:[%s2456 + $0x54] sm:$0xff]
    %v2472 = vld [vmem:[%s2456 + $0x5c] sm:$0xf]
    %v2473 = vld [vmem:[%s2456 + $0x60] sm:$0xff]
    %v2474 = vld [vmem:[%s2456 + $0x68] sm:$0xf]
    %v2493 = vunpack.c.l.b16 %v2457
    %v2494 = vunpack.c.h.b16 %v2457
    %v2495 = vunpack.c.l.b16 %v2458
    %v2496 = vunpack.c.l.b16 %v2459
    %v2497 = vunpack.c.h.b16 %v2459
    %v2498 = vunpack.c.l.b16 %v2460
    %v2499 = vunpack.c.l.b16 %v2461
    %v2500 = vunpack.c.h.b16 %v2461
    %v2501 = vunpack.c.l.b16 %v2462
    %v2502 = vunpack.c.l.b16 %v2463
    %v2503 = vunpack.c.h.b16 %v2463
    %v2504 = vunpack.c.l.b16 %v2464
    %v2505 = vunpack.c.l.b16 %v2465
    %v2506 = vunpack.c.h.b16 %v2465
    %v2507 = vunpack.c.l.b16 %v2466
    %v2508 = vunpack.c.l.b16 %v2467
    %v2509 = vunpack.c.h.b16 %v2467
    %v2510 = vunpack.c.l.b16 %v2468
    %v2511 = vunpack.c.l.b16 %v2469
    %v2512 = vunpack.c.h.b16 %v2469
    %v2513 = vunpack.c.l.b16 %v2470
    %v2514 = vunpack.c.l.b16 %v2471
    %v2515 = vunpack.c.h.b16 %v2471
    %v2516 = vunpack.c.l.b16 %v2472
    %v2517 = vunpack.c.l.b16 %v2473
    %v2518 = vunpack.c.h.b16 %v2473
    %v2519 = vunpack.c.l.b16 %v2474
    %v2520 = vpack.c.b16 %v2496, %v2493
    %v2521 = vpack.c.b16 %v2497, %v2494
    %v2522 = vpack.c.b16 %v2498, %v2495
    %v2523 = vpack.c.b16 %v2502, %v2499
    %v2524 = vpack.c.b16 %v2503, %v2500
    %v2525 = vpack.c.b16 %v2504, %v2501
    %v2526 = vpack.c.b16 %v2508, %v2505
    %v2527 = vpack.c.b16 %v2509, %v2506
    %v2528 = vpack.c.b16 %v2510, %v2507
    %v2529 = vpack.c.b16 %v2514, %v2511
    %v2530 = vpack.c.b16 %v2515, %v2512
    %v2531 = vpack.c.b16 %v2516, %v2513
    %v2532 = vpack.c.b16 %v2517, %v2517
    %v2533 = vpack.c.b16 %v2518, %v2518
    %v2534 = vpack.c.b16 %v2519, %v2519
    %v2546 = vsel %vm348, %v2522, 0
    %v2549 = vsel %vm348, %v2525, 0
    %v2552 = vsel %vm348, %v2528, 0
    %v2555 = vsel %vm348, %v2531, 0
    %v2558 = vsel %vm348, %v2534, 0
    %2560 = vmatpush.bf16.msra.mxu0 %v315
    %2561 = vmatpush.bf16.msra.mxu0 %v314
    %2562 = vmatpush.bf16.msra.mxu0 %v313
    %2563 = vmatpush.bf16.msra.mxu0 %v312
    %2564 = vmatpush.bf16.msra.mxu0 %v311
    %2565 = vmatpush.bf16.msra.mxu0 %v310
    %2566 = vmatpush.bf16.msra.mxu0 %v309
    %2567 = vmatpush.bf16.msra.mxu0 %v308
    %2568 = vmatmul.bf16.gmra.mxu0 %v2520
    %v2569 = vpop.f32.mrf.mxu0
    %v2570 = vadd.f32 0.0, %v2569
    %v2571 = vpop.f32.mrf.mxu0
    %v2572 = vadd.f32 0.0, %v2571
    %2573 = vmatmul.bf16.gmra.mxu0 %v2523
    %v2574 = vpop.f32.mrf.mxu0
    %v2575 = vadd.f32 0.0, %v2574
    %v2576 = vpop.f32.mrf.mxu0
    %v2577 = vadd.f32 0.0, %v2576
    %2578 = vmatmul.bf16.gmra.mxu0 %v2526
    %v2579 = vpop.f32.mrf.mxu0
    %v2580 = vadd.f32 0.0, %v2579
    %v2581 = vpop.f32.mrf.mxu0
    %v2582 = vadd.f32 0.0, %v2581
    %2583 = vmatmul.bf16.gmra.mxu0 %v2529
    %v2584 = vpop.f32.mrf.mxu0
    %v2585 = vadd.f32 0.0, %v2584
    %v2586 = vpop.f32.mrf.mxu0
    %v2587 = vadd.f32 0.0, %v2586
    %2588 = vmatmul.bf16.gmra.mxu0 %v2532
    %v2589 = vpop.f32.mrf.mxu0
    %v2590 = vadd.f32 0.0, %v2589
    %v2591 = vpop.f32.mrf.mxu0
    %2592 = vdwg.mxu0
    %2593 = vmatpush.bf16.msra.mxu0 %v323
    %2594 = vmatpush.bf16.msra.mxu0 %v322
    %2595 = vmatpush.bf16.msra.mxu0 %v321
    %2596 = vmatpush.bf16.msra.mxu0 %v320
    %2597 = vmatpush.bf16.msra.mxu0 %v319
    %2598 = vmatpush.bf16.msra.mxu0 %v318
    %2599 = vmatpush.bf16.msra.mxu0 %v317
    %2600 = vmatpush.bf16.msra.mxu0 %v316
    %2601 = vmatmul.bf16.gmra.mxu0 %v2521
    %v2602 = vpop.f32.mrf.mxu0
    %v2603 = vadd.f32 %v2570, %v2602
    %v2604 = vpop.f32.mrf.mxu0
    %v2605 = vadd.f32 %v2572, %v2604
    %2606 = vmatmul.bf16.gmra.mxu0 %v2524
    %v2607 = vpop.f32.mrf.mxu0
    %v2608 = vadd.f32 %v2575, %v2607
    %v2609 = vpop.f32.mrf.mxu0
    %v2610 = vadd.f32 %v2577, %v2609
    %2611 = vmatmul.bf16.gmra.mxu0 %v2527
    %v2612 = vpop.f32.mrf.mxu0
    %v2613 = vadd.f32 %v2580, %v2612
    %v2614 = vpop.f32.mrf.mxu0
    %v2615 = vadd.f32 %v2582, %v2614
    %2616 = vmatmul.bf16.gmra.mxu0 %v2530
    %v2617 = vpop.f32.mrf.mxu0
    %v2618 = vadd.f32 %v2585, %v2617
    %v2619 = vpop.f32.mrf.mxu0
    %v2620 = vadd.f32 %v2587, %v2619
    %2621 = vmatmul.bf16.gmra.mxu0 %v2533
    %v2622 = vpop.f32.mrf.mxu0
    %v2623 = vadd.f32 %v2590, %v2622
    %v2624 = vpop.f32.mrf.mxu0
    %2625 = vdwg.mxu0
    %2626 = vmatpush.bf16.msra.mxu0 0
    %2627 = vmatpush.bf16.msra.mxu0 0
    %2628 = vmatpush.bf16.msra.mxu0 0
    %2629 = vmatpush.bf16.msra.mxu0 0
    %2630 = vmatpush.bf16.msra.mxu0 %v327
    %2631 = vmatpush.bf16.msra.mxu0 %v326
    %2632 = vmatpush.bf16.msra.mxu0 %v325
    %2633 = vmatpush.bf16.msra.mxu0 %v324
    %2634 = vmatmul.bf16.gmra.mxu0 %v2546
    %v2635 = vpop.f32.mrf.mxu0
    %v2636 = vadd.f32 %v2603, %v2635
    %v2637 = vpop.f32.mrf.mxu0
    %v2638 = vadd.f32 %v2605, %v2637
    %2639 = vmatmul.bf16.gmra.mxu0 %v2549
    %v2640 = vpop.f32.mrf.mxu0
    %v2641 = vadd.f32 %v2608, %v2640
    %v2642 = vpop.f32.mrf.mxu0
    %v2643 = vadd.f32 %v2610, %v2642
    %2644 = vmatmul.bf16.gmra.mxu0 %v2552
    %v2645 = vpop.f32.mrf.mxu0
    %v2646 = vadd.f32 %v2613, %v2645
    %v2647 = vpop.f32.mrf.mxu0
    %v2648 = vadd.f32 %v2615, %v2647
    %2649 = vmatmul.bf16.gmra.mxu0 %v2555
    %v2650 = vpop.f32.mrf.mxu0
    %v2651 = vadd.f32 %v2618, %v2650
    %v2652 = vpop.f32.mrf.mxu0
    %v2653 = vadd.f32 %v2620, %v2652
    %2654 = vmatmul.bf16.gmra.mxu0 %v2558
    %v2655 = vpop.f32.mrf.mxu0
    %v2656 = vadd.f32 %v2623, %v2655
    %v2657 = vpop.f32.mrf.mxu0
    %2658 = vdwg.mxu0
    %v2659 = vpack.c.bf16 %v2638, %v2636
    %v2660 = vpack.c.bf16 %v2643, %v2641
    %v2661 = vpack.c.bf16 %v2648, %v2646
    %v2662 = vpack.c.bf16 %v2653, %v2651
    %v2663 = vpack.c.bf16 %v2656, %v2656
    %s2664 = scalar_lea.vmem [#allocation5], 600
    %v2665 = vld [vmem:[%s2664] sm:$0xff]
    %v2666 = vld [vmem:[%s2664 + $0x8] sm:$0xf]
    %v2667 = vld [vmem:[%s2664 + $0xc] sm:$0xff]
    %v2668 = vld [vmem:[%s2664 + $0x14] sm:$0xf]
    %v2669 = vld [vmem:[%s2664 + $0x18] sm:$0xff]
    %v2670 = vld [vmem:[%s2664 + $0x20] sm:$0xf]
    %v2671 = vld [vmem:[%s2664 + $0x24] sm:$0xff]
    %v2672 = vld [vmem:[%s2664 + $0x2c] sm:$0xf]
    %v2673 = vld [vmem:[%s2664 + $0x30] sm:$0xff]
    %v2674 = vld [vmem:[%s2664 + $0x38] sm:$0xf]
    %v2675 = vld [vmem:[%s2664 + $0x3c] sm:$0xff]
    %v2676 = vld [vmem:[%s2664 + $0x44] sm:$0xf]
    %v2677 = vld [vmem:[%s2664 + $0x48] sm:$0xff]
    %v2678 = vld [vmem:[%s2664 + $0x50] sm:$0xf]
    %v2679 = vld [vmem:[%s2664 + $0x54] sm:$0xff]
    %v2680 = vld [vmem:[%s2664 + $0x5c] sm:$0xf]
    %v2681 = vld [vmem:[%s2664 + $0x60] sm:$0xff]
    %v2682 = vld [vmem:[%s2664 + $0x68] sm:$0xf]
    %v2683 = vld [vmem:[%s2664 + $0x6c] sm:$0xff]
    %v2684 = vld [vmem:[%s2664 + $0x74] sm:$0xf]
    %v2705 = vunpack.c.l.b16 %v2665
    %v2706 = vunpack.c.h.b16 %v2665
    %v2707 = vunpack.c.l.b16 %v2666
    %v2708 = vunpack.c.l.b16 %v2667
    %v2709 = vunpack.c.h.b16 %v2667
    %v2710 = vunpack.c.l.b16 %v2668
    %v2711 = vunpack.c.l.b16 %v2669
    %v2712 = vunpack.c.h.b16 %v2669
    %v2713 = vunpack.c.l.b16 %v2670
    %v2714 = vunpack.c.l.b16 %v2671
    %v2715 = vunpack.c.h.b16 %v2671
    %v2716 = vunpack.c.l.b16 %v2672
    %v2717 = vunpack.c.l.b16 %v2673
    %v2718 = vunpack.c.h.b16 %v2673
    %v2719 = vunpack.c.l.b16 %v2674
    %v2720 = vunpack.c.l.b16 %v2675
    %v2721 = vunpack.c.h.b16 %v2675
    %v2722 = vunpack.c.l.b16 %v2676
    %v2723 = vunpack.c.l.b16 %v2677
    %v2724 = vunpack.c.h.b16 %v2677
    %v2725 = vunpack.c.l.b16 %v2678
    %v2726 = vunpack.c.l.b16 %v2679
    %v2727 = vunpack.c.h.b16 %v2679
    %v2728 = vunpack.c.l.b16 %v2680
    %v2729 = vunpack.c.l.b16 %v2681
    %v2730 = vunpack.c.h.b16 %v2681
    %v2731 = vunpack.c.l.b16 %v2682
    %v2732 = vunpack.c.l.b16 %v2683
    %v2733 = vunpack.c.h.b16 %v2683
    %v2734 = vunpack.c.l.b16 %v2684
    %v2735 = vpack.c.b16 %v2708, %v2705
    %v2736 = vpack.c.b16 %v2709, %v2706
    %v2737 = vpack.c.b16 %v2710, %v2707
    %v2738 = vpack.c.b16 %v2714, %v2711
    %v2739 = vpack.c.b16 %v2715, %v2712
    %v2740 = vpack.c.b16 %v2716, %v2713
    %v2741 = vpack.c.b16 %v2720, %v2717
    %v2742 = vpack.c.b16 %v2721, %v2718
    %v2743 = vpack.c.b16 %v2722, %v2719
    %v2744 = vpack.c.b16 %v2726, %v2723
    %v2745 = vpack.c.b16 %v2727, %v2724
    %v2746 = vpack.c.b16 %v2728, %v2725
    %v2747 = vpack.c.b16 %v2732, %v2729
    %v2748 = vpack.c.b16 %v2733, %v2730
    %v2749 = vpack.c.b16 %v2734, %v2731
    %v2766 = vsel %vm797, %v2659, 0
    %v2769 = vsel %vm797, %v2660, 0
    %v2772 = vsel %vm797, %v2661, 0
    %v2775 = vsel %vm797, %v2662, 0
    %v2778 = vsel %vm797, %v2663, 0
    %2780 = vmatpush.bf16.msra.mxu0 0
    %2781 = vmatpush.bf16.msra.mxu0 0
    %2782 = vmatpush.bf16.msra.mxu0 0
    %2783 = vmatpush.bf16.msra.mxu0 %v2747
    %2784 = vmatpush.bf16.msra.mxu0 %v2744
    %2785 = vmatpush.bf16.msra.mxu0 %v2741
    %2786 = vmatpush.bf16.msra.mxu0 %v2738
    %2787 = vmatpush.bf16.msra.mxu0 %v2735
    %2788 = vmatmul.bf16.gmra.mxu0 %v2766
    %v2789 = vpop.f32.mrf.mxu0
    %v2790 = vadd.f32 0.0, %v2789
    %v2791 = vpop.f32.mrf.mxu0
    %v2792 = vadd.f32 0.0, %v2791
    %2793 = vmatmul.bf16.gmra.mxu0 %v2769
    %v2794 = vpop.f32.mrf.mxu0
    %v2795 = vadd.f32 0.0, %v2794
    %v2796 = vpop.f32.mrf.mxu0
    %v2797 = vadd.f32 0.0, %v2796
    %2798 = vmatmul.bf16.gmra.mxu0 %v2772
    %v2799 = vpop.f32.mrf.mxu0
    %v2800 = vadd.f32 0.0, %v2799
    %v2801 = vpop.f32.mrf.mxu0
    %v2802 = vadd.f32 0.0, %v2801
    %2803 = vmatmul.bf16.gmra.mxu0 %v2775
    %v2804 = vpop.f32.mrf.mxu0
    %v2805 = vadd.f32 0.0, %v2804
    %v2806 = vpop.f32.mrf.mxu0
    %v2807 = vadd.f32 0.0, %v2806
    %2808 = vmatmul.bf16.gmra.mxu0 %v2778
    %v2809 = vpop.f32.mrf.mxu0
    %v2810 = vadd.f32 0.0, %v2809
    %v2811 = vpop.f32.mrf.mxu0
    %2812 = vdwg.mxu0
    %2813 = vmatpush.bf16.msra.mxu0 0
    %2814 = vmatpush.bf16.msra.mxu0 0
    %2815 = vmatpush.bf16.msra.mxu0 0
    %2816 = vmatpush.bf16.msra.mxu0 %v2748
    %2817 = vmatpush.bf16.msra.mxu0 %v2745
    %2818 = vmatpush.bf16.msra.mxu0 %v2742
    %2819 = vmatpush.bf16.msra.mxu0 %v2739
    %2820 = vmatpush.bf16.msra.mxu0 %v2736
    %2821 = vmatmul.bf16.gmra.mxu0 %v2766
    %v2822 = vpop.f32.mrf.mxu0
    %v2823 = vadd.f32 0.0, %v2822
    %v2824 = vpop.f32.mrf.mxu0
    %v2825 = vadd.f32 0.0, %v2824
    %2826 = vmatmul.bf16.gmra.mxu0 %v2769
    %v2827 = vpop.f32.mrf.mxu0
    %v2828 = vadd.f32 0.0, %v2827
    %v2829 = vpop.f32.mrf.mxu0
    %v2830 = vadd.f32 0.0, %v2829
    %2831 = vmatmul.bf16.gmra.mxu0 %v2772
    %v2832 = vpop.f32.mrf.mxu0
    %v2833 = vadd.f32 0.0, %v2832
    %v2834 = vpop.f32.mrf.mxu0
    %v2835 = vadd.f32 0.0, %v2834
    %2836 = vmatmul.bf16.gmra.mxu0 %v2775
    %v2837 = vpop.f32.mrf.mxu0
    %v2838 = vadd.f32 0.0, %v2837
    %v2839 = vpop.f32.mrf.mxu0
    %v2840 = vadd.f32 0.0, %v2839
    %2841 = vmatmul.bf16.gmra.mxu0 %v2778
    %v2842 = vpop.f32.mrf.mxu0
    %v2843 = vadd.f32 0.0, %v2842
    %v2844 = vpop.f32.mrf.mxu0
    %2845 = vdwg.mxu0
    %2846 = vmatpush.bf16.msra.mxu0 0
    %2847 = vmatpush.bf16.msra.mxu0 0
    %2848 = vmatpush.bf16.msra.mxu0 0
    %2849 = vmatpush.bf16.msra.mxu0 %v2749
    %2850 = vmatpush.bf16.msra.mxu0 %v2746
    %2851 = vmatpush.bf16.msra.mxu0 %v2743
    %2852 = vmatpush.bf16.msra.mxu0 %v2740
    %2853 = vmatpush.bf16.msra.mxu0 %v2737
    %2854 = vmatmul.bf16.gmra.mxu0 %v2766
    %v2855 = vpop.f32.mrf.mxu0
    %v2856 = vadd.f32 0.0, %v2855
    %v2857 = vpop.f32.mrf.mxu0
    %v2858 = vadd.f32 0.0, %v2857
    %2859 = vmatmul.bf16.gmra.mxu0 %v2769
    %v2860 = vpop.f32.mrf.mxu0
    %v2861 = vadd.f32 0.0, %v2860
    %v2862 = vpop.f32.mrf.mxu0
    %v2863 = vadd.f32 0.0, %v2862
    %2864 = vmatmul.bf16.gmra.mxu0 %v2772
    %v2865 = vpop.f32.mrf.mxu0
    %v2866 = vadd.f32 0.0, %v2865
    %v2867 = vpop.f32.mrf.mxu0
    %v2868 = vadd.f32 0.0, %v2867
    %2869 = vmatmul.bf16.gmra.mxu0 %v2775
    %v2870 = vpop.f32.mrf.mxu0
    %v2871 = vadd.f32 0.0, %v2870
    %v2872 = vpop.f32.mrf.mxu0
    %v2873 = vadd.f32 0.0, %v2872
    %2874 = vmatmul.bf16.gmra.mxu0 %v2778
    %v2875 = vpop.f32.mrf.mxu0
    %v2876 = vadd.f32 0.0, %v2875
    %v2877 = vpop.f32.mrf.mxu0
    %2878 = vdwg.mxu0
    %v2879 = vadd.f32 %v2429, %v2790
    %v2880 = vadd.f32 %v2430, %v2823
    %v2881 = vadd.f32 %v2431, %v2856
    %v2882 = vadd.f32 %v2432, %v2792
    %v2883 = vadd.f32 %v2433, %v2825
    %v2884 = vadd.f32 %v2434, %v2858
    %v2885 = vadd.f32 %v2435, %v2795
    %v2886 = vadd.f32 %v2436, %v2828
    %v2887 = vadd.f32 %v2437, %v2861
    %v2888 = vadd.f32 %v2438, %v2797
    %v2889 = vadd.f32 %v2439, %v2830
    %v2890 = vadd.f32 %v2440, %v2863
    %v2891 = vadd.f32 %v2441, %v2800
    %v2892 = vadd.f32 %v2442, %v2833
    %v2893 = vadd.f32 %v2443, %v2866
    %v2894 = vadd.f32 %v2444, %v2802
    %v2895 = vadd.f32 %v2445, %v2835
    %v2896 = vadd.f32 %v2446, %v2868
    %v2897 = vadd.f32 %v2447, %v2805
    %v2898 = vadd.f32 %v2448, %v2838
    %v2899 = vadd.f32 %v2449, %v2871
    %v2900 = vadd.f32 %v2450, %v2807
    %v2901 = vadd.f32 %v2451, %v2840
    %v2902 = vadd.f32 %v2452, %v2873
    %v2903 = vadd.f32 %v2453, %v2810
    %v2904 = vadd.f32 %v2454, %v2843
    %v2905 = vadd.f32 %v2455, %v2876
    %s2906 = scalar_lea.vmem [#allocation3], 648
    %v2907 = vld [vmem:[%s2906] sm:$0xff]
    %v2908 = vld [vmem:[%s2906 + $0x8] sm:$0xf]
    %v2909 = vld [vmem:[%s2906 + $0xc] sm:$0xff]
    %v2910 = vld [vmem:[%s2906 + $0x14] sm:$0xf]
    %v2911 = vld [vmem:[%s2906 + $0x18] sm:$0xff]
    %v2912 = vld [vmem:[%s2906 + $0x20] sm:$0xf]
    %v2913 = vld [vmem:[%s2906 + $0x24] sm:$0xff]
    %v2914 = vld [vmem:[%s2906 + $0x2c] sm:$0xf]
    %v2915 = vld [vmem:[%s2906 + $0x30] sm:$0xff]
    %v2916 = vld [vmem:[%s2906 + $0x38] sm:$0xf]
    %v2917 = vld [vmem:[%s2906 + $0x3c] sm:$0xff]
    %v2918 = vld [vmem:[%s2906 + $0x44] sm:$0xf]
    %v2919 = vld [vmem:[%s2906 + $0x48] sm:$0xff]
    %v2920 = vld [vmem:[%s2906 + $0x50] sm:$0xf]
    %v2921 = vld [vmem:[%s2906 + $0x54] sm:$0xff]
    %v2922 = vld [vmem:[%s2906 + $0x5c] sm:$0xf]
    %v2923 = vld [vmem:[%s2906 + $0x60] sm:$0xff]
    %v2924 = vld [vmem:[%s2906 + $0x68] sm:$0xf]
    %v2943 = vunpack.c.l.b16 %v2907
    %v2944 = vunpack.c.h.b16 %v2907
    %v2945 = vunpack.c.l.b16 %v2908
    %v2946 = vunpack.c.l.b16 %v2909
    %v2947 = vunpack.c.h.b16 %v2909
    %v2948 = vunpack.c.l.b16 %v2910
    %v2949 = vunpack.c.l.b16 %v2911
    %v2950 = vunpack.c.h.b16 %v2911
    %v2951 = vunpack.c.l.b16 %v2912
    %v2952 = vunpack.c.l.b16 %v2913
    %v2953 = vunpack.c.h.b16 %v2913
    %v2954 = vunpack.c.l.b16 %v2914
    %v2955 = vunpack.c.l.b16 %v2915
    %v2956 = vunpack.c.h.b16 %v2915
    %v2957 = vunpack.c.l.b16 %v2916
    %v2958 = vunpack.c.l.b16 %v2917
    %v2959 = vunpack.c.h.b16 %v2917
    %v2960 = vunpack.c.l.b16 %v2918
    %v2961 = vunpack.c.l.b16 %v2919
    %v2962 = vunpack.c.h.b16 %v2919
    %v2963 = vunpack.c.l.b16 %v2920
    %v2964 = vunpack.c.l.b16 %v2921
    %v2965 = vunpack.c.h.b16 %v2921
    %v2966 = vunpack.c.l.b16 %v2922
    %v2967 = vunpack.c.l.b16 %v2923
    %v2968 = vunpack.c.h.b16 %v2923
    %v2969 = vunpack.c.l.b16 %v2924
    %v2970 = vpack.c.b16 %v2946, %v2943
    %v2971 = vpack.c.b16 %v2947, %v2944
    %v2972 = vpack.c.b16 %v2948, %v2945
    %v2973 = vpack.c.b16 %v2952, %v2949
    %v2974 = vpack.c.b16 %v2953, %v2950
    %v2975 = vpack.c.b16 %v2954, %v2951
    %v2976 = vpack.c.b16 %v2958, %v2955
    %v2977 = vpack.c.b16 %v2959, %v2956
    %v2978 = vpack.c.b16 %v2960, %v2957
    %v2979 = vpack.c.b16 %v2964, %v2961
    %v2980 = vpack.c.b16 %v2965, %v2962
    %v2981 = vpack.c.b16 %v2966, %v2963
    %v2982 = vpack.c.b16 %v2967, %v2967
    %v2983 = vpack.c.b16 %v2968, %v2968
    %v2984 = vpack.c.b16 %v2969, %v2969
    %v2996 = vsel %vm348, %v2972, 0
    %v2999 = vsel %vm348, %v2975, 0
    %v3002 = vsel %vm348, %v2978, 0
    %v3005 = vsel %vm348, %v2981, 0
    %v3008 = vsel %vm348, %v2984, 0
    %3010 = vmatpush.bf16.msra.mxu0 %v315
    %3011 = vmatpush.bf16.msra.mxu0 %v314
    %3012 = vmatpush.bf16.msra.mxu0 %v313
    %3013 = vmatpush.bf16.msra.mxu0 %v312
    %3014 = vmatpush.bf16.msra.mxu0 %v311
    %3015 = vmatpush.bf16.msra.mxu0 %v310
    %3016 = vmatpush.bf16.msra.mxu0 %v309
    %3017 = vmatpush.bf16.msra.mxu0 %v308
    %3018 = vmatmul.bf16.gmra.mxu0 %v2970
    %v3019 = vpop.f32.mrf.mxu0
    %v3020 = vadd.f32 0.0, %v3019
    %v3021 = vpop.f32.mrf.mxu0
    %v3022 = vadd.f32 0.0, %v3021
    %3023 = vmatmul.bf16.gmra.mxu0 %v2973
    %v3024 = vpop.f32.mrf.mxu0
    %v3025 = vadd.f32 0.0, %v3024
    %v3026 = vpop.f32.mrf.mxu0
    %v3027 = vadd.f32 0.0, %v3026
    %3028 = vmatmul.bf16.gmra.mxu0 %v2976
    %v3029 = vpop.f32.mrf.mxu0
    %v3030 = vadd.f32 0.0, %v3029
    %v3031 = vpop.f32.mrf.mxu0
    %v3032 = vadd.f32 0.0, %v3031
    %3033 = vmatmul.bf16.gmra.mxu0 %v2979
    %v3034 = vpop.f32.mrf.mxu0
    %v3035 = vadd.f32 0.0, %v3034
    %v3036 = vpop.f32.mrf.mxu0
    %v3037 = vadd.f32 0.0, %v3036
    %3038 = vmatmul.bf16.gmra.mxu0 %v2982
    %v3039 = vpop.f32.mrf.mxu0
    %v3040 = vadd.f32 0.0, %v3039
    %v3041 = vpop.f32.mrf.mxu0
    %3042 = vdwg.mxu0
    %3043 = vmatpush.bf16.msra.mxu0 %v323
    %3044 = vmatpush.bf16.msra.mxu0 %v322
    %3045 = vmatpush.bf16.msra.mxu0 %v321
    %3046 = vmatpush.bf16.msra.mxu0 %v320
    %3047 = vmatpush.bf16.msra.mxu0 %v319
    %3048 = vmatpush.bf16.msra.mxu0 %v318
    %3049 = vmatpush.bf16.msra.mxu0 %v317
    %3050 = vmatpush.bf16.msra.mxu0 %v316
    %3051 = vmatmul.bf16.gmra.mxu0 %v2971
    %v3052 = vpop.f32.mrf.mxu0
    %v3053 = vadd.f32 %v3020, %v3052
    %v3054 = vpop.f32.mrf.mxu0
    %v3055 = vadd.f32 %v3022, %v3054
    %3056 = vmatmul.bf16.gmra.mxu0 %v2974
    %v3057 = vpop.f32.mrf.mxu0
    %v3058 = vadd.f32 %v3025, %v3057
    %v3059 = vpop.f32.mrf.mxu0
    %v3060 = vadd.f32 %v3027, %v3059
    %3061 = vmatmul.bf16.gmra.mxu0 %v2977
    %v3062 = vpop.f32.mrf.mxu0
    %v3063 = vadd.f32 %v3030, %v3062
    %v3064 = vpop.f32.mrf.mxu0
    %v3065 = vadd.f32 %v3032, %v3064
    %3066 = vmatmul.bf16.gmra.mxu0 %v2980
    %v3067 = vpop.f32.mrf.mxu0
    %v3068 = vadd.f32 %v3035, %v3067
    %v3069 = vpop.f32.mrf.mxu0
    %v3070 = vadd.f32 %v3037, %v3069
    %3071 = vmatmul.bf16.gmra.mxu0 %v2983
    %v3072 = vpop.f32.mrf.mxu0
    %v3073 = vadd.f32 %v3040, %v3072
    %v3074 = vpop.f32.mrf.mxu0
    %3075 = vdwg.mxu0
    %3076 = vmatpush.bf16.msra.mxu0 0
    %3077 = vmatpush.bf16.msra.mxu0 0
    %3078 = vmatpush.bf16.msra.mxu0 0
    %3079 = vmatpush.bf16.msra.mxu0 0
    %3080 = vmatpush.bf16.msra.mxu0 %v327
    %3081 = vmatpush.bf16.msra.mxu0 %v326
    %3082 = vmatpush.bf16.msra.mxu0 %v325
    %3083 = vmatpush.bf16.msra.mxu0 %v324
    %3084 = vmatmul.bf16.gmra.mxu0 %v2996
    %v3085 = vpop.f32.mrf.mxu0
    %v3086 = vadd.f32 %v3053, %v3085
    %v3087 = vpop.f32.mrf.mxu0
    %v3088 = vadd.f32 %v3055, %v3087
    %3089 = vmatmul.bf16.gmra.mxu0 %v2999
    %v3090 = vpop.f32.mrf.mxu0
    %v3091 = vadd.f32 %v3058, %v3090
    %v3092 = vpop.f32.mrf.mxu0
    %v3093 = vadd.f32 %v3060, %v3092
    %3094 = vmatmul.bf16.gmra.mxu0 %v3002
    %v3095 = vpop.f32.mrf.mxu0
    %v3096 = vadd.f32 %v3063, %v3095
    %v3097 = vpop.f32.mrf.mxu0
    %v3098 = vadd.f32 %v3065, %v3097
    %3099 = vmatmul.bf16.gmra.mxu0 %v3005
    %v3100 = vpop.f32.mrf.mxu0
    %v3101 = vadd.f32 %v3068, %v3100
    %v3102 = vpop.f32.mrf.mxu0
    %v3103 = vadd.f32 %v3070, %v3102
    %3104 = vmatmul.bf16.gmra.mxu0 %v3008
    %v3105 = vpop.f32.mrf.mxu0
    %v3106 = vadd.f32 %v3073, %v3105
    %v3107 = vpop.f32.mrf.mxu0
    %3108 = vdwg.mxu0
    %v3109 = vpack.c.bf16 %v3088, %v3086
    %v3110 = vpack.c.bf16 %v3093, %v3091
    %v3111 = vpack.c.bf16 %v3098, %v3096
    %v3112 = vpack.c.bf16 %v3103, %v3101
    %v3113 = vpack.c.bf16 %v3106, %v3106
    %s3114 = scalar_lea.vmem [#allocation5], 720
    %v3115 = vld [vmem:[%s3114] sm:$0xff]
    %v3116 = vld [vmem:[%s3114 + $0x8] sm:$0xf]
    %v3117 = vld [vmem:[%s3114 + $0xc] sm:$0xff]
    %v3118 = vld [vmem:[%s3114 + $0x14] sm:$0xf]
    %v3119 = vld [vmem:[%s3114 + $0x18] sm:$0xff]
    %v3120 = vld [vmem:[%s3114 + $0x20] sm:$0xf]
    %v3121 = vld [vmem:[%s3114 + $0x24] sm:$0xff]
    %v3122 = vld [vmem:[%s3114 + $0x2c] sm:$0xf]
    %v3123 = vld [vmem:[%s3114 + $0x30] sm:$0xff]
    %v3124 = vld [vmem:[%s3114 + $0x38] sm:$0xf]
    %v3125 = vld [vmem:[%s3114 + $0x3c] sm:$0xff]
    %v3126 = vld [vmem:[%s3114 + $0x44] sm:$0xf]
    %v3127 = vld [vmem:[%s3114 + $0x48] sm:$0xff]
    %v3128 = vld [vmem:[%s3114 + $0x50] sm:$0xf]
    %v3129 = vld [vmem:[%s3114 + $0x54] sm:$0xff]
    %v3130 = vld [vmem:[%s3114 + $0x5c] sm:$0xf]
    %v3131 = vld [vmem:[%s3114 + $0x60] sm:$0xff]
    %v3132 = vld [vmem:[%s3114 + $0x68] sm:$0xf]
    %v3133 = vld [vmem:[%s3114 + $0x6c] sm:$0xff]
    %v3134 = vld [vmem:[%s3114 + $0x74] sm:$0xf]
    %v3155 = vunpack.c.l.b16 %v3115
    %v3156 = vunpack.c.h.b16 %v3115
    %v3157 = vunpack.c.l.b16 %v3116
    %v3158 = vunpack.c.l.b16 %v3117
    %v3159 = vunpack.c.h.b16 %v3117
    %v3160 = vunpack.c.l.b16 %v3118
    %v3161 = vunpack.c.l.b16 %v3119
    %v3162 = vunpack.c.h.b16 %v3119
    %v3163 = vunpack.c.l.b16 %v3120
    %v3164 = vunpack.c.l.b16 %v3121
    %v3165 = vunpack.c.h.b16 %v3121
    %v3166 = vunpack.c.l.b16 %v3122
    %v3167 = vunpack.c.l.b16 %v3123
    %v3168 = vunpack.c.h.b16 %v3123
    %v3169 = vunpack.c.l.b16 %v3124
    %v3170 = vunpack.c.l.b16 %v3125
    %v3171 = vunpack.c.h.b16 %v3125
    %v3172 = vunpack.c.l.b16 %v3126
    %v3173 = vunpack.c.l.b16 %v3127
    %v3174 = vunpack.c.h.b16 %v3127
    %v3175 = vunpack.c.l.b16 %v3128
    %v3176 = vunpack.c.l.b16 %v3129
    %v3177 = vunpack.c.h.b16 %v3129
    %v3178 = vunpack.c.l.b16 %v3130
    %v3179 = vunpack.c.l.b16 %v3131
    %v3180 = vunpack.c.h.b16 %v3131
    %v3181 = vunpack.c.l.b16 %v3132
    %v3182 = vunpack.c.l.b16 %v3133
    %v3183 = vunpack.c.h.b16 %v3133
    %v3184 = vunpack.c.l.b16 %v3134
    %v3185 = vpack.c.b16 %v3158, %v3155
    %v3186 = vpack.c.b16 %v3159, %v3156
    %v3187 = vpack.c.b16 %v3160, %v3157
    %v3188 = vpack.c.b16 %v3164, %v3161
    %v3189 = vpack.c.b16 %v3165, %v3162
    %v3190 = vpack.c.b16 %v3166, %v3163
    %v3191 = vpack.c.b16 %v3170, %v3167
    %v3192 = vpack.c.b16 %v3171, %v3168
    %v3193 = vpack.c.b16 %v3172, %v3169
    %v3194 = vpack.c.b16 %v3176, %v3173
    %v3195 = vpack.c.b16 %v3177, %v3174
    %v3196 = vpack.c.b16 %v3178, %v3175
    %v3197 = vpack.c.b16 %v3182, %v3179
    %v3198 = vpack.c.b16 %v3183, %v3180
    %v3199 = vpack.c.b16 %v3184, %v3181
    %v3216 = vsel %vm797, %v3109, 0
    %v3219 = vsel %vm797, %v3110, 0
    %v3222 = vsel %vm797, %v3111, 0
    %v3225 = vsel %vm797, %v3112, 0
    %v3228 = vsel %vm797, %v3113, 0
    %3230 = vmatpush.bf16.msra.mxu0 0
    %3231 = vmatpush.bf16.msra.mxu0 0
    %3232 = vmatpush.bf16.msra.mxu0 0
    %3233 = vmatpush.bf16.msra.mxu0 %v3197
    %3234 = vmatpush.bf16.msra.mxu0 %v3194
    %3235 = vmatpush.bf16.msra.mxu0 %v3191
    %3236 = vmatpush.bf16.msra.mxu0 %v3188
    %3237 = vmatpush.bf16.msra.mxu0 %v3185
    %3238 = vmatmul.bf16.gmra.mxu0 %v3216
    %v3239 = vpop.f32.mrf.mxu0
    %v3240 = vadd.f32 0.0, %v3239
    %v3241 = vpop.f32.mrf.mxu0
    %v3242 = vadd.f32 0.0, %v3241
    %3243 = vmatmul.bf16.gmra.mxu0 %v3219
    %v3244 = vpop.f32.mrf.mxu0
    %v3245 = vadd.f32 0.0, %v3244
    %v3246 = vpop.f32.mrf.mxu0
    %v3247 = vadd.f32 0.0, %v3246
    %3248 = vmatmul.bf16.gmra.mxu0 %v3222
    %v3249 = vpop.f32.mrf.mxu0
    %v3250 = vadd.f32 0.0, %v3249
    %v3251 = vpop.f32.mrf.mxu0
    %v3252 = vadd.f32 0.0, %v3251
    %3253 = vmatmul.bf16.gmra.mxu0 %v3225
    %v3254 = vpop.f32.mrf.mxu0
    %v3255 = vadd.f32 0.0, %v3254
    %v3256 = vpop.f32.mrf.mxu0
    %v3257 = vadd.f32 0.0, %v3256
    %3258 = vmatmul.bf16.gmra.mxu0 %v3228
    %v3259 = vpop.f32.mrf.mxu0
    %v3260 = vadd.f32 0.0, %v3259
    %v3261 = vpop.f32.mrf.mxu0
    %3262 = vdwg.mxu0
    %3263 = vmatpush.bf16.msra.mxu0 0
    %3264 = vmatpush.bf16.msra.mxu0 0
    %3265 = vmatpush.bf16.msra.mxu0 0
    %3266 = vmatpush.bf16.msra.mxu0 %v3198
    %3267 = vmatpush.bf16.msra.mxu0 %v3195
    %3268 = vmatpush.bf16.msra.mxu0 %v3192
    %3269 = vmatpush.bf16.msra.mxu0 %v3189
    %3270 = vmatpush.bf16.msra.mxu0 %v3186
    %3271 = vmatmul.bf16.gmra.mxu0 %v3216
    %v3272 = vpop.f32.mrf.mxu0
    %v3273 = vadd.f32 0.0, %v3272
    %v3274 = vpop.f32.mrf.mxu0
    %v3275 = vadd.f32 0.0, %v3274
    %3276 = vmatmul.bf16.gmra.mxu0 %v3219
    %v3277 = vpop.f32.mrf.mxu0
    %v3278 = vadd.f32 0.0, %v3277
    %v3279 = vpop.f32.mrf.mxu0
    %v3280 = vadd.f32 0.0, %v3279
    %3281 = vmatmul.bf16.gmra.mxu0 %v3222
    %v3282 = vpop.f32.mrf.mxu0
    %v3283 = vadd.f32 0.0, %v3282
    %v3284 = vpop.f32.mrf.mxu0
    %v3285 = vadd.f32 0.0, %v3284
    %3286 = vmatmul.bf16.gmra.mxu0 %v3225
    %v3287 = vpop.f32.mrf.mxu0
    %v3288 = vadd.f32 0.0, %v3287
    %v3289 = vpop.f32.mrf.mxu0
    %v3290 = vadd.f32 0.0, %v3289
    %3291 = vmatmul.bf16.gmra.mxu0 %v3228
    %v3292 = vpop.f32.mrf.mxu0
    %v3293 = vadd.f32 0.0, %v3292
    %v3294 = vpop.f32.mrf.mxu0
    %3295 = vdwg.mxu0
    %3296 = vmatpush.bf16.msra.mxu0 0
    %3297 = vmatpush.bf16.msra.mxu0 0
    %3298 = vmatpush.bf16.msra.mxu0 0
    %3299 = vmatpush.bf16.msra.mxu0 %v3199
    %3300 = vmatpush.bf16.msra.mxu0 %v3196
    %3301 = vmatpush.bf16.msra.mxu0 %v3193
    %3302 = vmatpush.bf16.msra.mxu0 %v3190
    %3303 = vmatpush.bf16.msra.mxu0 %v3187
    %3304 = vmatmul.bf16.gmra.mxu0 %v3216
    %v3305 = vpop.f32.mrf.mxu0
    %v3306 = vadd.f32 0.0, %v3305
    %v3307 = vpop.f32.mrf.mxu0
    %v3308 = vadd.f32 0.0, %v3307
    %3309 = vmatmul.bf16.gmra.mxu0 %v3219
    %v3310 = vpop.f32.mrf.mxu0
    %v3311 = vadd.f32 0.0, %v3310
    %v3312 = vpop.f32.mrf.mxu0
    %v3313 = vadd.f32 0.0, %v3312
    %3314 = vmatmul.bf16.gmra.mxu0 %v3222
    %v3315 = vpop.f32.mrf.mxu0
    %v3316 = vadd.f32 0.0, %v3315
    %v3317 = vpop.f32.mrf.mxu0
    %v3318 = vadd.f32 0.0, %v3317
    %3319 = vmatmul.bf16.gmra.mxu0 %v3225
    %v3320 = vpop.f32.mrf.mxu0
    %v3321 = vadd.f32 0.0, %v3320
    %v3322 = vpop.f32.mrf.mxu0
    %v3323 = vadd.f32 0.0, %v3322
    %3324 = vmatmul.bf16.gmra.mxu0 %v3228
    %v3325 = vpop.f32.mrf.mxu0
    %v3326 = vadd.f32 0.0, %v3325
    %v3327 = vpop.f32.mrf.mxu0
    %3328 = vdwg.mxu0
    %v3329 = vadd.f32 %v2879, %v3240
    %v3330 = vadd.f32 %v2880, %v3273
    %v3331 = vadd.f32 %v2881, %v3306
    %v3332 = vadd.f32 %v2882, %v3242
    %v3333 = vadd.f32 %v2883, %v3275
    %v3334 = vadd.f32 %v2884, %v3308
    %v3335 = vadd.f32 %v2885, %v3245
    %v3336 = vadd.f32 %v2886, %v3278
    %v3337 = vadd.f32 %v2887, %v3311
    %v3338 = vadd.f32 %v2888, %v3247
    %v3339 = vadd.f32 %v2889, %v3280
    %v3340 = vadd.f32 %v2890, %v3313
    %v3341 = vadd.f32 %v2891, %v3250
    %v3342 = vadd.f32 %v2892, %v3283
    %v3343 = vadd.f32 %v2893, %v3316
    %v3344 = vadd.f32 %v2894, %v3252
    %v3345 = vadd.f32 %v2895, %v3285
    %v3346 = vadd.f32 %v2896, %v3318
    %v3347 = vadd.f32 %v2897, %v3255
    %v3348 = vadd.f32 %v2898, %v3288
    %v3349 = vadd.f32 %v2899, %v3321
    %v3350 = vadd.f32 %v2900, %v3257
    %v3351 = vadd.f32 %v2901, %v3290
    %v3352 = vadd.f32 %v2902, %v3323
    %v3353 = vadd.f32 %v2903, %v3260
    %v3354 = vadd.f32 %v2904, %v3293
    %v3355 = vadd.f32 %v2905, %v3326
    %s3356 = scalar_lea.vmem [#allocation3], 756
    %v3357 = vld [vmem:[%s3356] sm:$0xff]
    %v3358 = vld [vmem:[%s3356 + $0x8] sm:$0xf]
    %v3359 = vld [vmem:[%s3356 + $0xc] sm:$0xff]
    %v3360 = vld [vmem:[%s3356 + $0x14] sm:$0xf]
    %v3361 = vld [vmem:[%s3356 + $0x18] sm:$0xff]
    %v3362 = vld [vmem:[%s3356 + $0x20] sm:$0xf]
    %v3363 = vld [vmem:[%s3356 + $0x24] sm:$0xff]
    %v3364 = vld [vmem:[%s3356 + $0x2c] sm:$0xf]
    %v3365 = vld [vmem:[%s3356 + $0x30] sm:$0xff]
    %v3366 = vld [vmem:[%s3356 + $0x38] sm:$0xf]
    %v3367 = vld [vmem:[%s3356 + $0x3c] sm:$0xff]
    %v3368 = vld [vmem:[%s3356 + $0x44] sm:$0xf]
    %v3369 = vld [vmem:[%s3356 + $0x48] sm:$0xff]
    %v3370 = vld [vmem:[%s3356 + $0x50] sm:$0xf]
    %v3371 = vld [vmem:[%s3356 + $0x54] sm:$0xff]
    %v3372 = vld [vmem:[%s3356 + $0x5c] sm:$0xf]
    %v3373 = vld [vmem:[%s3356 + $0x60] sm:$0xff]
    %v3374 = vld [vmem:[%s3356 + $0x68] sm:$0xf]
    %v3393 = vunpack.c.l.b16 %v3357
    %v3394 = vunpack.c.h.b16 %v3357
    %v3395 = vunpack.c.l.b16 %v3358
    %v3396 = vunpack.c.l.b16 %v3359
    %v3397 = vunpack.c.h.b16 %v3359
    %v3398 = vunpack.c.l.b16 %v3360
    %v3399 = vunpack.c.l.b16 %v3361
    %v3400 = vunpack.c.h.b16 %v3361
    %v3401 = vunpack.c.l.b16 %v3362
    %v3402 = vunpack.c.l.b16 %v3363
    %v3403 = vunpack.c.h.b16 %v3363
    %v3404 = vunpack.c.l.b16 %v3364
    %v3405 = vunpack.c.l.b16 %v3365
    %v3406 = vunpack.c.h.b16 %v3365
    %v3407 = vunpack.c.l.b16 %v3366
    %v3408 = vunpack.c.l.b16 %v3367
    %v3409 = vunpack.c.h.b16 %v3367
    %v3410 = vunpack.c.l.b16 %v3368
    %v3411 = vunpack.c.l.b16 %v3369
    %v3412 = vunpack.c.h.b16 %v3369
    %v3413 = vunpack.c.l.b16 %v3370
    %v3414 = vunpack.c.l.b16 %v3371
    %v3415 = vunpack.c.h.b16 %v3371
    %v3416 = vunpack.c.l.b16 %v3372
    %v3417 = vunpack.c.l.b16 %v3373
    %v3418 = vunpack.c.h.b16 %v3373
    %v3419 = vunpack.c.l.b16 %v3374
    %v3420 = vpack.c.b16 %v3396, %v3393
    %v3421 = vpack.c.b16 %v3397, %v3394
    %v3422 = vpack.c.b16 %v3398, %v3395
    %v3423 = vpack.c.b16 %v3402, %v3399
    %v3424 = vpack.c.b16 %v3403, %v3400
    %v3425 = vpack.c.b16 %v3404, %v3401
    %v3426 = vpack.c.b16 %v3408, %v3405
    %v3427 = vpack.c.b16 %v3409, %v3406
    %v3428 = vpack.c.b16 %v3410, %v3407
    %v3429 = vpack.c.b16 %v3414, %v3411
    %v3430 = vpack.c.b16 %v3415, %v3412
    %v3431 = vpack.c.b16 %v3416, %v3413
    %v3432 = vpack.c.b16 %v3417, %v3417
    %v3433 = vpack.c.b16 %v3418, %v3418
    %v3434 = vpack.c.b16 %v3419, %v3419
    %v3446 = vsel %vm348, %v3422, 0
    %v3449 = vsel %vm348, %v3425, 0
    %v3452 = vsel %vm348, %v3428, 0
    %v3455 = vsel %vm348, %v3431, 0
    %v3458 = vsel %vm348, %v3434, 0
    %3460 = vmatpush.bf16.msra.mxu0 %v315
    %3461 = vmatpush.bf16.msra.mxu0 %v314
    %3462 = vmatpush.bf16.msra.mxu0 %v313
    %3463 = vmatpush.bf16.msra.mxu0 %v312
    %3464 = vmatpush.bf16.msra.mxu0 %v311
    %3465 = vmatpush.bf16.msra.mxu0 %v310
    %3466 = vmatpush.bf16.msra.mxu0 %v309
    %3467 = vmatpush.bf16.msra.mxu0 %v308
    %3468 = vmatmul.bf16.gmra.mxu0 %v3420
    %v3469 = vpop.f32.mrf.mxu0
    %v3470 = vadd.f32 0.0, %v3469
    %v3471 = vpop.f32.mrf.mxu0
    %v3472 = vadd.f32 0.0, %v3471
    %3473 = vmatmul.bf16.gmra.mxu0 %v3423
    %v3474 = vpop.f32.mrf.mxu0
    %v3475 = vadd.f32 0.0, %v3474
    %v3476 = vpop.f32.mrf.mxu0
    %v3477 = vadd.f32 0.0, %v3476
    %3478 = vmatmul.bf16.gmra.mxu0 %v3426
    %v3479 = vpop.f32.mrf.mxu0
    %v3480 = vadd.f32 0.0, %v3479
    %v3481 = vpop.f32.mrf.mxu0
    %v3482 = vadd.f32 0.0, %v3481
    %3483 = vmatmul.bf16.gmra.mxu0 %v3429
    %v3484 = vpop.f32.mrf.mxu0
    %v3485 = vadd.f32 0.0, %v3484
    %v3486 = vpop.f32.mrf.mxu0
    %v3487 = vadd.f32 0.0, %v3486
    %3488 = vmatmul.bf16.gmra.mxu0 %v3432
    %v3489 = vpop.f32.mrf.mxu0
    %v3490 = vadd.f32 0.0, %v3489
    %v3491 = vpop.f32.mrf.mxu0
    %3492 = vdwg.mxu0
    %3493 = vmatpush.bf16.msra.mxu0 %v323
    %3494 = vmatpush.bf16.msra.mxu0 %v322
    %3495 = vmatpush.bf16.msra.mxu0 %v321
    %3496 = vmatpush.bf16.msra.mxu0 %v320
    %3497 = vmatpush.bf16.msra.mxu0 %v319
    %3498 = vmatpush.bf16.msra.mxu0 %v318
    %3499 = vmatpush.bf16.msra.mxu0 %v317
    %3500 = vmatpush.bf16.msra.mxu0 %v316
    %3501 = vmatmul.bf16.gmra.mxu0 %v3421
    %v3502 = vpop.f32.mrf.mxu0
    %v3503 = vadd.f32 %v3470, %v3502
    %v3504 = vpop.f32.mrf.mxu0
    %v3505 = vadd.f32 %v3472, %v3504
    %3506 = vmatmul.bf16.gmra.mxu0 %v3424
    %v3507 = vpop.f32.mrf.mxu0
    %v3508 = vadd.f32 %v3475, %v3507
    %v3509 = vpop.f32.mrf.mxu0
    %v3510 = vadd.f32 %v3477, %v3509
    %3511 = vmatmul.bf16.gmra.mxu0 %v3427
    %v3512 = vpop.f32.mrf.mxu0
    %v3513 = vadd.f32 %v3480, %v3512
    %v3514 = vpop.f32.mrf.mxu0
    %v3515 = vadd.f32 %v3482, %v3514
    %3516 = vmatmul.bf16.gmra.mxu0 %v3430
    %v3517 = vpop.f32.mrf.mxu0
    %v3518 = vadd.f32 %v3485, %v3517
    %v3519 = vpop.f32.mrf.mxu0
    %v3520 = vadd.f32 %v3487, %v3519
    %3521 = vmatmul.bf16.gmra.mxu0 %v3433
    %v3522 = vpop.f32.mrf.mxu0
    %v3523 = vadd.f32 %v3490, %v3522
    %v3524 = vpop.f32.mrf.mxu0
    %3525 = vdwg.mxu0
    %3526 = vmatpush.bf16.msra.mxu0 0
    %3527 = vmatpush.bf16.msra.mxu0 0
    %3528 = vmatpush.bf16.msra.mxu0 0
    %3529 = vmatpush.bf16.msra.mxu0 0
    %3530 = vmatpush.bf16.msra.mxu0 %v327
    %3531 = vmatpush.bf16.msra.mxu0 %v326
    %3532 = vmatpush.bf16.msra.mxu0 %v325
    %3533 = vmatpush.bf16.msra.mxu0 %v324
    %3534 = vmatmul.bf16.gmra.mxu0 %v3446
    %v3535 = vpop.f32.mrf.mxu0
    %v3536 = vadd.f32 %v3503, %v3535
    %v3537 = vpop.f32.mrf.mxu0
    %v3538 = vadd.f32 %v3505, %v3537
    %3539 = vmatmul.bf16.gmra.mxu0 %v3449
    %v3540 = vpop.f32.mrf.mxu0
    %v3541 = vadd.f32 %v3508, %v3540
    %v3542 = vpop.f32.mrf.mxu0
    %v3543 = vadd.f32 %v3510, %v3542
    %3544 = vmatmul.bf16.gmra.mxu0 %v3452
    %v3545 = vpop.f32.mrf.mxu0
    %v3546 = vadd.f32 %v3513, %v3545
    %v3547 = vpop.f32.mrf.mxu0
    %v3548 = vadd.f32 %v3515, %v3547
    %3549 = vmatmul.bf16.gmra.mxu0 %v3455
    %v3550 = vpop.f32.mrf.mxu0
    %v3551 = vadd.f32 %v3518, %v3550
    %v3552 = vpop.f32.mrf.mxu0
    %v3553 = vadd.f32 %v3520, %v3552
    %3554 = vmatmul.bf16.gmra.mxu0 %v3458
    %v3555 = vpop.f32.mrf.mxu0
    %v3556 = vadd.f32 %v3523, %v3555
    %v3557 = vpop.f32.mrf.mxu0
    %3558 = vdwg.mxu0
    %v3559 = vpack.c.bf16 %v3538, %v3536
    %v3560 = vpack.c.bf16 %v3543, %v3541
    %v3561 = vpack.c.bf16 %v3548, %v3546
    %v3562 = vpack.c.bf16 %v3553, %v3551
    %v3563 = vpack.c.bf16 %v3556, %v3556
    %s3564 = scalar_lea.vmem [#allocation5], 840
    %v3565 = vld [vmem:[%s3564] sm:$0xff]
    %v3566 = vld [vmem:[%s3564 + $0x8] sm:$0xf]
    %v3567 = vld [vmem:[%s3564 + $0xc] sm:$0xff]
    %v3568 = vld [vmem:[%s3564 + $0x14] sm:$0xf]
    %v3569 = vld [vmem:[%s3564 + $0x18] sm:$0xff]
    %v3570 = vld [vmem:[%s3564 + $0x20] sm:$0xf]
    %v3571 = vld [vmem:[%s3564 + $0x24] sm:$0xff]
    %v3572 = vld [vmem:[%s3564 + $0x2c] sm:$0xf]
    %v3573 = vld [vmem:[%s3564 + $0x30] sm:$0xff]
    %v3574 = vld [vmem:[%s3564 + $0x38] sm:$0xf]
    %v3575 = vld [vmem:[%s3564 + $0x3c] sm:$0xff]
    %v3576 = vld [vmem:[%s3564 + $0x44] sm:$0xf]
    %v3577 = vld [vmem:[%s3564 + $0x48] sm:$0xff]
    %v3578 = vld [vmem:[%s3564 + $0x50] sm:$0xf]
    %v3579 = vld [vmem:[%s3564 + $0x54] sm:$0xff]
    %v3580 = vld [vmem:[%s3564 + $0x5c] sm:$0xf]
    %v3581 = vld [vmem:[%s3564 + $0x60] sm:$0xff]
    %v3582 = vld [vmem:[%s3564 + $0x68] sm:$0xf]
    %v3583 = vld [vmem:[%s3564 + $0x6c] sm:$0xff]
    %v3584 = vld [vmem:[%s3564 + $0x74] sm:$0xf]
    %v3605 = vunpack.c.l.b16 %v3565
    %v3606 = vunpack.c.h.b16 %v3565
    %v3607 = vunpack.c.l.b16 %v3566
    %v3608 = vunpack.c.l.b16 %v3567
    %v3609 = vunpack.c.h.b16 %v3567
    %v3610 = vunpack.c.l.b16 %v3568
    %v3611 = vunpack.c.l.b16 %v3569
    %v3612 = vunpack.c.h.b16 %v3569
    %v3613 = vunpack.c.l.b16 %v3570
    %v3614 = vunpack.c.l.b16 %v3571
    %v3615 = vunpack.c.h.b16 %v3571
    %v3616 = vunpack.c.l.b16 %v3572
    %v3617 = vunpack.c.l.b16 %v3573
    %v3618 = vunpack.c.h.b16 %v3573
    %v3619 = vunpack.c.l.b16 %v3574
    %v3620 = vunpack.c.l.b16 %v3575
    %v3621 = vunpack.c.h.b16 %v3575
    %v3622 = vunpack.c.l.b16 %v3576
    %v3623 = vunpack.c.l.b16 %v3577
    %v3624 = vunpack.c.h.b16 %v3577
    %v3625 = vunpack.c.l.b16 %v3578
    %v3626 = vunpack.c.l.b16 %v3579
    %v3627 = vunpack.c.h.b16 %v3579
    %v3628 = vunpack.c.l.b16 %v3580
    %v3629 = vunpack.c.l.b16 %v3581
    %v3630 = vunpack.c.h.b16 %v3581
    %v3631 = vunpack.c.l.b16 %v3582
    %v3632 = vunpack.c.l.b16 %v3583
    %v3633 = vunpack.c.h.b16 %v3583
    %v3634 = vunpack.c.l.b16 %v3584
    %v3635 = vpack.c.b16 %v3608, %v3605
    %v3636 = vpack.c.b16 %v3609, %v3606
    %v3637 = vpack.c.b16 %v3610, %v3607
    %v3638 = vpack.c.b16 %v3614, %v3611
    %v3639 = vpack.c.b16 %v3615, %v3612
    %v3640 = vpack.c.b16 %v3616, %v3613
    %v3641 = vpack.c.b16 %v3620, %v3617
    %v3642 = vpack.c.b16 %v3621, %v3618
    %v3643 = vpack.c.b16 %v3622, %v3619
    %v3644 = vpack.c.b16 %v3626, %v3623
    %v3645 = vpack.c.b16 %v3627, %v3624
    %v3646 = vpack.c.b16 %v3628, %v3625
    %v3647 = vpack.c.b16 %v3632, %v3629
    %v3648 = vpack.c.b16 %v3633, %v3630
    %v3649 = vpack.c.b16 %v3634, %v3631
    %v3666 = vsel %vm797, %v3559, 0
    %v3669 = vsel %vm797, %v3560, 0
    %v3672 = vsel %vm797, %v3561, 0
    %v3675 = vsel %vm797, %v3562, 0
    %v3678 = vsel %vm797, %v3563, 0
    %3680 = vmatpush.bf16.msra.mxu0 0
    %3681 = vmatpush.bf16.msra.mxu0 0
    %3682 = vmatpush.bf16.msra.mxu0 0
    %3683 = vmatpush.bf16.msra.mxu0 %v3647
    %3684 = vmatpush.bf16.msra.mxu0 %v3644
    %3685 = vmatpush.bf16.msra.mxu0 %v3641
    %3686 = vmatpush.bf16.msra.mxu0 %v3638
    %3687 = vmatpush.bf16.msra.mxu0 %v3635
    %3688 = vmatmul.bf16.gmra.mxu0 %v3666
    %v3689 = vpop.f32.mrf.mxu0
    %v3690 = vadd.f32 0.0, %v3689
    %v3691 = vpop.f32.mrf.mxu0
    %v3692 = vadd.f32 0.0, %v3691
    %3693 = vmatmul.bf16.gmra.mxu0 %v3669
    %v3694 = vpop.f32.mrf.mxu0
    %v3695 = vadd.f32 0.0, %v3694
    %v3696 = vpop.f32.mrf.mxu0
    %v3697 = vadd.f32 0.0, %v3696
    %3698 = vmatmul.bf16.gmra.mxu0 %v3672
    %v3699 = vpop.f32.mrf.mxu0
    %v3700 = vadd.f32 0.0, %v3699
    %v3701 = vpop.f32.mrf.mxu0
    %v3702 = vadd.f32 0.0, %v3701
    %3703 = vmatmul.bf16.gmra.mxu0 %v3675
    %v3704 = vpop.f32.mrf.mxu0
    %v3705 = vadd.f32 0.0, %v3704
    %v3706 = vpop.f32.mrf.mxu0
    %v3707 = vadd.f32 0.0, %v3706
    %3708 = vmatmul.bf16.gmra.mxu0 %v3678
    %v3709 = vpop.f32.mrf.mxu0
    %v3710 = vadd.f32 0.0, %v3709
    %v3711 = vpop.f32.mrf.mxu0
    %3712 = vdwg.mxu0
    %3713 = vmatpush.bf16.msra.mxu0 0
    %3714 = vmatpush.bf16.msra.mxu0 0
    %3715 = vmatpush.bf16.msra.mxu0 0
    %3716 = vmatpush.bf16.msra.mxu0 %v3648
    %3717 = vmatpush.bf16.msra.mxu0 %v3645
    %3718 = vmatpush.bf16.msra.mxu0 %v3642
    %3719 = vmatpush.bf16.msra.mxu0 %v3639
    %3720 = vmatpush.bf16.msra.mxu0 %v3636
    %3721 = vmatmul.bf16.gmra.mxu0 %v3666
    %v3722 = vpop.f32.mrf.mxu0
    %v3723 = vadd.f32 0.0, %v3722
    %v3724 = vpop.f32.mrf.mxu0
    %v3725 = vadd.f32 0.0, %v3724
    %3726 = vmatmul.bf16.gmra.mxu0 %v3669
    %v3727 = vpop.f32.mrf.mxu0
    %v3728 = vadd.f32 0.0, %v3727
    %v3729 = vpop.f32.mrf.mxu0
    %v3730 = vadd.f32 0.0, %v3729
    %3731 = vmatmul.bf16.gmra.mxu0 %v3672
    %v3732 = vpop.f32.mrf.mxu0
    %v3733 = vadd.f32 0.0, %v3732
    %v3734 = vpop.f32.mrf.mxu0
    %v3735 = vadd.f32 0.0, %v3734
    %3736 = vmatmul.bf16.gmra.mxu0 %v3675
    %v3737 = vpop.f32.mrf.mxu0
    %v3738 = vadd.f32 0.0, %v3737
    %v3739 = vpop.f32.mrf.mxu0
    %v3740 = vadd.f32 0.0, %v3739
    %3741 = vmatmul.bf16.gmra.mxu0 %v3678
    %v3742 = vpop.f32.mrf.mxu0
    %v3743 = vadd.f32 0.0, %v3742
    %v3744 = vpop.f32.mrf.mxu0
    %3745 = vdwg.mxu0
    %3746 = vmatpush.bf16.msra.mxu0 0
    %3747 = vmatpush.bf16.msra.mxu0 0
    %3748 = vmatpush.bf16.msra.mxu0 0
    %3749 = vmatpush.bf16.msra.mxu0 %v3649
    %3750 = vmatpush.bf16.msra.mxu0 %v3646
    %3751 = vmatpush.bf16.msra.mxu0 %v3643
    %3752 = vmatpush.bf16.msra.mxu0 %v3640
    %3753 = vmatpush.bf16.msra.mxu0 %v3637
    %3754 = vmatmul.bf16.gmra.mxu0 %v3666
    %v3755 = vpop.f32.mrf.mxu0
    %v3756 = vadd.f32 0.0, %v3755
    %v3757 = vpop.f32.mrf.mxu0
    %v3758 = vadd.f32 0.0, %v3757
    %3759 = vmatmul.bf16.gmra.mxu0 %v3669
    %v3760 = vpop.f32.mrf.mxu0
    %v3761 = vadd.f32 0.0, %v3760
    %v3762 = vpop.f32.mrf.mxu0
    %v3763 = vadd.f32 0.0, %v3762
    %3764 = vmatmul.bf16.gmra.mxu0 %v3672
    %v3765 = vpop.f32.mrf.mxu0
    %v3766 = vadd.f32 0.0, %v3765
    %v3767 = vpop.f32.mrf.mxu0
    %v3768 = vadd.f32 0.0, %v3767
    %3769 = vmatmul.bf16.gmra.mxu0 %v3675
    %v3770 = vpop.f32.mrf.mxu0
    %v3771 = vadd.f32 0.0, %v3770
    %v3772 = vpop.f32.mrf.mxu0
    %v3773 = vadd.f32 0.0, %v3772
    %3774 = vmatmul.bf16.gmra.mxu0 %v3678
    %v3775 = vpop.f32.mrf.mxu0
    %v3776 = vadd.f32 0.0, %v3775
    %v3777 = vpop.f32.mrf.mxu0
    %3778 = vdwg.mxu0
    %v3779 = vadd.f32 %v3329, %v3690
    %v3780 = vadd.f32 %v3330, %v3723
    %v3781 = vadd.f32 %v3331, %v3756
    %v3782 = vadd.f32 %v3332, %v3692
    %v3783 = vadd.f32 %v3333, %v3725
    %v3784 = vadd.f32 %v3334, %v3758
    %v3785 = vadd.f32 %v3335, %v3695
    %v3786 = vadd.f32 %v3336, %v3728
    %v3787 = vadd.f32 %v3337, %v3761
    %v3788 = vadd.f32 %v3338, %v3697
    %v3789 = vadd.f32 %v3339, %v3730
    %v3790 = vadd.f32 %v3340, %v3763
    %v3791 = vadd.f32 %v3341, %v3700
    %v3792 = vadd.f32 %v3342, %v3733
    %v3793 = vadd.f32 %v3343, %v3766
    %v3794 = vadd.f32 %v3344, %v3702
    %v3795 = vadd.f32 %v3345, %v3735
    %v3796 = vadd.f32 %v3346, %v3768
    %v3797 = vadd.f32 %v3347, %v3705
    %v3798 = vadd.f32 %v3348, %v3738
    %v3799 = vadd.f32 %v3349, %v3771
    %v3800 = vadd.f32 %v3350, %v3707
    %v3801 = vadd.f32 %v3351, %v3740
    %v3802 = vadd.f32 %v3352, %v3773
    %v3803 = vadd.f32 %v3353, %v3710
    %v3804 = vadd.f32 %v3354, %v3743
    %v3805 = vadd.f32 %v3355, %v3776
    %v3806 = vld [vmem:[%s3] sm:$0x7]
    %v3808 = vperm.slane %v3806, 0
    %v3809 = vperm.slane %v3806, 1
    %v3810 = vperm.slane %v3806, 2
    %v3814 = vadd.f32 %v3779, %v3808
    %v3815 = vadd.f32 %v3780, %v3809
    %v3816 = vadd.f32 %v3781, %v3810
    %v3817 = vadd.f32 %v3782, %v3808
    %v3818 = vadd.f32 %v3783, %v3809
    %v3819 = vadd.f32 %v3784, %v3810
    %v3820 = vadd.f32 %v3785, %v3808
    %v3821 = vadd.f32 %v3786, %v3809
    %v3822 = vadd.f32 %v3787, %v3810
    %v3823 = vadd.f32 %v3788, %v3808
    %v3824 = vadd.f32 %v3789, %v3809
    %v3825 = vadd.f32 %v3790, %v3810
    %v3826 = vadd.f32 %v3791, %v3808
    %v3827 = vadd.f32 %v3792, %v3809
    %v3828 = vadd.f32 %v3793, %v3810
    %v3829 = vadd.f32 %v3794, %v3808
    %v3830 = vadd.f32 %v3795, %v3809
    %v3831 = vadd.f32 %v3796, %v3810
    %v3832 = vadd.f32 %v3797, %v3808
    %v3833 = vadd.f32 %v3798, %v3809
    %v3834 = vadd.f32 %v3799, %v3810
    %v3835 = vadd.f32 %v3800, %v3808
    %v3836 = vadd.f32 %v3801, %v3809
    %v3837 = vadd.f32 %v3802, %v3810
    %v3838 = vadd.f32 %v3803, %v3808
    %v3839 = vadd.f32 %v3804, %v3809
    %v3840 = vadd.f32 %v3805, %v3810
    %v3841 = vmax.f32 %v3814, 0.0
    %v3842 = vmax.f32 %v3815, 0.0
    %v3843 = vmax.f32 %v3816, 0.0
    %v3844 = vmax.f32 %v3817, 0.0
    %v3845 = vmax.f32 %v3818, 0.0
    %v3846 = vmax.f32 %v3819, 0.0
    %v3847 = vmax.f32 %v3820, 0.0
    %v3848 = vmax.f32 %v3821, 0.0
    %v3849 = vmax.f32 %v3822, 0.0
    %v3850 = vmax.f32 %v3823, 0.0
    %v3851 = vmax.f32 %v3824, 0.0
    %v3852 = vmax.f32 %v3825, 0.0
    %v3853 = vmax.f32 %v3826, 0.0
    %v3854 = vmax.f32 %v3827, 0.0
    %v3855 = vmax.f32 %v3828, 0.0
    %v3856 = vmax.f32 %v3829, 0.0
    %v3857 = vmax.f32 %v3830, 0.0
    %v3858 = vmax.f32 %v3831, 0.0
    %v3859 = vmax.f32 %v3832, 0.0
    %v3860 = vmax.f32 %v3833, 0.0
    %v3861 = vmax.f32 %v3834, 0.0
    %v3862 = vmax.f32 %v3835, 0.0
    %v3863 = vmax.f32 %v3836, 0.0
    %v3864 = vmax.f32 %v3837, 0.0
    %v3865 = vmax.f32 %v3838, 0.0
    %v3866 = vmax.f32 %v3839, 0.0
    %v3867 = vmax.f32 %v3840, 0.0
    %v3868 = vpack.c.bf16 %v3844, %v3841
    %v3869 = vpack.c.bf16 %v3845, %v3842
    %v3870 = vpack.c.bf16 %v3846, %v3843
    %v3871 = vpack.c.bf16 %v3850, %v3847
    %v3872 = vpack.c.bf16 %v3851, %v3848
    %v3873 = vpack.c.bf16 %v3852, %v3849
    %v3874 = vpack.c.bf16 %v3856, %v3853
    %v3875 = vpack.c.bf16 %v3857, %v3854
    %v3876 = vpack.c.bf16 %v3858, %v3855
    %v3877 = vpack.c.bf16 %v3862, %v3859
    %v3878 = vpack.c.bf16 %v3863, %v3860
    %v3879 = vpack.c.bf16 %v3864, %v3861
    %v3880 = vpack.c.bf16 %v3865, %v3865
    %v3881 = vpack.c.bf16 %v3866, %v3866
    %v3882 = vpack.c.bf16 %v3867, %v3867
    %v3883 = vld [vmem:[%s4] sm:$0xf]
    %v3884 = vld [vmem:[%s4 + $0x4] sm:$0xf]
    %v3885 = vld [vmem:[%s4 + $0x8] sm:$0xf]
    %v3889 = vunpack.c.l.b16 %v3883
    %v3890 = vunpack.c.l.b16 %v3884
    %v3891 = vunpack.c.l.b16 %v3885
    %v3892 = vpack.c.b16 %v3890, %v3889
    %v3893 = vpack.c.b16 %v3891, %v3891
    %vm3894 = vcmask 588800
    %v3896 = vsel %vm3894, %v3892, 0
    %v3899 = vsel %vm3894, %v3893, 0
    %vm3901 = vcmask 1043456
    %v3903 = vsel %vm3901, %v3880, 0
    %v3906 = vsel %vm3901, %v3881, 0
    %v3909 = vsel %vm3901, %v3882, 0
    %3911 = vmatpush.bf16.msra.mxu0 0
    %3912 = vmatpush.bf16.msra.mxu0 0
    %3913 = vmatpush.bf16.msra.mxu0 0
    %3914 = vmatpush.bf16.msra.mxu0 %v3903
    %3915 = vmatpush.bf16.msra.mxu0 %v3877
    %3916 = vmatpush.bf16.msra.mxu0 %v3874
    %3917 = vmatpush.bf16.msra.mxu0 %v3871
    %3918 = vmatpush.bf16.msra.mxu0 %v3868
    %3919 = vmatmul.bf16.gmra.mxu0 %v3896
    %v3920 = vpop.f32.mrf.mxu0
    %v3921 = vadd.f32 0.0, %v3920
    %v3922 = vpop.f32.mrf.mxu0
    %v3923 = vadd.f32 0.0, %v3922
    %3924 = vmatmul.bf16.gmra.mxu0 %v3899
    %v3925 = vpop.f32.mrf.mxu0
    %v3926 = vadd.f32 0.0, %v3925
    %v3927 = vpop.f32.mrf.mxu0
    %3928 = vdwg.mxu0
    %3929 = vmatpush.bf16.msra.mxu0 0
    %3930 = vmatpush.bf16.msra.mxu0 0
    %3931 = vmatpush.bf16.msra.mxu0 0
    %3932 = vmatpush.bf16.msra.mxu0 %v3906
    %3933 = vmatpush.bf16.msra.mxu0 %v3878
    %3934 = vmatpush.bf16.msra.mxu0 %v3875
    %3935 = vmatpush.bf16.msra.mxu0 %v3872
    %3936 = vmatpush.bf16.msra.mxu0 %v3869
    %3937 = vmatmul.bf16.gmra.mxu0 %v3896
    %v3938 = vpop.f32.mrf.mxu0
    %v3939 = vadd.f32 0.0, %v3938
    %v3940 = vpop.f32.mrf.mxu0
    %v3941 = vadd.f32 0.0, %v3940
    %3942 = vmatmul.bf16.gmra.mxu0 %v3899
    %v3943 = vpop.f32.mrf.mxu0
    %v3944 = vadd.f32 0.0, %v3943
    %v3945 = vpop.f32.mrf.mxu0
    %3946 = vdwg.mxu0
    %3947 = vmatpush.bf16.msra.mxu0 0
    %3948 = vmatpush.bf16.msra.mxu0 0
    %3949 = vmatpush.bf16.msra.mxu0 0
    %3950 = vmatpush.bf16.msra.mxu0 %v3909
    %3951 = vmatpush.bf16.msra.mxu0 %v3879
    %3952 = vmatpush.bf16.msra.mxu0 %v3876
    %3953 = vmatpush.bf16.msra.mxu0 %v3873
    %3954 = vmatpush.bf16.msra.mxu0 %v3870
    %3955 = vmatmul.bf16.gmra.mxu0 %v3896
    %v3956 = vpop.f32.mrf.mxu0
    %v3957 = vadd.f32 0.0, %v3956
    %v3958 = vpop.f32.mrf.mxu0
    %v3959 = vadd.f32 0.0, %v3958
    %3960 = vmatmul.bf16.gmra.mxu0 %v3899
    %v3961 = vpop.f32.mrf.mxu0
    %v3962 = vadd.f32 0.0, %v3961
    %v3963 = vpop.f32.mrf.mxu0
    %3964 = vdwg.mxu0
    %v3965 = vpack.c.bf16 %v3923, %v3921
    %v3966 = vpack.c.bf16 %v3941, %v3939
    %v3967 = vpack.c.bf16 %v3959, %v3957
    %v3968 = vpack.c.bf16 %v3926, %v3926
    %v3969 = vpack.c.bf16 %v3944, %v3944
    %v3970 = vpack.c.bf16 %v3962, %v3962
    %v3971 = vld [vmem:[#allocation7] sm:$0xff]
    %v3972 = vld [vmem:[#allocation7 + $0x8] sm:$0xff]
    %v3973 = vld [vmem:[#allocation7 + $0x10] sm:$0xff]
    %v3974 = vld [vmem:[#allocation7 + $0x18] sm:$0xff]
    %v3975 = vld [vmem:[#allocation7 + $0x20] sm:$0xff]
    %v3976 = vld [vmem:[#allocation7 + $0x28] sm:$0xff]
    %v3977 = vld [vmem:[#allocation7 + $0x30] sm:$0xff]
    %v3978 = vld [vmem:[#allocation7 + $0x38] sm:$0xff]
    %v3979 = vld [vmem:[#allocation7 + $0x40] sm:$0xff]
    %v3980 = vld [vmem:[#allocation7 + $0x48] sm:$0xff]
    %v3981 = vld [vmem:[#allocation7 + $0x50] sm:$0xff]
    %v3982 = vld [vmem:[#allocation7 + $0x58] sm:$0xff]
    %v3983 = vld [vmem:[#allocation7 + $0x60] sm:$0xff]
    %v3984 = vld [vmem:[#allocation7 + $0x68] sm:$0xff]
    %v3985 = vld [vmem:[#allocation7 + $0x70] sm:$0xff]
    %v3986 = vld [vmem:[#allocation7 + $0x78] sm:$0xff]
    %v3987 = vld [vmem:[#allocation7 + $0x80] sm:$0xff]
    %v3988 = vld [vmem:[#allocation7 + $0x88] sm:$0xff]
    %v3989 = vld [vmem:[#allocation7 + $0x90] sm:$0xff]
    %v3990 = vld [vmem:[#allocation7 + $0x98] sm:$0xff]
    %v3991 = vld [vmem:[#allocation7 + $0xa0] sm:$0xff]
    %v3992 = vld [vmem:[#allocation7 + $0xa8] sm:$0xff]
    %v3993 = vld [vmem:[#allocation7 + $0xb0] sm:$0xff]
    %v3994 = vld [vmem:[#allocation7 + $0xb8] sm:$0xff]
    %v3995 = vld [vmem:[#allocation7 + $0xc0] sm:$0xff]
    %v3996 = vld [vmem:[#allocation7 + $0xc8] sm:$0xff]
    %v3997 = vld [vmem:[#allocation7 + $0xd0] sm:$0xff]
    %v3998 = vld [vmem:[#allocation7 + $0xd8] sm:$0xff]
    %v3999 = vld [vmem:[#allocation7 + $0xe0] sm:$0xff]
    %v4000 = vld [vmem:[#allocation7 + $0xe8] sm:$0xff]
    %v4001 = vld [vmem:[#allocation7 + $0xf0] sm:$0xff]
    %v4002 = vld [vmem:[#allocation7 + $0xf8] sm:$0xff]
    %v4003 = vld [vmem:[#allocation7 + $0x100] sm:$0xff]
    %v4004 = vld [vmem:[#allocation7 + $0x108] sm:$0xff]
    %v4005 = vld [vmem:[#allocation7 + $0x110] sm:$0xff]
    %v4006 = vld [vmem:[#allocation7 + $0x118] sm:$0xff]
    %s4007 = scalar_lea.vmem %s4, 12
    %v4008 = vld [vmem:[%s4007] sm:$0xf]
    %v4009 = vld [vmem:[%s4007 + $0x4] sm:$0xf]
    %v4010 = vld [vmem:[%s4007 + $0x8] sm:$0xf]
    %v4014 = vunpack.c.l.b16 %v4008
    %v4015 = vunpack.c.l.b16 %v4009
    %v4016 = vunpack.c.l.b16 %v4010
    %v4017 = vpack.c.b16 %v4015, %v4014
    %v4018 = vpack.c.b16 %v4016, %v4016
    %v4020 = vsel %vm3894, %v4017, 0
    %v4023 = vsel %vm3894, %v4018, 0
    %4025 = vmatpush.bf16.msra.mxu0 0
    %4026 = vmatpush.bf16.msra.mxu0 0
    %4027 = vmatpush.bf16.msra.mxu0 0
    %4028 = vmatpush.bf16.msra.mxu0 %v3903
    %4029 = vmatpush.bf16.msra.mxu0 %v3877
    %4030 = vmatpush.bf16.msra.mxu0 %v3874
    %4031 = vmatpush.bf16.msra.mxu0 %v3871
    %4032 = vmatpush.bf16.msra.mxu0 %v3868
    %4033 = vmatmul.bf16.gmra.mxu0 %v4020
    %v4034 = vpop.f32.mrf.mxu0
    %v4035 = vadd.f32 0.0, %v4034
    %v4036 = vpop.f32.mrf.mxu0
    %v4037 = vadd.f32 0.0, %v4036
    %4038 = vmatmul.bf16.gmra.mxu0 %v4023
    %v4039 = vpop.f32.mrf.mxu0
    %v4040 = vadd.f32 0.0, %v4039
    %v4041 = vpop.f32.mrf.mxu0
    %4042 = vdwg.mxu0
    %4043 = vmatpush.bf16.msra.mxu0 0
    %4044 = vmatpush.bf16.msra.mxu0 0
    %4045 = vmatpush.bf16.msra.mxu0 0
    %4046 = vmatpush.bf16.msra.mxu0 %v3906
    %4047 = vmatpush.bf16.msra.mxu0 %v3878
    %4048 = vmatpush.bf16.msra.mxu0 %v3875
    %4049 = vmatpush.bf16.msra.mxu0 %v3872
    %4050 = vmatpush.bf16.msra.mxu0 %v3869
    %4051 = vmatmul.bf16.gmra.mxu0 %v4020
    %v4052 = vpop.f32.mrf.mxu0
    %v4053 = vadd.f32 0.0, %v4052
    %v4054 = vpop.f32.mrf.mxu0
    %v4055 = vadd.f32 0.0, %v4054
    %4056 = vmatmul.bf16.gmra.mxu0 %v4023
    %v4057 = vpop.f32.mrf.mxu0
    %v4058 = vadd.f32 0.0, %v4057
    %v4059 = vpop.f32.mrf.mxu0
    %4060 = vdwg.mxu0
    %4061 = vmatpush.bf16.msra.mxu0 0
    %4062 = vmatpush.bf16.msra.mxu0 0
    %4063 = vmatpush.bf16.msra.mxu0 0
    %4064 = vmatpush.bf16.msra.mxu0 %v3909
    %4065 = vmatpush.bf16.msra.mxu0 %v3879
    %4066 = vmatpush.bf16.msra.mxu0 %v3876
    %4067 = vmatpush.bf16.msra.mxu0 %v3873
    %4068 = vmatpush.bf16.msra.mxu0 %v3870
    %4069 = vmatmul.bf16.gmra.mxu0 %v4020
    %v4070 = vpop.f32.mrf.mxu0
    %v4071 = vadd.f32 0.0, %v4070
    %v4072 = vpop.f32.mrf.mxu0
    %v4073 = vadd.f32 0.0, %v4072
    %4074 = vmatmul.bf16.gmra.mxu0 %v4023
    %v4075 = vpop.f32.mrf.mxu0
    %v4076 = vadd.f32 0.0, %v4075
    %v4077 = vpop.f32.mrf.mxu0
    %4078 = vdwg.mxu0
    %v4079 = vpack.c.bf16 %v4037, %v4035
    %v4080 = vpack.c.bf16 %v4055, %v4053
    %v4081 = vpack.c.bf16 %v4073, %v4071
    %v4082 = vpack.c.bf16 %v4040, %v4040
    %v4083 = vpack.c.bf16 %v4058, %v4058
    %v4084 = vpack.c.bf16 %v4076, %v4076
    %s4085 = scalar_lea.vmem [#allocation7], 288
    %v4086 = vld [vmem:[%s4085] sm:$0xff]
    %v4087 = vld [vmem:[%s4085 + $0x8] sm:$0xff]
    %v4088 = vld [vmem:[%s4085 + $0x10] sm:$0xff]
    %v4089 = vld [vmem:[%s4085 + $0x18] sm:$0xff]
    %v4090 = vld [vmem:[%s4085 + $0x20] sm:$0xff]
    %v4091 = vld [vmem:[%s4085 + $0x28] sm:$0xff]
    %v4092 = vld [vmem:[%s4085 + $0x30] sm:$0xff]
    %v4093 = vld [vmem:[%s4085 + $0x38] sm:$0xff]
    %v4094 = vld [vmem:[%s4085 + $0x40] sm:$0xff]
    %v4095 = vld [vmem:[%s4085 + $0x48] sm:$0xff]
    %v4096 = vld [vmem:[%s4085 + $0x50] sm:$0xff]
    %v4097 = vld [vmem:[%s4085 + $0x58] sm:$0xff]
    %v4098 = vld [vmem:[%s4085 + $0x60] sm:$0xff]
    %v4099 = vld [vmem:[%s4085 + $0x68] sm:$0xff]
    %v4100 = vld [vmem:[%s4085 + $0x70] sm:$0xff]
    %v4101 = vld [vmem:[%s4085 + $0x78] sm:$0xff]
    %v4102 = vld [vmem:[%s4085 + $0x80] sm:$0xff]
    %v4103 = vld [vmem:[%s4085 + $0x88] sm:$0xff]
    %v4104 = vld [vmem:[%s4085 + $0x90] sm:$0xff]
    %v4105 = vld [vmem:[%s4085 + $0x98] sm:$0xff]
    %v4106 = vld [vmem:[%s4085 + $0xa0] sm:$0xff]
    %v4107 = vld [vmem:[%s4085 + $0xa8] sm:$0xff]
    %v4108 = vld [vmem:[%s4085 + $0xb0] sm:$0xff]
    %v4109 = vld [vmem:[%s4085 + $0xb8] sm:$0xff]
    %v4110 = vld [vmem:[%s4085 + $0xc0] sm:$0xff]
    %v4111 = vld [vmem:[%s4085 + $0xc8] sm:$0xff]
    %v4112 = vld [vmem:[%s4085 + $0xd0] sm:$0xff]
    %v4113 = vld [vmem:[%s4085 + $0xd8] sm:$0xff]
    %v4114 = vld [vmem:[%s4085 + $0xe0] sm:$0xff]
    %v4115 = vld [vmem:[%s4085 + $0xe8] sm:$0xff]
    %v4116 = vld [vmem:[%s4085 + $0xf0] sm:$0xff]
    %v4117 = vld [vmem:[%s4085 + $0xf8] sm:$0xff]
    %v4118 = vld [vmem:[%s4085 + $0x100] sm:$0xff]
    %v4119 = vld [vmem:[%s4085 + $0x108] sm:$0xff]
    %v4120 = vld [vmem:[%s4085 + $0x110] sm:$0xff]
    %v4121 = vld [vmem:[%s4085 + $0x118] sm:$0xff]
    %v4158 = vunpack.c.l.b16 %v4086
    %v4159 = vunpack.c.h.b16 %v4086
    %v4160 = vunpack.c.l.b16 %v4087
    %v4161 = vunpack.c.h.b16 %v4087
    %v4162 = vunpack.c.l.b16 %v4088
    %v4163 = vunpack.c.h.b16 %v4088
    %v4164 = vunpack.c.l.b16 %v4089
    %v4165 = vunpack.c.h.b16 %v4089
    %v4166 = vunpack.c.l.b16 %v4090
    %v4167 = vunpack.c.h.b16 %v4090
    %v4168 = vunpack.c.l.b16 %v4091
    %v4169 = vunpack.c.h.b16 %v4091
    %v4170 = vunpack.c.l.b16 %v4092
    %v4171 = vunpack.c.h.b16 %v4092
    %v4172 = vunpack.c.l.b16 %v4093
    %v4173 = vunpack.c.h.b16 %v4093
    %v4174 = vunpack.c.l.b16 %v4094
    %v4175 = vunpack.c.h.b16 %v4094
    %v4176 = vunpack.c.l.b16 %v4095
    %v4177 = vunpack.c.h.b16 %v4095
    %v4178 = vunpack.c.l.b16 %v4096
    %v4179 = vunpack.c.h.b16 %v4096
    %v4180 = vunpack.c.l.b16 %v4097
    %v4181 = vunpack.c.h.b16 %v4097
    %v4182 = vunpack.c.l.b16 %v4098
    %v4183 = vunpack.c.h.b16 %v4098
    %v4184 = vunpack.c.l.b16 %v4099
    %v4185 = vunpack.c.h.b16 %v4099
    %v4186 = vunpack.c.l.b16 %v4100
    %v4187 = vunpack.c.h.b16 %v4100
    %v4188 = vunpack.c.l.b16 %v4101
    %v4189 = vunpack.c.h.b16 %v4101
    %v4190 = vunpack.c.l.b16 %v4102
    %v4191 = vunpack.c.h.b16 %v4102
    %v4192 = vunpack.c.l.b16 %v4103
    %v4193 = vunpack.c.h.b16 %v4103
    %v4194 = vunpack.c.l.b16 %v4104
    %v4195 = vunpack.c.h.b16 %v4104
    %v4196 = vunpack.c.l.b16 %v4105
    %v4197 = vunpack.c.h.b16 %v4105
    %v4198 = vunpack.c.l.b16 %v4106
    %v4199 = vunpack.c.h.b16 %v4106
    %v4200 = vunpack.c.l.b16 %v4107
    %v4201 = vunpack.c.h.b16 %v4107
    %v4202 = vunpack.c.l.b16 %v4108
    %v4203 = vunpack.c.h.b16 %v4108
    %v4204 = vunpack.c.l.b16 %v4109
    %v4205 = vunpack.c.h.b16 %v4109
    %v4206 = vunpack.c.l.b16 %v4110
    %v4207 = vunpack.c.h.b16 %v4110
    %v4208 = vunpack.c.l.b16 %v4111
    %v4209 = vunpack.c.h.b16 %v4111
    %v4210 = vunpack.c.l.b16 %v4112
    %v4211 = vunpack.c.h.b16 %v4112
    %v4212 = vunpack.c.l.b16 %v4113
    %v4213 = vunpack.c.h.b16 %v4113
    %v4214 = vunpack.c.l.b16 %v4114
    %v4215 = vunpack.c.h.b16 %v4114
    %v4216 = vunpack.c.l.b16 %v4115
    %v4217 = vunpack.c.h.b16 %v4115
    %v4218 = vunpack.c.l.b16 %v4116
    %v4219 = vunpack.c.h.b16 %v4116
    %v4220 = vunpack.c.l.b16 %v4117
    %v4221 = vunpack.c.h.b16 %v4117
    %v4222 = vunpack.c.l.b16 %v4118
    %v4223 = vunpack.c.h.b16 %v4118
    %v4224 = vunpack.c.l.b16 %v4119
    %v4225 = vunpack.c.h.b16 %v4119
    %v4226 = vunpack.c.l.b16 %v4120
    %v4227 = vunpack.c.h.b16 %v4120
    %v4228 = vunpack.c.l.b16 %v4121
    %v4229 = vunpack.c.h.b16 %v4121
    %v4230 = vpack.c.b16 %v4160, %v4158
    %v4231 = vpack.c.b16 %v4161, %v4159
    %v4232 = vpack.c.b16 %v4164, %v4162
    %v4233 = vpack.c.b16 %v4165, %v4163
    %v4234 = vpack.c.b16 %v4168, %v4166
    %v4235 = vpack.c.b16 %v4169, %v4167
    %v4236 = vpack.c.b16 %v4172, %v4170
    %v4237 = vpack.c.b16 %v4173, %v4171
    %v4238 = vpack.c.b16 %v4176, %v4174
    %v4239 = vpack.c.b16 %v4177, %v4175
    %v4240 = vpack.c.b16 %v4180, %v4178
    %v4241 = vpack.c.b16 %v4181, %v4179
    %v4242 = vpack.c.b16 %v4184, %v4182
    %v4243 = vpack.c.b16 %v4185, %v4183
    %v4244 = vpack.c.b16 %v4188, %v4186
    %v4245 = vpack.c.b16 %v4189, %v4187
    %v4246 = vpack.c.b16 %v4192, %v4190
    %v4247 = vpack.c.b16 %v4193, %v4191
    %v4248 = vpack.c.b16 %v4196, %v4194
    %v4249 = vpack.c.b16 %v4197, %v4195
    %v4250 = vpack.c.b16 %v4200, %v4198
    %v4251 = vpack.c.b16 %v4201, %v4199
    %v4252 = vpack.c.b16 %v4204, %v4202
    %v4253 = vpack.c.b16 %v4205, %v4203
    %v4254 = vpack.c.b16 %v4208, %v4206
    %v4255 = vpack.c.b16 %v4209, %v4207
    %v4256 = vpack.c.b16 %v4212, %v4210
    %v4257 = vpack.c.b16 %v4213, %v4211
    %v4258 = vpack.c.b16 %v4216, %v4214
    %v4259 = vpack.c.b16 %v4217, %v4215
    %v4260 = vpack.c.b16 %v4220, %v4218
    %v4261 = vpack.c.b16 %v4221, %v4219
    %v4262 = vpack.c.b16 %v4224, %v4222
    %v4263 = vpack.c.b16 %v4225, %v4223
    %v4264 = vpack.c.b16 %v4228, %v4226
    %v4265 = vpack.c.b16 %v4229, %v4227
    %vm4302 = vcmask 261120
    %v4304 = vsel %vm4302, %v4081, 0
    %v4307 = vsel %vm4302, %v4084, 0
    %4309 = vmatpush.bf16.msra.mxu0 %v4244
    %4310 = vmatpush.bf16.msra.mxu0 %v4242
    %4311 = vmatpush.bf16.msra.mxu0 %v4240
    %4312 = vmatpush.bf16.msra.mxu0 %v4238
    %4313 = vmatpush.bf16.msra.mxu0 %v4236
    %4314 = vmatpush.bf16.msra.mxu0 %v4234
    %4315 = vmatpush.bf16.msra.mxu0 %v4232
    %4316 = vmatpush.bf16.msra.mxu0 %v4230
    %4317 = vmatmul.bf16.gmra.mxu0 %v4079
    %v4318 = vpop.f32.mrf.mxu0
    %v4319 = vadd.f32 0.0, %v4318
    %v4320 = vpop.f32.mrf.mxu0
    %v4321 = vadd.f32 0.0, %v4320
    %4322 = vmatmul.bf16.gmra.mxu0 %v4082
    %v4323 = vpop.f32.mrf.mxu0
    %v4324 = vadd.f32 0.0, %v4323
    %v4325 = vpop.f32.mrf.mxu0
    %4326 = vdwg.mxu0
    %4327 = vmatpush.bf16.msra.mxu0 %v4260
    %4328 = vmatpush.bf16.msra.mxu0 %v4258
    %4329 = vmatpush.bf16.msra.mxu0 %v4256
    %4330 = vmatpush.bf16.msra.mxu0 %v4254
    %4331 = vmatpush.bf16.msra.mxu0 %v4252
    %4332 = vmatpush.bf16.msra.mxu0 %v4250
    %4333 = vmatpush.bf16.msra.mxu0 %v4248
    %4334 = vmatpush.bf16.msra.mxu0 %v4246
    %4335 = vmatmul.bf16.gmra.mxu0 %v4080
    %v4336 = vpop.f32.mrf.mxu0
    %v4337 = vadd.f32 %v4319, %v4336
    %v4338 = vpop.f32.mrf.mxu0
    %v4339 = vadd.f32 %v4321, %v4338
    %4340 = vmatmul.bf16.gmra.mxu0 %v4083
    %v4341 = vpop.f32.mrf.mxu0
    %v4342 = vadd.f32 %v4324, %v4341
    %v4343 = vpop.f32.mrf.mxu0
    %4344 = vdwg.mxu0
    %4345 = vmatpush.bf16.msra.mxu0 0
    %4346 = vmatpush.bf16.msra.mxu0 0
    %4347 = vmatpush.bf16.msra.mxu0 0
    %4348 = vmatpush.bf16.msra.mxu0 0
    %4349 = vmatpush.bf16.msra.mxu0 0
    %4350 = vmatpush.bf16.msra.mxu0 0
    %4351 = vmatpush.bf16.msra.mxu0 %v4264
    %4352 = vmatpush.bf16.msra.mxu0 %v4262
    %4353 = vmatmul.bf16.gmra.mxu0 %v4304
    %v4354 = vpop.f32.mrf.mxu0
    %v4355 = vadd.f32 %v4337, %v4354
    %v4356 = vpop.f32.mrf.mxu0
    %v4357 = vadd.f32 %v4339, %v4356
    %4358 = vmatmul.bf16.gmra.mxu0 %v4307
    %v4359 = vpop.f32.mrf.mxu0
    %v4360 = vadd.f32 %v4342, %v4359
    %v4361 = vpop.f32.mrf.mxu0
    %4362 = vdwg.mxu0
    %4363 = vmatpush.bf16.msra.mxu0 %v4245
    %4364 = vmatpush.bf16.msra.mxu0 %v4243
    %4365 = vmatpush.bf16.msra.mxu0 %v4241
    %4366 = vmatpush.bf16.msra.mxu0 %v4239
    %4367 = vmatpush.bf16.msra.mxu0 %v4237
    %4368 = vmatpush.bf16.msra.mxu0 %v4235
    %4369 = vmatpush.bf16.msra.mxu0 %v4233
    %4370 = vmatpush.bf16.msra.mxu0 %v4231
    %4371 = vmatmul.bf16.gmra.mxu0 %v4079
    %v4372 = vpop.f32.mrf.mxu0
    %v4373 = vadd.f32 0.0, %v4372
    %v4374 = vpop.f32.mrf.mxu0
    %v4375 = vadd.f32 0.0, %v4374
    %4376 = vmatmul.bf16.gmra.mxu0 %v4082
    %v4377 = vpop.f32.mrf.mxu0
    %v4378 = vadd.f32 0.0, %v4377
    %v4379 = vpop.f32.mrf.mxu0
    %4380 = vdwg.mxu0
    %4381 = vmatpush.bf16.msra.mxu0 %v4261
    %4382 = vmatpush.bf16.msra.mxu0 %v4259
    %4383 = vmatpush.bf16.msra.mxu0 %v4257
    %4384 = vmatpush.bf16.msra.mxu0 %v4255
    %4385 = vmatpush.bf16.msra.mxu0 %v4253
    %4386 = vmatpush.bf16.msra.mxu0 %v4251
    %4387 = vmatpush.bf16.msra.mxu0 %v4249
    %4388 = vmatpush.bf16.msra.mxu0 %v4247
    %4389 = vmatmul.bf16.gmra.mxu0 %v4080
    %v4390 = vpop.f32.mrf.mxu0
    %v4391 = vadd.f32 %v4373, %v4390
    %v4392 = vpop.f32.mrf.mxu0
    %v4393 = vadd.f32 %v4375, %v4392
    %4394 = vmatmul.bf16.gmra.mxu0 %v4083
    %v4395 = vpop.f32.mrf.mxu0
    %v4396 = vadd.f32 %v4378, %v4395
    %v4397 = vpop.f32.mrf.mxu0
    %4398 = vdwg.mxu0
    %4399 = vmatpush.bf16.msra.mxu0 0
    %4400 = vmatpush.bf16.msra.mxu0 0
    %4401 = vmatpush.bf16.msra.mxu0 0
    %4402 = vmatpush.bf16.msra.mxu0 0
    %4403 = vmatpush.bf16.msra.mxu0 0
    %4404 = vmatpush.bf16.msra.mxu0 0
    %4405 = vmatpush.bf16.msra.mxu0 %v4265
    %4406 = vmatpush.bf16.msra.mxu0 %v4263
    %4407 = vmatmul.bf16.gmra.mxu0 %v4304
    %v4408 = vpop.f32.mrf.mxu0
    %v4409 = vadd.f32 %v4391, %v4408
    %v4410 = vpop.f32.mrf.mxu0
    %v4411 = vadd.f32 %v4393, %v4410
    %4412 = vmatmul.bf16.gmra.mxu0 %v4307
    %v4413 = vpop.f32.mrf.mxu0
    %v4414 = vadd.f32 %v4396, %v4413
    %v4415 = vpop.f32.mrf.mxu0
    %4416 = vdwg.mxu0
    %v4453 = vunpack.c.l.b16 %v3971
    %v4454 = vunpack.c.h.b16 %v3971
    %v4455 = vunpack.c.l.b16 %v3972
    %v4456 = vunpack.c.h.b16 %v3972
    %v4457 = vunpack.c.l.b16 %v3973
    %v4458 = vunpack.c.h.b16 %v3973
    %v4459 = vunpack.c.l.b16 %v3974
    %v4460 = vunpack.c.h.b16 %v3974
    %v4461 = vunpack.c.l.b16 %v3975
    %v4462 = vunpack.c.h.b16 %v3975
    %v4463 = vunpack.c.l.b16 %v3976
    %v4464 = vunpack.c.h.b16 %v3976
    %v4465 = vunpack.c.l.b16 %v3977
    %v4466 = vunpack.c.h.b16 %v3977
    %v4467 = vunpack.c.l.b16 %v3978
    %v4468 = vunpack.c.h.b16 %v3978
    %v4469 = vunpack.c.l.b16 %v3979
    %v4470 = vunpack.c.h.b16 %v3979
    %v4471 = vunpack.c.l.b16 %v3980
    %v4472 = vunpack.c.h.b16 %v3980
    %v4473 = vunpack.c.l.b16 %v3981
    %v4474 = vunpack.c.h.b16 %v3981
    %v4475 = vunpack.c.l.b16 %v3982
    %v4476 = vunpack.c.h.b16 %v3982
    %v4477 = vunpack.c.l.b16 %v3983
    %v4478 = vunpack.c.h.b16 %v3983
    %v4479 = vunpack.c.l.b16 %v3984
    %v4480 = vunpack.c.h.b16 %v3984
    %v4481 = vunpack.c.l.b16 %v3985
    %v4482 = vunpack.c.h.b16 %v3985
    %v4483 = vunpack.c.l.b16 %v3986
    %v4484 = vunpack.c.h.b16 %v3986
    %v4485 = vunpack.c.l.b16 %v3987
    %v4486 = vunpack.c.h.b16 %v3987
    %v4487 = vunpack.c.l.b16 %v3988
    %v4488 = vunpack.c.h.b16 %v3988
    %v4489 = vunpack.c.l.b16 %v3989
    %v4490 = vunpack.c.h.b16 %v3989
    %v4491 = vunpack.c.l.b16 %v3990
    %v4492 = vunpack.c.h.b16 %v3990
    %v4493 = vunpack.c.l.b16 %v3991
    %v4494 = vunpack.c.h.b16 %v3991
    %v4495 = vunpack.c.l.b16 %v3992
    %v4496 = vunpack.c.h.b16 %v3992
    %v4497 = vunpack.c.l.b16 %v3993
    %v4498 = vunpack.c.h.b16 %v3993
    %v4499 = vunpack.c.l.b16 %v3994
    %v4500 = vunpack.c.h.b16 %v3994
    %v4501 = vunpack.c.l.b16 %v3995
    %v4502 = vunpack.c.h.b16 %v3995
    %v4503 = vunpack.c.l.b16 %v3996
    %v4504 = vunpack.c.h.b16 %v3996
    %v4505 = vunpack.c.l.b16 %v3997
    %v4506 = vunpack.c.h.b16 %v3997
    %v4507 = vunpack.c.l.b16 %v3998
    %v4508 = vunpack.c.h.b16 %v3998
    %v4509 = vunpack.c.l.b16 %v3999
    %v4510 = vunpack.c.h.b16 %v3999
    %v4511 = vunpack.c.l.b16 %v4000
    %v4512 = vunpack.c.h.b16 %v4000
    %v4513 = vunpack.c.l.b16 %v4001
    %v4514 = vunpack.c.h.b16 %v4001
    %v4515 = vunpack.c.l.b16 %v4002
    %v4516 = vunpack.c.h.b16 %v4002
    %v4517 = vunpack.c.l.b16 %v4003
    %v4518 = vunpack.c.h.b16 %v4003
    %v4519 = vunpack.c.l.b16 %v4004
    %v4520 = vunpack.c.h.b16 %v4004
    %v4521 = vunpack.c.l.b16 %v4005
    %v4522 = vunpack.c.h.b16 %v4005
    %v4523 = vunpack.c.l.b16 %v4006
    %v4524 = vunpack.c.h.b16 %v4006
    %v4525 = vpack.c.b16 %v4455, %v4453
    %v4526 = vpack.c.b16 %v4456, %v4454
    %v4527 = vpack.c.b16 %v4459, %v4457
    %v4528 = vpack.c.b16 %v4460, %v4458
    %v4529 = vpack.c.b16 %v4463, %v4461
    %v4530 = vpack.c.b16 %v4464, %v4462
    %v4531 = vpack.c.b16 %v4467, %v4465
    %v4532 = vpack.c.b16 %v4468, %v4466
    %v4533 = vpack.c.b16 %v4471, %v4469
    %v4534 = vpack.c.b16 %v4472, %v4470
    %v4535 = vpack.c.b16 %v4475, %v4473
    %v4536 = vpack.c.b16 %v4476, %v4474
    %v4537 = vpack.c.b16 %v4479, %v4477
    %v4538 = vpack.c.b16 %v4480, %v4478
    %v4539 = vpack.c.b16 %v4483, %v4481
    %v4540 = vpack.c.b16 %v4484, %v4482
    %v4541 = vpack.c.b16 %v4487, %v4485
    %v4542 = vpack.c.b16 %v4488, %v4486
    %v4543 = vpack.c.b16 %v4491, %v4489
    %v4544 = vpack.c.b16 %v4492, %v4490
    %v4545 = vpack.c.b16 %v4495, %v4493
    %v4546 = vpack.c.b16 %v4496, %v4494
    %v4547 = vpack.c.b16 %v4499, %v4497
    %v4548 = vpack.c.b16 %v4500, %v4498
    %v4549 = vpack.c.b16 %v4503, %v4501
    %v4550 = vpack.c.b16 %v4504, %v4502
    %v4551 = vpack.c.b16 %v4507, %v4505
    %v4552 = vpack.c.b16 %v4508, %v4506
    %v4553 = vpack.c.b16 %v4511, %v4509
    %v4554 = vpack.c.b16 %v4512, %v4510
    %v4555 = vpack.c.b16 %v4515, %v4513
    %v4556 = vpack.c.b16 %v4516, %v4514
    %v4557 = vpack.c.b16 %v4519, %v4517
    %v4558 = vpack.c.b16 %v4520, %v4518
    %v4559 = vpack.c.b16 %v4523, %v4521
    %v4560 = vpack.c.b16 %v4524, %v4522
    %v4598 = vsel %vm4302, %v3967, 0
    %v4601 = vsel %vm4302, %v3970, 0
    %4603 = vmatpush.bf16.msra.mxu0 %v4539
    %4604 = vmatpush.bf16.msra.mxu0 %v4537
    %4605 = vmatpush.bf16.msra.mxu0 %v4535
    %4606 = vmatpush.bf16.msra.mxu0 %v4533
    %4607 = vmatpush.bf16.msra.mxu0 %v4531
    %4608 = vmatpush.bf16.msra.mxu0 %v4529
    %4609 = vmatpush.bf16.msra.mxu0 %v4527
    %4610 = vmatpush.bf16.msra.mxu0 %v4525
    %4611 = vmatmul.bf16.gmra.mxu0 %v3965
    %v4612 = vpop.f32.mrf.mxu0
    %v4613 = vadd.f32 %v4355, %v4612
    %v4614 = vpop.f32.mrf.mxu0
    %v4615 = vadd.f32 %v4357, %v4614
    %4616 = vmatmul.bf16.gmra.mxu0 %v3968
    %v4617 = vpop.f32.mrf.mxu0
    %v4618 = vadd.f32 %v4360, %v4617
    %v4619 = vpop.f32.mrf.mxu0
    %4620 = vdwg.mxu0
    %4621 = vmatpush.bf16.msra.mxu0 %v4555
    %4622 = vmatpush.bf16.msra.mxu0 %v4553
    %4623 = vmatpush.bf16.msra.mxu0 %v4551
    %4624 = vmatpush.bf16.msra.mxu0 %v4549
    %4625 = vmatpush.bf16.msra.mxu0 %v4547
    %4626 = vmatpush.bf16.msra.mxu0 %v4545
    %4627 = vmatpush.bf16.msra.mxu0 %v4543
    %4628 = vmatpush.bf16.msra.mxu0 %v4541
    %4629 = vmatmul.bf16.gmra.mxu0 %v3966
    %v4630 = vpop.f32.mrf.mxu0
    %v4631 = vadd.f32 %v4613, %v4630
    %v4632 = vpop.f32.mrf.mxu0
    %v4633 = vadd.f32 %v4615, %v4632
    %4634 = vmatmul.bf16.gmra.mxu0 %v3969
    %v4635 = vpop.f32.mrf.mxu0
    %v4636 = vadd.f32 %v4618, %v4635
    %v4637 = vpop.f32.mrf.mxu0
    %4638 = vdwg.mxu0
    %4639 = vmatpush.bf16.msra.mxu0 0
    %4640 = vmatpush.bf16.msra.mxu0 0
    %4641 = vmatpush.bf16.msra.mxu0 0
    %4642 = vmatpush.bf16.msra.mxu0 0
    %4643 = vmatpush.bf16.msra.mxu0 0
    %4644 = vmatpush.bf16.msra.mxu0 0
    %4645 = vmatpush.bf16.msra.mxu0 %v4559
    %4646 = vmatpush.bf16.msra.mxu0 %v4557
    %4647 = vmatmul.bf16.gmra.mxu0 %v4598
    %v4648 = vpop.f32.mrf.mxu0
    %v4649 = vadd.f32 %v4631, %v4648
    %v4650 = vpop.f32.mrf.mxu0
    %v4651 = vadd.f32 %v4633, %v4650
    %4652 = vmatmul.bf16.gmra.mxu0 %v4601
    %v4653 = vpop.f32.mrf.mxu0
    %v4654 = vadd.f32 %v4636, %v4653
    %v4655 = vpop.f32.mrf.mxu0
    %4656 = vdwg.mxu0
    %4657 = vmatpush.bf16.msra.mxu0 %v4540
    %4658 = vmatpush.bf16.msra.mxu0 %v4538
    %4659 = vmatpush.bf16.msra.mxu0 %v4536
    %4660 = vmatpush.bf16.msra.mxu0 %v4534
    %4661 = vmatpush.bf16.msra.mxu0 %v4532
    %4662 = vmatpush.bf16.msra.mxu0 %v4530
    %4663 = vmatpush.bf16.msra.mxu0 %v4528
    %4664 = vmatpush.bf16.msra.mxu0 %v4526
    %4665 = vmatmul.bf16.gmra.mxu0 %v3965
    %v4666 = vpop.f32.mrf.mxu0
    %v4667 = vadd.f32 %v4409, %v4666
    %v4668 = vpop.f32.mrf.mxu0
    %v4669 = vadd.f32 %v4411, %v4668
    %4670 = vmatmul.bf16.gmra.mxu0 %v3968
    %v4671 = vpop.f32.mrf.mxu0
    %v4672 = vadd.f32 %v4414, %v4671
    %v4673 = vpop.f32.mrf.mxu0
    %4674 = vdwg.mxu0
    %4675 = vmatpush.bf16.msra.mxu0 %v4556
    %4676 = vmatpush.bf16.msra.mxu0 %v4554
    %4677 = vmatpush.bf16.msra.mxu0 %v4552
    %4678 = vmatpush.bf16.msra.mxu0 %v4550
    %4679 = vmatpush.bf16.msra.mxu0 %v4548
    %4680 = vmatpush.bf16.msra.mxu0 %v4546
    %4681 = vmatpush.bf16.msra.mxu0 %v4544
    %4682 = vmatpush.bf16.msra.mxu0 %v4542
    %4683 = vmatmul.bf16.gmra.mxu0 %v3966
    %v4684 = vpop.f32.mrf.mxu0
    %v4685 = vadd.f32 %v4667, %v4684
    %v4686 = vpop.f32.mrf.mxu0
    %v4687 = vadd.f32 %v4669, %v4686
    %4688 = vmatmul.bf16.gmra.mxu0 %v3969
    %v4689 = vpop.f32.mrf.mxu0
    %v4690 = vadd.f32 %v4672, %v4689
    %v4691 = vpop.f32.mrf.mxu0
    %4692 = vdwg.mxu0
    %4693 = vmatpush.bf16.msra.mxu0 0
    %4694 = vmatpush.bf16.msra.mxu0 0
    %4695 = vmatpush.bf16.msra.mxu0 0
    %4696 = vmatpush.bf16.msra.mxu0 0
    %4697 = vmatpush.bf16.msra.mxu0 0
    %4698 = vmatpush.bf16.msra.mxu0 0
    %4699 = vmatpush.bf16.msra.mxu0 %v4560
    %4700 = vmatpush.bf16.msra.mxu0 %v4558
    %4701 = vmatmul.bf16.gmra.mxu0 %v4598
    %v4702 = vpop.f32.mrf.mxu0
    %v4703 = vadd.f32 %v4685, %v4702
    %v4704 = vpop.f32.mrf.mxu0
    %v4705 = vadd.f32 %v4687, %v4704
    %4706 = vmatmul.bf16.gmra.mxu0 %v4601
    %v4707 = vpop.f32.mrf.mxu0
    %v4708 = vadd.f32 %v4690, %v4707
    %v4709 = vpop.f32.mrf.mxu0
    %4710 = vdwg.mxu0
    %s4711 = scalar_lea.vmem %s4, 24
    %v4712 = vld [vmem:[%s4711] sm:$0xf]
    %v4713 = vld [vmem:[%s4711 + $0x4] sm:$0xf]
    %v4714 = vld [vmem:[%s4711 + $0x8] sm:$0xf]
    %v4718 = vunpack.c.l.b16 %v4712
    %v4719 = vunpack.c.l.b16 %v4713
    %v4720 = vunpack.c.l.b16 %v4714
    %v4721 = vpack.c.b16 %v4719, %v4718
    %v4722 = vpack.c.b16 %v4720, %v4720
    %v4724 = vsel %vm3894, %v4721, 0
    %v4727 = vsel %vm3894, %v4722, 0
    %4729 = vmatpush.bf16.msra.mxu0 0
    %4730 = vmatpush.bf16.msra.mxu0 0
    %4731 = vmatpush.bf16.msra.mxu0 0
    %4732 = vmatpush.bf16.msra.mxu0 %v3903
    %4733 = vmatpush.bf16.msra.mxu0 %v3877
    %4734 = vmatpush.bf16.msra.mxu0 %v3874
    %4735 = vmatpush.bf16.msra.mxu0 %v3871
    %4736 = vmatpush.bf16.msra.mxu0 %v3868
    %4737 = vmatmul.bf16.gmra.mxu0 %v4724
    %v4738 = vpop.f32.mrf.mxu0
    %v4739 = vadd.f32 0.0, %v4738
    %v4740 = vpop.f32.mrf.mxu0
    %v4741 = vadd.f32 0.0, %v4740
    %4742 = vmatmul.bf16.gmra.mxu0 %v4727
    %v4743 = vpop.f32.mrf.mxu0
    %v4744 = vadd.f32 0.0, %v4743
    %v4745 = vpop.f32.mrf.mxu0
    %4746 = vdwg.mxu0
    %4747 = vmatpush.bf16.msra.mxu0 0
    %4748 = vmatpush.bf16.msra.mxu0 0
    %4749 = vmatpush.bf16.msra.mxu0 0
    %4750 = vmatpush.bf16.msra.mxu0 %v3906
    %4751 = vmatpush.bf16.msra.mxu0 %v3878
    %4752 = vmatpush.bf16.msra.mxu0 %v3875
    %4753 = vmatpush.bf16.msra.mxu0 %v3872
    %4754 = vmatpush.bf16.msra.mxu0 %v3869
    %4755 = vmatmul.bf16.gmra.mxu0 %v4724
    %v4756 = vpop.f32.mrf.mxu0
    %v4757 = vadd.f32 0.0, %v4756
    %v4758 = vpop.f32.mrf.mxu0
    %v4759 = vadd.f32 0.0, %v4758
    %4760 = vmatmul.bf16.gmra.mxu0 %v4727
    %v4761 = vpop.f32.mrf.mxu0
    %v4762 = vadd.f32 0.0, %v4761
    %v4763 = vpop.f32.mrf.mxu0
    %4764 = vdwg.mxu0
    %4765 = vmatpush.bf16.msra.mxu0 0
    %4766 = vmatpush.bf16.msra.mxu0 0
    %4767 = vmatpush.bf16.msra.mxu0 0
    %4768 = vmatpush.bf16.msra.mxu0 %v3909
    %4769 = vmatpush.bf16.msra.mxu0 %v3879
    %4770 = vmatpush.bf16.msra.mxu0 %v3876
    %4771 = vmatpush.bf16.msra.mxu0 %v3873
    %4772 = vmatpush.bf16.msra.mxu0 %v3870
    %4773 = vmatmul.bf16.gmra.mxu0 %v4724
    %v4774 = vpop.f32.mrf.mxu0
    %v4775 = vadd.f32 0.0, %v4774
    %v4776 = vpop.f32.mrf.mxu0
    %v4777 = vadd.f32 0.0, %v4776
    %4778 = vmatmul.bf16.gmra.mxu0 %v4727
    %v4779 = vpop.f32.mrf.mxu0
    %v4780 = vadd.f32 0.0, %v4779
    %v4781 = vpop.f32.mrf.mxu0
    %4782 = vdwg.mxu0
    %v4783 = vpack.c.bf16 %v4741, %v4739
    %v4784 = vpack.c.bf16 %v4759, %v4757
    %v4785 = vpack.c.bf16 %v4777, %v4775
    %v4786 = vpack.c.bf16 %v4744, %v4744
    %v4787 = vpack.c.bf16 %v4762, %v4762
    %v4788 = vpack.c.bf16 %v4780, %v4780
    %s4789 = scalar_lea.vmem [#allocation7], 576
    %v4790 = vld [vmem:[%s4789] sm:$0xff]
    %v4791 = vld [vmem:[%s4789 + $0x8] sm:$0xff]
    %v4792 = vld [vmem:[%s4789 + $0x10] sm:$0xff]
    %v4793 = vld [vmem:[%s4789 + $0x18] sm:$0xff]
    %v4794 = vld [vmem:[%s4789 + $0x20] sm:$0xff]
    %v4795 = vld [vmem:[%s4789 + $0x28] sm:$0xff]
    %v4796 = vld [vmem:[%s4789 + $0x30] sm:$0xff]
    %v4797 = vld [vmem:[%s4789 + $0x38] sm:$0xff]
    %v4798 = vld [vmem:[%s4789 + $0x40] sm:$0xff]
    %v4799 = vld [vmem:[%s4789 + $0x48] sm:$0xff]
    %v4800 = vld [vmem:[%s4789 + $0x50] sm:$0xff]
    %v4801 = vld [vmem:[%s4789 + $0x58] sm:$0xff]
    %v4802 = vld [vmem:[%s4789 + $0x60] sm:$0xff]
    %v4803 = vld [vmem:[%s4789 + $0x68] sm:$0xff]
    %v4804 = vld [vmem:[%s4789 + $0x70] sm:$0xff]
    %v4805 = vld [vmem:[%s4789 + $0x78] sm:$0xff]
    %v4806 = vld [vmem:[%s4789 + $0x80] sm:$0xff]
    %v4807 = vld [vmem:[%s4789 + $0x88] sm:$0xff]
    %v4808 = vld [vmem:[%s4789 + $0x90] sm:$0xff]
    %v4809 = vld [vmem:[%s4789 + $0x98] sm:$0xff]
    %v4810 = vld [vmem:[%s4789 + $0xa0] sm:$0xff]
    %v4811 = vld [vmem:[%s4789 + $0xa8] sm:$0xff]
    %v4812 = vld [vmem:[%s4789 + $0xb0] sm:$0xff]
    %v4813 = vld [vmem:[%s4789 + $0xb8] sm:$0xff]
    %v4814 = vld [vmem:[%s4789 + $0xc0] sm:$0xff]
    %v4815 = vld [vmem:[%s4789 + $0xc8] sm:$0xff]
    %v4816 = vld [vmem:[%s4789 + $0xd0] sm:$0xff]
    %v4817 = vld [vmem:[%s4789 + $0xd8] sm:$0xff]
    %v4818 = vld [vmem:[%s4789 + $0xe0] sm:$0xff]
    %v4819 = vld [vmem:[%s4789 + $0xe8] sm:$0xff]
    %v4820 = vld [vmem:[%s4789 + $0xf0] sm:$0xff]
    %v4821 = vld [vmem:[%s4789 + $0xf8] sm:$0xff]
    %v4822 = vld [vmem:[%s4789 + $0x100] sm:$0xff]
    %v4823 = vld [vmem:[%s4789 + $0x108] sm:$0xff]
    %v4824 = vld [vmem:[%s4789 + $0x110] sm:$0xff]
    %v4825 = vld [vmem:[%s4789 + $0x118] sm:$0xff]
    %v4862 = vunpack.c.l.b16 %v4790
    %v4863 = vunpack.c.h.b16 %v4790
    %v4864 = vunpack.c.l.b16 %v4791
    %v4865 = vunpack.c.h.b16 %v4791
    %v4866 = vunpack.c.l.b16 %v4792
    %v4867 = vunpack.c.h.b16 %v4792
    %v4868 = vunpack.c.l.b16 %v4793
    %v4869 = vunpack.c.h.b16 %v4793
    %v4870 = vunpack.c.l.b16 %v4794
    %v4871 = vunpack.c.h.b16 %v4794
    %v4872 = vunpack.c.l.b16 %v4795
    %v4873 = vunpack.c.h.b16 %v4795
    %v4874 = vunpack.c.l.b16 %v4796
    %v4875 = vunpack.c.h.b16 %v4796
    %v4876 = vunpack.c.l.b16 %v4797
    %v4877 = vunpack.c.h.b16 %v4797
    %v4878 = vunpack.c.l.b16 %v4798
    %v4879 = vunpack.c.h.b16 %v4798
    %v4880 = vunpack.c.l.b16 %v4799
    %v4881 = vunpack.c.h.b16 %v4799
    %v4882 = vunpack.c.l.b16 %v4800
    %v4883 = vunpack.c.h.b16 %v4800
    %v4884 = vunpack.c.l.b16 %v4801
    %v4885 = vunpack.c.h.b16 %v4801
    %v4886 = vunpack.c.l.b16 %v4802
    %v4887 = vunpack.c.h.b16 %v4802
    %v4888 = vunpack.c.l.b16 %v4803
    %v4889 = vunpack.c.h.b16 %v4803
    %v4890 = vunpack.c.l.b16 %v4804
    %v4891 = vunpack.c.h.b16 %v4804
    %v4892 = vunpack.c.l.b16 %v4805
    %v4893 = vunpack.c.h.b16 %v4805
    %v4894 = vunpack.c.l.b16 %v4806
    %v4895 = vunpack.c.h.b16 %v4806
    %v4896 = vunpack.c.l.b16 %v4807
    %v4897 = vunpack.c.h.b16 %v4807
    %v4898 = vunpack.c.l.b16 %v4808
    %v4899 = vunpack.c.h.b16 %v4808
    %v4900 = vunpack.c.l.b16 %v4809
    %v4901 = vunpack.c.h.b16 %v4809
    %v4902 = vunpack.c.l.b16 %v4810
    %v4903 = vunpack.c.h.b16 %v4810
    %v4904 = vunpack.c.l.b16 %v4811
    %v4905 = vunpack.c.h.b16 %v4811
    %v4906 = vunpack.c.l.b16 %v4812
    %v4907 = vunpack.c.h.b16 %v4812
    %v4908 = vunpack.c.l.b16 %v4813
    %v4909 = vunpack.c.h.b16 %v4813
    %v4910 = vunpack.c.l.b16 %v4814
    %v4911 = vunpack.c.h.b16 %v4814
    %v4912 = vunpack.c.l.b16 %v4815
    %v4913 = vunpack.c.h.b16 %v4815
    %v4914 = vunpack.c.l.b16 %v4816
    %v4915 = vunpack.c.h.b16 %v4816
    %v4916 = vunpack.c.l.b16 %v4817
    %v4917 = vunpack.c.h.b16 %v4817
    %v4918 = vunpack.c.l.b16 %v4818
    %v4919 = vunpack.c.h.b16 %v4818
    %v4920 = vunpack.c.l.b16 %v4819
    %v4921 = vunpack.c.h.b16 %v4819
    %v4922 = vunpack.c.l.b16 %v4820
    %v4923 = vunpack.c.h.b16 %v4820
    %v4924 = vunpack.c.l.b16 %v4821
    %v4925 = vunpack.c.h.b16 %v4821
    %v4926 = vunpack.c.l.b16 %v4822
    %v4927 = vunpack.c.h.b16 %v4822
    %v4928 = vunpack.c.l.b16 %v4823
    %v4929 = vunpack.c.h.b16 %v4823
    %v4930 = vunpack.c.l.b16 %v4824
    %v4931 = vunpack.c.h.b16 %v4824
    %v4932 = vunpack.c.l.b16 %v4825
    %v4933 = vunpack.c.h.b16 %v4825
    %v4934 = vpack.c.b16 %v4864, %v4862
    %v4935 = vpack.c.b16 %v4865, %v4863
    %v4936 = vpack.c.b16 %v4868, %v4866
    %v4937 = vpack.c.b16 %v4869, %v4867
    %v4938 = vpack.c.b16 %v4872, %v4870
    %v4939 = vpack.c.b16 %v4873, %v4871
    %v4940 = vpack.c.b16 %v4876, %v4874
    %v4941 = vpack.c.b16 %v4877, %v4875
    %v4942 = vpack.c.b16 %v4880, %v4878
    %v4943 = vpack.c.b16 %v4881, %v4879
    %v4944 = vpack.c.b16 %v4884, %v4882
    %v4945 = vpack.c.b16 %v4885, %v4883
    %v4946 = vpack.c.b16 %v4888, %v4886
    %v4947 = vpack.c.b16 %v4889, %v4887
    %v4948 = vpack.c.b16 %v4892, %v4890
    %v4949 = vpack.c.b16 %v4893, %v4891
    %v4950 = vpack.c.b16 %v4896, %v4894
    %v4951 = vpack.c.b16 %v4897, %v4895
    %v4952 = vpack.c.b16 %v4900, %v4898
    %v4953 = vpack.c.b16 %v4901, %v4899
    %v4954 = vpack.c.b16 %v4904, %v4902
    %v4955 = vpack.c.b16 %v4905, %v4903
    %v4956 = vpack.c.b16 %v4908, %v4906
    %v4957 = vpack.c.b16 %v4909, %v4907
    %v4958 = vpack.c.b16 %v4912, %v4910
    %v4959 = vpack.c.b16 %v4913, %v4911
    %v4960 = vpack.c.b16 %v4916, %v4914
    %v4961 = vpack.c.b16 %v4917, %v4915
    %v4962 = vpack.c.b16 %v4920, %v4918
    %v4963 = vpack.c.b16 %v4921, %v4919
    %v4964 = vpack.c.b16 %v4924, %v4922
    %v4965 = vpack.c.b16 %v4925, %v4923
    %v4966 = vpack.c.b16 %v4928, %v4926
    %v4967 = vpack.c.b16 %v4929, %v4927
    %v4968 = vpack.c.b16 %v4932, %v4930
    %v4969 = vpack.c.b16 %v4933, %v4931
    %v5007 = vsel %vm4302, %v4785, 0
    %v5010 = vsel %vm4302, %v4788, 0
    %5012 = vmatpush.bf16.msra.mxu0 %v4948
    %5013 = vmatpush.bf16.msra.mxu0 %v4946
    %5014 = vmatpush.bf16.msra.mxu0 %v4944
    %5015 = vmatpush.bf16.msra.mxu0 %v4942
    %5016 = vmatpush.bf16.msra.mxu0 %v4940
    %5017 = vmatpush.bf16.msra.mxu0 %v4938
    %5018 = vmatpush.bf16.msra.mxu0 %v4936
    %5019 = vmatpush.bf16.msra.mxu0 %v4934
    %5020 = vmatmul.bf16.gmra.mxu0 %v4783
    %v5021 = vpop.f32.mrf.mxu0
    %v5022 = vadd.f32 0.0, %v5021
    %v5023 = vpop.f32.mrf.mxu0
    %v5024 = vadd.f32 0.0, %v5023
    %5025 = vmatmul.bf16.gmra.mxu0 %v4786
    %v5026 = vpop.f32.mrf.mxu0
    %v5027 = vadd.f32 0.0, %v5026
    %v5028 = vpop.f32.mrf.mxu0
    %5029 = vdwg.mxu0
    %5030 = vmatpush.bf16.msra.mxu0 %v4964
    %5031 = vmatpush.bf16.msra.mxu0 %v4962
    %5032 = vmatpush.bf16.msra.mxu0 %v4960
    %5033 = vmatpush.bf16.msra.mxu0 %v4958
    %5034 = vmatpush.bf16.msra.mxu0 %v4956
    %5035 = vmatpush.bf16.msra.mxu0 %v4954
    %5036 = vmatpush.bf16.msra.mxu0 %v4952
    %5037 = vmatpush.bf16.msra.mxu0 %v4950
    %5038 = vmatmul.bf16.gmra.mxu0 %v4784
    %v5039 = vpop.f32.mrf.mxu0
    %v5040 = vadd.f32 %v5022, %v5039
    %v5041 = vpop.f32.mrf.mxu0
    %v5042 = vadd.f32 %v5024, %v5041
    %5043 = vmatmul.bf16.gmra.mxu0 %v4787
    %v5044 = vpop.f32.mrf.mxu0
    %v5045 = vadd.f32 %v5027, %v5044
    %v5046 = vpop.f32.mrf.mxu0
    %5047 = vdwg.mxu0
    %5048 = vmatpush.bf16.msra.mxu0 0
    %5049 = vmatpush.bf16.msra.mxu0 0
    %5050 = vmatpush.bf16.msra.mxu0 0
    %5051 = vmatpush.bf16.msra.mxu0 0
    %5052 = vmatpush.bf16.msra.mxu0 0
    %5053 = vmatpush.bf16.msra.mxu0 0
    %5054 = vmatpush.bf16.msra.mxu0 %v4968
    %5055 = vmatpush.bf16.msra.mxu0 %v4966
    %5056 = vmatmul.bf16.gmra.mxu0 %v5007
    %v5057 = vpop.f32.mrf.mxu0
    %v5058 = vadd.f32 %v5040, %v5057
    %v5059 = vpop.f32.mrf.mxu0
    %v5060 = vadd.f32 %v5042, %v5059
    %5061 = vmatmul.bf16.gmra.mxu0 %v5010
    %v5062 = vpop.f32.mrf.mxu0
    %v5063 = vadd.f32 %v5045, %v5062
    %v5064 = vpop.f32.mrf.mxu0
    %5065 = vdwg.mxu0
    %5066 = vmatpush.bf16.msra.mxu0 %v4949
    %5067 = vmatpush.bf16.msra.mxu0 %v4947
    %5068 = vmatpush.bf16.msra.mxu0 %v4945
    %5069 = vmatpush.bf16.msra.mxu0 %v4943
    %5070 = vmatpush.bf16.msra.mxu0 %v4941
    %5071 = vmatpush.bf16.msra.mxu0 %v4939
    %5072 = vmatpush.bf16.msra.mxu0 %v4937
    %5073 = vmatpush.bf16.msra.mxu0 %v4935
    %5074 = vmatmul.bf16.gmra.mxu0 %v4783
    %v5075 = vpop.f32.mrf.mxu0
    %v5076 = vadd.f32 0.0, %v5075
    %v5077 = vpop.f32.mrf.mxu0
    %v5078 = vadd.f32 0.0, %v5077
    %5079 = vmatmul.bf16.gmra.mxu0 %v4786
    %v5080 = vpop.f32.mrf.mxu0
    %v5081 = vadd.f32 0.0, %v5080
    %v5082 = vpop.f32.mrf.mxu0
    %5083 = vdwg.mxu0
    %5084 = vmatpush.bf16.msra.mxu0 %v4965
    %5085 = vmatpush.bf16.msra.mxu0 %v4963
    %5086 = vmatpush.bf16.msra.mxu0 %v4961
    %5087 = vmatpush.bf16.msra.mxu0 %v4959
    %5088 = vmatpush.bf16.msra.mxu0 %v4957
    %5089 = vmatpush.bf16.msra.mxu0 %v4955
    %5090 = vmatpush.bf16.msra.mxu0 %v4953
    %5091 = vmatpush.bf16.msra.mxu0 %v4951
    %5092 = vmatmul.bf16.gmra.mxu0 %v4784
    %v5093 = vpop.f32.mrf.mxu0
    %v5094 = vadd.f32 %v5076, %v5093
    %v5095 = vpop.f32.mrf.mxu0
    %v5096 = vadd.f32 %v5078, %v5095
    %5097 = vmatmul.bf16.gmra.mxu0 %v4787
    %v5098 = vpop.f32.mrf.mxu0
    %v5099 = vadd.f32 %v5081, %v5098
    %v5100 = vpop.f32.mrf.mxu0
    %5101 = vdwg.mxu0
    %5102 = vmatpush.bf16.msra.mxu0 0
    %5103 = vmatpush.bf16.msra.mxu0 0
    %5104 = vmatpush.bf16.msra.mxu0 0
    %5105 = vmatpush.bf16.msra.mxu0 0
    %5106 = vmatpush.bf16.msra.mxu0 0
    %5107 = vmatpush.bf16.msra.mxu0 0
    %5108 = vmatpush.bf16.msra.mxu0 %v4969
    %5109 = vmatpush.bf16.msra.mxu0 %v4967
    %5110 = vmatmul.bf16.gmra.mxu0 %v5007
    %v5111 = vpop.f32.mrf.mxu0
    %v5112 = vadd.f32 %v5094, %v5111
    %v5113 = vpop.f32.mrf.mxu0
    %v5114 = vadd.f32 %v5096, %v5113
    %5115 = vmatmul.bf16.gmra.mxu0 %v5010
    %v5116 = vpop.f32.mrf.mxu0
    %v5117 = vadd.f32 %v5099, %v5116
    %v5118 = vpop.f32.mrf.mxu0
    %5119 = vdwg.mxu0
    %v5120 = vadd.f32 %v4649, %v5058
    %v5121 = vadd.f32 %v4703, %v5112
    %v5122 = vadd.f32 %v4651, %v5060
    %v5123 = vadd.f32 %v4705, %v5114
    %v5124 = vadd.f32 %v4654, %v5063
    %v5125 = vadd.f32 %v4708, %v5117
    %s5126 = scalar_lea.vmem %s4, 36
    %v5127 = vld [vmem:[%s5126] sm:$0xf]
    %v5128 = vld [vmem:[%s5126 + $0x4] sm:$0xf]
    %v5129 = vld [vmem:[%s5126 + $0x8] sm:$0xf]
    %v5133 = vunpack.c.l.b16 %v5127
    %v5134 = vunpack.c.l.b16 %v5128
    %v5135 = vunpack.c.l.b16 %v5129
    %v5136 = vpack.c.b16 %v5134, %v5133
    %v5137 = vpack.c.b16 %v5135, %v5135
    %v5139 = vsel %vm3894, %v5136, 0
    %v5142 = vsel %vm3894, %v5137, 0
    %5144 = vmatpush.bf16.msra.mxu0 0
    %5145 = vmatpush.bf16.msra.mxu0 0
    %5146 = vmatpush.bf16.msra.mxu0 0
    %5147 = vmatpush.bf16.msra.mxu0 %v3903
    %5148 = vmatpush.bf16.msra.mxu0 %v3877
    %5149 = vmatpush.bf16.msra.mxu0 %v3874
    %5150 = vmatpush.bf16.msra.mxu0 %v3871
    %5151 = vmatpush.bf16.msra.mxu0 %v3868
    %5152 = vmatmul.bf16.gmra.mxu0 %v5139
    %v5153 = vpop.f32.mrf.mxu0
    %v5154 = vadd.f32 0.0, %v5153
    %v5155 = vpop.f32.mrf.mxu0
    %v5156 = vadd.f32 0.0, %v5155
    %5157 = vmatmul.bf16.gmra.mxu0 %v5142
    %v5158 = vpop.f32.mrf.mxu0
    %v5159 = vadd.f32 0.0, %v5158
    %v5160 = vpop.f32.mrf.mxu0
    %5161 = vdwg.mxu0
    %5162 = vmatpush.bf16.msra.mxu0 0
    %5163 = vmatpush.bf16.msra.mxu0 0
    %5164 = vmatpush.bf16.msra.mxu0 0
    %5165 = vmatpush.bf16.msra.mxu0 %v3906
    %5166 = vmatpush.bf16.msra.mxu0 %v3878
    %5167 = vmatpush.bf16.msra.mxu0 %v3875
    %5168 = vmatpush.bf16.msra.mxu0 %v3872
    %5169 = vmatpush.bf16.msra.mxu0 %v3869
    %5170 = vmatmul.bf16.gmra.mxu0 %v5139
    %v5171 = vpop.f32.mrf.mxu0
    %v5172 = vadd.f32 0.0, %v5171
    %v5173 = vpop.f32.mrf.mxu0
    %v5174 = vadd.f32 0.0, %v5173
    %5175 = vmatmul.bf16.gmra.mxu0 %v5142
    %v5176 = vpop.f32.mrf.mxu0
    %v5177 = vadd.f32 0.0, %v5176
    %v5178 = vpop.f32.mrf.mxu0
    %5179 = vdwg.mxu0
    %5180 = vmatpush.bf16.msra.mxu0 0
    %5181 = vmatpush.bf16.msra.mxu0 0
    %5182 = vmatpush.bf16.msra.mxu0 0
    %5183 = vmatpush.bf16.msra.mxu0 %v3909
    %5184 = vmatpush.bf16.msra.mxu0 %v3879
    %5185 = vmatpush.bf16.msra.mxu0 %v3876
    %5186 = vmatpush.bf16.msra.mxu0 %v3873
    %5187 = vmatpush.bf16.msra.mxu0 %v3870
    %5188 = vmatmul.bf16.gmra.mxu0 %v5139
    %v5189 = vpop.f32.mrf.mxu0
    %v5190 = vadd.f32 0.0, %v5189
    %v5191 = vpop.f32.mrf.mxu0
    %v5192 = vadd.f32 0.0, %v5191
    %5193 = vmatmul.bf16.gmra.mxu0 %v5142
    %v5194 = vpop.f32.mrf.mxu0
    %v5195 = vadd.f32 0.0, %v5194
    %v5196 = vpop.f32.mrf.mxu0
    %5197 = vdwg.mxu0
    %v5198 = vpack.c.bf16 %v5156, %v5154
    %v5199 = vpack.c.bf16 %v5174, %v5172
    %v5200 = vpack.c.bf16 %v5192, %v5190
    %v5201 = vpack.c.bf16 %v5159, %v5159
    %v5202 = vpack.c.bf16 %v5177, %v5177
    %v5203 = vpack.c.bf16 %v5195, %v5195
    %s5204 = scalar_lea.vmem [#allocation7], 864
    %v5205 = vld [vmem:[%s5204] sm:$0xff]
    %v5206 = vld [vmem:[%s5204 + $0x8] sm:$0xff]
    %v5207 = vld [vmem:[%s5204 + $0x10] sm:$0xff]
    %v5208 = vld [vmem:[%s5204 + $0x18] sm:$0xff]
    %v5209 = vld [vmem:[%s5204 + $0x20] sm:$0xff]
    %v5210 = vld [vmem:[%s5204 + $0x28] sm:$0xff]
    %v5211 = vld [vmem:[%s5204 + $0x30] sm:$0xff]
    %v5212 = vld [vmem:[%s5204 + $0x38] sm:$0xff]
    %v5213 = vld [vmem:[%s5204 + $0x40] sm:$0xff]
    %v5214 = vld [vmem:[%s5204 + $0x48] sm:$0xff]
    %v5215 = vld [vmem:[%s5204 + $0x50] sm:$0xff]
    %v5216 = vld [vmem:[%s5204 + $0x58] sm:$0xff]
    %v5217 = vld [vmem:[%s5204 + $0x60] sm:$0xff]
    %v5218 = vld [vmem:[%s5204 + $0x68] sm:$0xff]
    %v5219 = vld [vmem:[%s5204 + $0x70] sm:$0xff]
    %v5220 = vld [vmem:[%s5204 + $0x78] sm:$0xff]
    %v5221 = vld [vmem:[%s5204 + $0x80] sm:$0xff]
    %v5222 = vld [vmem:[%s5204 + $0x88] sm:$0xff]
    %v5223 = vld [vmem:[%s5204 + $0x90] sm:$0xff]
    %v5224 = vld [vmem:[%s5204 + $0x98] sm:$0xff]
    %v5225 = vld [vmem:[%s5204 + $0xa0] sm:$0xff]
    %v5226 = vld [vmem:[%s5204 + $0xa8] sm:$0xff]
    %v5227 = vld [vmem:[%s5204 + $0xb0] sm:$0xff]
    %v5228 = vld [vmem:[%s5204 + $0xb8] sm:$0xff]
    %v5229 = vld [vmem:[%s5204 + $0xc0] sm:$0xff]
    %v5230 = vld [vmem:[%s5204 + $0xc8] sm:$0xff]
    %v5231 = vld [vmem:[%s5204 + $0xd0] sm:$0xff]
    %v5232 = vld [vmem:[%s5204 + $0xd8] sm:$0xff]
    %v5233 = vld [vmem:[%s5204 + $0xe0] sm:$0xff]
    %v5234 = vld [vmem:[%s5204 + $0xe8] sm:$0xff]
    %v5235 = vld [vmem:[%s5204 + $0xf0] sm:$0xff]
    %v5236 = vld [vmem:[%s5204 + $0xf8] sm:$0xff]
    %v5237 = vld [vmem:[%s5204 + $0x100] sm:$0xff]
    %v5238 = vld [vmem:[%s5204 + $0x108] sm:$0xff]
    %v5239 = vld [vmem:[%s5204 + $0x110] sm:$0xff]
    %v5240 = vld [vmem:[%s5204 + $0x118] sm:$0xff]
    %v5277 = vunpack.c.l.b16 %v5205
    %v5278 = vunpack.c.h.b16 %v5205
    %v5279 = vunpack.c.l.b16 %v5206
    %v5280 = vunpack.c.h.b16 %v5206
    %v5281 = vunpack.c.l.b16 %v5207
    %v5282 = vunpack.c.h.b16 %v5207
    %v5283 = vunpack.c.l.b16 %v5208
    %v5284 = vunpack.c.h.b16 %v5208
    %v5285 = vunpack.c.l.b16 %v5209
    %v5286 = vunpack.c.h.b16 %v5209
    %v5287 = vunpack.c.l.b16 %v5210
    %v5288 = vunpack.c.h.b16 %v5210
    %v5289 = vunpack.c.l.b16 %v5211
    %v5290 = vunpack.c.h.b16 %v5211
    %v5291 = vunpack.c.l.b16 %v5212
    %v5292 = vunpack.c.h.b16 %v5212
    %v5293 = vunpack.c.l.b16 %v5213
    %v5294 = vunpack.c.h.b16 %v5213
    %v5295 = vunpack.c.l.b16 %v5214
    %v5296 = vunpack.c.h.b16 %v5214
    %v5297 = vunpack.c.l.b16 %v5215
    %v5298 = vunpack.c.h.b16 %v5215
    %v5299 = vunpack.c.l.b16 %v5216
    %v5300 = vunpack.c.h.b16 %v5216
    %v5301 = vunpack.c.l.b16 %v5217
    %v5302 = vunpack.c.h.b16 %v5217
    %v5303 = vunpack.c.l.b16 %v5218
    %v5304 = vunpack.c.h.b16 %v5218
    %v5305 = vunpack.c.l.b16 %v5219
    %v5306 = vunpack.c.h.b16 %v5219
    %v5307 = vunpack.c.l.b16 %v5220
    %v5308 = vunpack.c.h.b16 %v5220
    %v5309 = vunpack.c.l.b16 %v5221
    %v5310 = vunpack.c.h.b16 %v5221
    %v5311 = vunpack.c.l.b16 %v5222
    %v5312 = vunpack.c.h.b16 %v5222
    %v5313 = vunpack.c.l.b16 %v5223
    %v5314 = vunpack.c.h.b16 %v5223
    %v5315 = vunpack.c.l.b16 %v5224
    %v5316 = vunpack.c.h.b16 %v5224
    %v5317 = vunpack.c.l.b16 %v5225
    %v5318 = vunpack.c.h.b16 %v5225
    %v5319 = vunpack.c.l.b16 %v5226
    %v5320 = vunpack.c.h.b16 %v5226
    %v5321 = vunpack.c.l.b16 %v5227
    %v5322 = vunpack.c.h.b16 %v5227
    %v5323 = vunpack.c.l.b16 %v5228
    %v5324 = vunpack.c.h.b16 %v5228
    %v5325 = vunpack.c.l.b16 %v5229
    %v5326 = vunpack.c.h.b16 %v5229
    %v5327 = vunpack.c.l.b16 %v5230
    %v5328 = vunpack.c.h.b16 %v5230
    %v5329 = vunpack.c.l.b16 %v5231
    %v5330 = vunpack.c.h.b16 %v5231
    %v5331 = vunpack.c.l.b16 %v5232
    %v5332 = vunpack.c.h.b16 %v5232
    %v5333 = vunpack.c.l.b16 %v5233
    %v5334 = vunpack.c.h.b16 %v5233
    %v5335 = vunpack.c.l.b16 %v5234
    %v5336 = vunpack.c.h.b16 %v5234
    %v5337 = vunpack.c.l.b16 %v5235
    %v5338 = vunpack.c.h.b16 %v5235
    %v5339 = vunpack.c.l.b16 %v5236
    %v5340 = vunpack.c.h.b16 %v5236
    %v5341 = vunpack.c.l.b16 %v5237
    %v5342 = vunpack.c.h.b16 %v5237
    %v5343 = vunpack.c.l.b16 %v5238
    %v5344 = vunpack.c.h.b16 %v5238
    %v5345 = vunpack.c.l.b16 %v5239
    %v5346 = vunpack.c.h.b16 %v5239
    %v5347 = vunpack.c.l.b16 %v5240
    %v5348 = vunpack.c.h.b16 %v5240
    %v5349 = vpack.c.b16 %v5279, %v5277
    %v5350 = vpack.c.b16 %v5280, %v5278
    %v5351 = vpack.c.b16 %v5283, %v5281
    %v5352 = vpack.c.b16 %v5284, %v5282
    %v5353 = vpack.c.b16 %v5287, %v5285
    %v5354 = vpack.c.b16 %v5288, %v5286
    %v5355 = vpack.c.b16 %v5291, %v5289
    %v5356 = vpack.c.b16 %v5292, %v5290
    %v5357 = vpack.c.b16 %v5295, %v5293
    %v5358 = vpack.c.b16 %v5296, %v5294
    %v5359 = vpack.c.b16 %v5299, %v5297
    %v5360 = vpack.c.b16 %v5300, %v5298
    %v5361 = vpack.c.b16 %v5303, %v5301
    %v5362 = vpack.c.b16 %v5304, %v5302
    %v5363 = vpack.c.b16 %v5307, %v5305
    %v5364 = vpack.c.b16 %v5308, %v5306
    %v5365 = vpack.c.b16 %v5311, %v5309
    %v5366 = vpack.c.b16 %v5312, %v5310
    %v5367 = vpack.c.b16 %v5315, %v5313
    %v5368 = vpack.c.b16 %v5316, %v5314
    %v5369 = vpack.c.b16 %v5319, %v5317
    %v5370 = vpack.c.b16 %v5320, %v5318
    %v5371 = vpack.c.b16 %v5323, %v5321
    %v5372 = vpack.c.b16 %v5324, %v5322
    %v5373 = vpack.c.b16 %v5327, %v5325
    %v5374 = vpack.c.b16 %v5328, %v5326
    %v5375 = vpack.c.b16 %v5331, %v5329
    %v5376 = vpack.c.b16 %v5332, %v5330
    %v5377 = vpack.c.b16 %v5335, %v5333
    %v5378 = vpack.c.b16 %v5336, %v5334
    %v5379 = vpack.c.b16 %v5339, %v5337
    %v5380 = vpack.c.b16 %v5340, %v5338
    %v5381 = vpack.c.b16 %v5343, %v5341
    %v5382 = vpack.c.b16 %v5344, %v5342
    %v5383 = vpack.c.b16 %v5347, %v5345
    %v5384 = vpack.c.b16 %v5348, %v5346
    %v5422 = vsel %vm4302, %v5200, 0
    %v5425 = vsel %vm4302, %v5203, 0
    %5427 = vmatpush.bf16.msra.mxu0 %v5363
    %5428 = vmatpush.bf16.msra.mxu0 %v5361
    %5429 = vmatpush.bf16.msra.mxu0 %v5359
    %5430 = vmatpush.bf16.msra.mxu0 %v5357
    %5431 = vmatpush.bf16.msra.mxu0 %v5355
    %5432 = vmatpush.bf16.msra.mxu0 %v5353
    %5433 = vmatpush.bf16.msra.mxu0 %v5351
    %5434 = vmatpush.bf16.msra.mxu0 %v5349
    %5435 = vmatmul.bf16.gmra.mxu0 %v5198
    %v5436 = vpop.f32.mrf.mxu0
    %v5437 = vadd.f32 0.0, %v5436
    %v5438 = vpop.f32.mrf.mxu0
    %v5439 = vadd.f32 0.0, %v5438
    %5440 = vmatmul.bf16.gmra.mxu0 %v5201
    %v5441 = vpop.f32.mrf.mxu0
    %v5442 = vadd.f32 0.0, %v5441
    %v5443 = vpop.f32.mrf.mxu0
    %5444 = vdwg.mxu0
    %5445 = vmatpush.bf16.msra.mxu0 %v5379
    %5446 = vmatpush.bf16.msra.mxu0 %v5377
    %5447 = vmatpush.bf16.msra.mxu0 %v5375
    %5448 = vmatpush.bf16.msra.mxu0 %v5373
    %5449 = vmatpush.bf16.msra.mxu0 %v5371
    %5450 = vmatpush.bf16.msra.mxu0 %v5369
    %5451 = vmatpush.bf16.msra.mxu0 %v5367
    %5452 = vmatpush.bf16.msra.mxu0 %v5365
    %5453 = vmatmul.bf16.gmra.mxu0 %v5199
    %v5454 = vpop.f32.mrf.mxu0
    %v5455 = vadd.f32 %v5437, %v5454
    %v5456 = vpop.f32.mrf.mxu0
    %v5457 = vadd.f32 %v5439, %v5456
    %5458 = vmatmul.bf16.gmra.mxu0 %v5202
    %v5459 = vpop.f32.mrf.mxu0
    %v5460 = vadd.f32 %v5442, %v5459
    %v5461 = vpop.f32.mrf.mxu0
    %5462 = vdwg.mxu0
    %5463 = vmatpush.bf16.msra.mxu0 0
    %5464 = vmatpush.bf16.msra.mxu0 0
    %5465 = vmatpush.bf16.msra.mxu0 0
    %5466 = vmatpush.bf16.msra.mxu0 0
    %5467 = vmatpush.bf16.msra.mxu0 0
    %5468 = vmatpush.bf16.msra.mxu0 0
    %5469 = vmatpush.bf16.msra.mxu0 %v5383
    %5470 = vmatpush.bf16.msra.mxu0 %v5381
    %5471 = vmatmul.bf16.gmra.mxu0 %v5422
    %v5472 = vpop.f32.mrf.mxu0
    %v5473 = vadd.f32 %v5455, %v5472
    %v5474 = vpop.f32.mrf.mxu0
    %v5475 = vadd.f32 %v5457, %v5474
    %5476 = vmatmul.bf16.gmra.mxu0 %v5425
    %v5477 = vpop.f32.mrf.mxu0
    %v5478 = vadd.f32 %v5460, %v5477
    %v5479 = vpop.f32.mrf.mxu0
    %5480 = vdwg.mxu0
    %5481 = vmatpush.bf16.msra.mxu0 %v5364
    %5482 = vmatpush.bf16.msra.mxu0 %v5362
    %5483 = vmatpush.bf16.msra.mxu0 %v5360
    %5484 = vmatpush.bf16.msra.mxu0 %v5358
    %5485 = vmatpush.bf16.msra.mxu0 %v5356
    %5486 = vmatpush.bf16.msra.mxu0 %v5354
    %5487 = vmatpush.bf16.msra.mxu0 %v5352
    %5488 = vmatpush.bf16.msra.mxu0 %v5350
    %5489 = vmatmul.bf16.gmra.mxu0 %v5198
    %v5490 = vpop.f32.mrf.mxu0
    %v5491 = vadd.f32 0.0, %v5490
    %v5492 = vpop.f32.mrf.mxu0
    %v5493 = vadd.f32 0.0, %v5492
    %5494 = vmatmul.bf16.gmra.mxu0 %v5201
    %v5495 = vpop.f32.mrf.mxu0
    %v5496 = vadd.f32 0.0, %v5495
    %v5497 = vpop.f32.mrf.mxu0
    %5498 = vdwg.mxu0
    %5499 = vmatpush.bf16.msra.mxu0 %v5380
    %5500 = vmatpush.bf16.msra.mxu0 %v5378
    %5501 = vmatpush.bf16.msra.mxu0 %v5376
    %5502 = vmatpush.bf16.msra.mxu0 %v5374
    %5503 = vmatpush.bf16.msra.mxu0 %v5372
    %5504 = vmatpush.bf16.msra.mxu0 %v5370
    %5505 = vmatpush.bf16.msra.mxu0 %v5368
    %5506 = vmatpush.bf16.msra.mxu0 %v5366
    %5507 = vmatmul.bf16.gmra.mxu0 %v5199
    %v5508 = vpop.f32.mrf.mxu0
    %v5509 = vadd.f32 %v5491, %v5508
    %v5510 = vpop.f32.mrf.mxu0
    %v5511 = vadd.f32 %v5493, %v5510
    %5512 = vmatmul.bf16.gmra.mxu0 %v5202
    %v5513 = vpop.f32.mrf.mxu0
    %v5514 = vadd.f32 %v5496, %v5513
    %v5515 = vpop.f32.mrf.mxu0
    %5516 = vdwg.mxu0
    %5517 = vmatpush.bf16.msra.mxu0 0
    %5518 = vmatpush.bf16.msra.mxu0 0
    %5519 = vmatpush.bf16.msra.mxu0 0
    %5520 = vmatpush.bf16.msra.mxu0 0
    %5521 = vmatpush.bf16.msra.mxu0 0
    %5522 = vmatpush.bf16.msra.mxu0 0
    %5523 = vmatpush.bf16.msra.mxu0 %v5384
    %5524 = vmatpush.bf16.msra.mxu0 %v5382
    %5525 = vmatmul.bf16.gmra.mxu0 %v5422
    %v5526 = vpop.f32.mrf.mxu0
    %v5527 = vadd.f32 %v5509, %v5526
    %v5528 = vpop.f32.mrf.mxu0
    %v5529 = vadd.f32 %v5511, %v5528
    %5530 = vmatmul.bf16.gmra.mxu0 %v5425
    %v5531 = vpop.f32.mrf.mxu0
    %v5532 = vadd.f32 %v5514, %v5531
    %v5533 = vpop.f32.mrf.mxu0
    %5534 = vdwg.mxu0
    %v5535 = vadd.f32 %v5120, %v5473
    %v5536 = vadd.f32 %v5121, %v5527
    %v5537 = vadd.f32 %v5122, %v5475
    %v5538 = vadd.f32 %v5123, %v5529
    %v5539 = vadd.f32 %v5124, %v5478
    %v5540 = vadd.f32 %v5125, %v5532
    %v5541 = vld [vmem:[%s6] sm:$0x3]
    %v5543 = vperm.slane %v5541, 0
    %v5544 = vperm.slane %v5541, 1
    %v5547 = vadd.f32 %v5535, %v5543
    %v5548 = vadd.f32 %v5536, %v5544
    %v5549 = vadd.f32 %v5537, %v5543
    %v5550 = vadd.f32 %v5538, %v5544
    %v5551 = vadd.f32 %v5539, %v5543
    %v5552 = vadd.f32 %v5540, %v5544
    %v5553 = vmax.f32 %v5547, 0.0
    %v5554 = vmax.f32 %v5548, 0.0
    %v5555 = vmax.f32 %v5549, 0.0
    %v5556 = vmax.f32 %v5550, 0.0
    %v5557 = vmax.f32 %v5551, 0.0
    %v5558 = vmax.f32 %v5552, 0.0
    %v5559 = vpack.c.bf16 %v5555, %v5553
    %v5560 = vpack.c.bf16 %v5556, %v5554
    %v5561 = vpack.c.bf16 %v5557, %v5557
    %v5562 = vpack.c.bf16 %v5558, %v5558
    %v5563 = vld [vmem:[%s7] sm:$0xf]
    %vm5564 = vcmask 195584
    %v5566 = vsel %vm5564, %v5563, 0
    %v5569 = vsel %vm3901, %v5561, 0
    %v5572 = vsel %vm3901, %v5562, 0
    %5574 = vmatpush.bf16.msra.mxu0 0
    %5575 = vmatpush.bf16.msra.mxu0 0
    %5576 = vmatpush.bf16.msra.mxu0 0
    %5577 = vmatpush.bf16.msra.mxu0 0
    %5578 = vmatpush.bf16.msra.mxu0 0
    %5579 = vmatpush.bf16.msra.mxu0 0
    %5580 = vmatpush.bf16.msra.mxu0 %v5569
    %5581 = vmatpush.bf16.msra.mxu0 %v5559
    %5582 = vmatmul.bf16.gmra.mxu0 %v5566
    %v5583 = vpop.f32.mrf.mxu0
    %v5584 = vadd.f32 0.0, %v5583
    %v5585 = vpop.f32.mrf.mxu0
    %5586 = vdwg.mxu0
    %5587 = vmatpush.bf16.msra.mxu0 0
    %5588 = vmatpush.bf16.msra.mxu0 0
    %5589 = vmatpush.bf16.msra.mxu0 0
    %5590 = vmatpush.bf16.msra.mxu0 0
    %5591 = vmatpush.bf16.msra.mxu0 0
    %5592 = vmatpush.bf16.msra.mxu0 0
    %5593 = vmatpush.bf16.msra.mxu0 %v5572
    %5594 = vmatpush.bf16.msra.mxu0 %v5560
    %5595 = vmatmul.bf16.gmra.mxu0 %v5566
    %v5596 = vpop.f32.mrf.mxu0
    %v5597 = vadd.f32 0.0, %v5596
    %v5598 = vpop.f32.mrf.mxu0
    %5599 = vdwg.mxu0
    %v5600 = vpack.c.bf16 %v5584, %v5584
    %v5601 = vpack.c.bf16 %v5597, %v5597
    %v5602 = vld [vmem:[%s8] sm:$0xf]
    %v5603 = vld [vmem:[%s8 + $0x4] sm:$0xf]
    %v5604 = vld [vmem:[%s8 + $0x8] sm:$0xf]
    %v5605 = vld [vmem:[%s8 + $0xc] sm:$0xf]
    %v5606 = vld [vmem:[%s8 + $0x10] sm:$0xf]
    %v5607 = vld [vmem:[%s8 + $0x14] sm:$0xf]
    %v5608 = vld [vmem:[%s8 + $0x18] sm:$0xf]
    %v5609 = vld [vmem:[%s8 + $0x1c] sm:$0xf]
    %v5610 = vld [vmem:[%s8 + $0x20] sm:$0xf]
    %v5611 = vld [vmem:[%s8 + $0x24] sm:$0xf]
    %v5612 = vld [vmem:[%s8 + $0x28] sm:$0xf]
    %v5613 = vld [vmem:[%s8 + $0x2c] sm:$0xf]
    %v5614 = vld [vmem:[%s8 + $0x30] sm:$0xf]
    %v5615 = vld [vmem:[%s8 + $0x34] sm:$0xf]
    %v5616 = vld [vmem:[%s8 + $0x38] sm:$0xf]
    %v5617 = vld [vmem:[%s8 + $0x3c] sm:$0xf]
    %v5618 = vld [vmem:[%s8 + $0x40] sm:$0xf]
    %v5619 = vld [vmem:[%s8 + $0x44] sm:$0xf]
    %v5620 = vld [vmem:[%s8 + $0x48] sm:$0xf]
    %v5621 = vld [vmem:[%s8 + $0x4c] sm:$0xf]
    %v5622 = vld [vmem:[%s8 + $0x50] sm:$0xf]
    %v5623 = vld [vmem:[%s8 + $0x54] sm:$0xf]
    %v5624 = vld [vmem:[%s8 + $0x58] sm:$0xf]
    %v5625 = vld [vmem:[%s8 + $0x5c] sm:$0xf]
    %s5626 = scalar_lea.vmem %s7, 4
    %v5627 = vld [vmem:[%s5626] sm:$0xf]
    %v5629 = vsel %vm5564, %v5627, 0
    %5631 = vmatpush.bf16.msra.mxu0 0
    %5632 = vmatpush.bf16.msra.mxu0 0
    %5633 = vmatpush.bf16.msra.mxu0 0
    %5634 = vmatpush.bf16.msra.mxu0 0
    %5635 = vmatpush.bf16.msra.mxu0 0
    %5636 = vmatpush.bf16.msra.mxu0 0
    %5637 = vmatpush.bf16.msra.mxu0 %v5569
    %5638 = vmatpush.bf16.msra.mxu0 %v5559
    %5639 = vmatmul.bf16.gmra.mxu0 %v5629
    %v5640 = vpop.f32.mrf.mxu0
    %v5641 = vadd.f32 0.0, %v5640
    %v5642 = vpop.f32.mrf.mxu0
    %5643 = vdwg.mxu0
    %5644 = vmatpush.bf16.msra.mxu0 0
    %5645 = vmatpush.bf16.msra.mxu0 0
    %5646 = vmatpush.bf16.msra.mxu0 0
    %5647 = vmatpush.bf16.msra.mxu0 0
    %5648 = vmatpush.bf16.msra.mxu0 0
    %5649 = vmatpush.bf16.msra.mxu0 0
    %5650 = vmatpush.bf16.msra.mxu0 %v5572
    %5651 = vmatpush.bf16.msra.mxu0 %v5560
    %5652 = vmatmul.bf16.gmra.mxu0 %v5629
    %v5653 = vpop.f32.mrf.mxu0
    %v5654 = vadd.f32 0.0, %v5653
    %v5655 = vpop.f32.mrf.mxu0
    %5656 = vdwg.mxu0
    %v5657 = vpack.c.bf16 %v5641, %v5641
    %v5658 = vpack.c.bf16 %v5654, %v5654
    %s5659 = scalar_lea.vmem %s8, 96
    %v5660 = vld [vmem:[%s5659] sm:$0xf]
    %v5661 = vld [vmem:[%s5659 + $0x4] sm:$0xf]
    %v5662 = vld [vmem:[%s5659 + $0x8] sm:$0xf]
    %v5663 = vld [vmem:[%s5659 + $0xc] sm:$0xf]
    %v5664 = vld [vmem:[%s5659 + $0x10] sm:$0xf]
    %v5665 = vld [vmem:[%s5659 + $0x14] sm:$0xf]
    %v5666 = vld [vmem:[%s5659 + $0x18] sm:$0xf]
    %v5667 = vld [vmem:[%s5659 + $0x1c] sm:$0xf]
    %v5668 = vld [vmem:[%s5659 + $0x20] sm:$0xf]
    %v5669 = vld [vmem:[%s5659 + $0x24] sm:$0xf]
    %v5670 = vld [vmem:[%s5659 + $0x28] sm:$0xf]
    %v5671 = vld [vmem:[%s5659 + $0x2c] sm:$0xf]
    %v5672 = vld [vmem:[%s5659 + $0x30] sm:$0xf]
    %v5673 = vld [vmem:[%s5659 + $0x34] sm:$0xf]
    %v5674 = vld [vmem:[%s5659 + $0x38] sm:$0xf]
    %v5675 = vld [vmem:[%s5659 + $0x3c] sm:$0xf]
    %v5676 = vld [vmem:[%s5659 + $0x40] sm:$0xf]
    %v5677 = vld [vmem:[%s5659 + $0x44] sm:$0xf]
    %v5678 = vld [vmem:[%s5659 + $0x48] sm:$0xf]
    %v5679 = vld [vmem:[%s5659 + $0x4c] sm:$0xf]
    %v5680 = vld [vmem:[%s5659 + $0x50] sm:$0xf]
    %v5681 = vld [vmem:[%s5659 + $0x54] sm:$0xf]
    %v5682 = vld [vmem:[%s5659 + $0x58] sm:$0xf]
    %v5683 = vld [vmem:[%s5659 + $0x5c] sm:$0xf]
    %v5708 = vunpack.c.l.b16 %v5660
    %v5709 = vunpack.c.l.b16 %v5661
    %v5710 = vunpack.c.l.b16 %v5662
    %v5711 = vunpack.c.l.b16 %v5663
    %v5712 = vunpack.c.l.b16 %v5664
    %v5713 = vunpack.c.l.b16 %v5665
    %v5714 = vunpack.c.l.b16 %v5666
    %v5715 = vunpack.c.l.b16 %v5667
    %v5716 = vunpack.c.l.b16 %v5668
    %v5717 = vunpack.c.l.b16 %v5669
    %v5718 = vunpack.c.l.b16 %v5670
    %v5719 = vunpack.c.l.b16 %v5671
    %v5720 = vunpack.c.l.b16 %v5672
    %v5721 = vunpack.c.l.b16 %v5673
    %v5722 = vunpack.c.l.b16 %v5674
    %v5723 = vunpack.c.l.b16 %v5675
    %v5724 = vunpack.c.l.b16 %v5676
    %v5725 = vunpack.c.l.b16 %v5677
    %v5726 = vunpack.c.l.b16 %v5678
    %v5727 = vunpack.c.l.b16 %v5679
    %v5728 = vunpack.c.l.b16 %v5680
    %v5729 = vunpack.c.l.b16 %v5681
    %v5730 = vunpack.c.l.b16 %v5682
    %v5731 = vunpack.c.l.b16 %v5683
    %v5732 = vpack.c.b16 %v5709, %v5708
    %v5733 = vpack.c.b16 %v5711, %v5710
    %v5734 = vpack.c.b16 %v5713, %v5712
    %v5735 = vpack.c.b16 %v5715, %v5714
    %v5736 = vpack.c.b16 %v5717, %v5716
    %v5737 = vpack.c.b16 %v5719, %v5718
    %v5738 = vpack.c.b16 %v5721, %v5720
    %v5739 = vpack.c.b16 %v5723, %v5722
    %v5740 = vpack.c.b16 %v5725, %v5724
    %v5741 = vpack.c.b16 %v5727, %v5726
    %v5742 = vpack.c.b16 %v5729, %v5728
    %v5743 = vpack.c.b16 %v5731, %v5730
    %v5757 = vsel %vm348, %v5658, 0
    %5759 = vmatpush.bf16.msra.mxu0 %v5739
    %5760 = vmatpush.bf16.msra.mxu0 %v5738
    %5761 = vmatpush.bf16.msra.mxu0 %v5737
    %5762 = vmatpush.bf16.msra.mxu0 %v5736
    %5763 = vmatpush.bf16.msra.mxu0 %v5735
    %5764 = vmatpush.bf16.msra.mxu0 %v5734
    %5765 = vmatpush.bf16.msra.mxu0 %v5733
    %5766 = vmatpush.bf16.msra.mxu0 %v5732
    %5767 = vmatmul.bf16.gmra.mxu0 %v5657
    %v5768 = vpop.f32.mrf.mxu0
    %v5769 = vadd.f32 0.0, %v5768
    %v5770 = vpop.f32.mrf.mxu0
    %5771 = vdwg.mxu0
    %5772 = vmatpush.bf16.msra.mxu0 0
    %5773 = vmatpush.bf16.msra.mxu0 0
    %5774 = vmatpush.bf16.msra.mxu0 0
    %5775 = vmatpush.bf16.msra.mxu0 0
    %5776 = vmatpush.bf16.msra.mxu0 %v5743
    %5777 = vmatpush.bf16.msra.mxu0 %v5742
    %5778 = vmatpush.bf16.msra.mxu0 %v5741
    %5779 = vmatpush.bf16.msra.mxu0 %v5740
    %5780 = vmatmul.bf16.gmra.mxu0 %v5757
    %v5781 = vpop.f32.mrf.mxu0
    %v5782 = vadd.f32 %v5769, %v5781
    %v5783 = vpop.f32.mrf.mxu0
    %5784 = vdwg.mxu0
    %v5809 = vunpack.c.l.b16 %v5602
    %v5810 = vunpack.c.l.b16 %v5603
    %v5811 = vunpack.c.l.b16 %v5604
    %v5812 = vunpack.c.l.b16 %v5605
    %v5813 = vunpack.c.l.b16 %v5606
    %v5814 = vunpack.c.l.b16 %v5607
    %v5815 = vunpack.c.l.b16 %v5608
    %v5816 = vunpack.c.l.b16 %v5609
    %v5817 = vunpack.c.l.b16 %v5610
    %v5818 = vunpack.c.l.b16 %v5611
    %v5819 = vunpack.c.l.b16 %v5612
    %v5820 = vunpack.c.l.b16 %v5613
    %v5821 = vunpack.c.l.b16 %v5614
    %v5822 = vunpack.c.l.b16 %v5615
    %v5823 = vunpack.c.l.b16 %v5616
    %v5824 = vunpack.c.l.b16 %v5617
    %v5825 = vunpack.c.l.b16 %v5618
    %v5826 = vunpack.c.l.b16 %v5619
    %v5827 = vunpack.c.l.b16 %v5620
    %v5828 = vunpack.c.l.b16 %v5621
    %v5829 = vunpack.c.l.b16 %v5622
    %v5830 = vunpack.c.l.b16 %v5623
    %v5831 = vunpack.c.l.b16 %v5624
    %v5832 = vunpack.c.l.b16 %v5625
    %v5833 = vpack.c.b16 %v5810, %v5809
    %v5834 = vpack.c.b16 %v5812, %v5811
    %v5835 = vpack.c.b16 %v5814, %v5813
    %v5836 = vpack.c.b16 %v5816, %v5815
    %v5837 = vpack.c.b16 %v5818, %v5817
    %v5838 = vpack.c.b16 %v5820, %v5819
    %v5839 = vpack.c.b16 %v5822, %v5821
    %v5840 = vpack.c.b16 %v5824, %v5823
    %v5841 = vpack.c.b16 %v5826, %v5825
    %v5842 = vpack.c.b16 %v5828, %v5827
    %v5843 = vpack.c.b16 %v5830, %v5829
    %v5844 = vpack.c.b16 %v5832, %v5831
    %v5858 = vsel %vm348, %v5601, 0
    %5860 = vmatpush.bf16.msra.mxu0 %v5840
    %5861 = vmatpush.bf16.msra.mxu0 %v5839
    %5862 = vmatpush.bf16.msra.mxu0 %v5838
    %5863 = vmatpush.bf16.msra.mxu0 %v5837
    %5864 = vmatpush.bf16.msra.mxu0 %v5836
    %5865 = vmatpush.bf16.msra.mxu0 %v5835
    %5866 = vmatpush.bf16.msra.mxu0 %v5834
    %5867 = vmatpush.bf16.msra.mxu0 %v5833
    %5868 = vmatmul.bf16.gmra.mxu0 %v5600
    %v5869 = vpop.f32.mrf.mxu0
    %v5870 = vadd.f32 %v5782, %v5869
    %v5871 = vpop.f32.mrf.mxu0
    %5872 = vdwg.mxu0
    %5873 = vmatpush.bf16.msra.mxu0 0
    %5874 = vmatpush.bf16.msra.mxu0 0
    %5875 = vmatpush.bf16.msra.mxu0 0
    %5876 = vmatpush.bf16.msra.mxu0 0
    %5877 = vmatpush.bf16.msra.mxu0 %v5844
    %5878 = vmatpush.bf16.msra.mxu0 %v5843
    %5879 = vmatpush.bf16.msra.mxu0 %v5842
    %5880 = vmatpush.bf16.msra.mxu0 %v5841
    %5881 = vmatmul.bf16.gmra.mxu0 %v5858
    %v5882 = vpop.f32.mrf.mxu0
    %v5883 = vadd.f32 %v5870, %v5882
    %v5884 = vpop.f32.mrf.mxu0
    %5885 = vdwg.mxu0
    %s5886 = scalar_lea.vmem %s7, 8
    %v5887 = vld [vmem:[%s5886] sm:$0xf]
    %v5889 = vsel %vm5564, %v5887, 0
    %5891 = vmatpush.bf16.msra.mxu0 0
    %5892 = vmatpush.bf16.msra.mxu0 0
    %5893 = vmatpush.bf16.msra.mxu0 0
    %5894 = vmatpush.bf16.msra.mxu0 0
    %5895 = vmatpush.bf16.msra.mxu0 0
    %5896 = vmatpush.bf16.msra.mxu0 0
    %5897 = vmatpush.bf16.msra.mxu0 %v5569
    %5898 = vmatpush.bf16.msra.mxu0 %v5559
    %5899 = vmatmul.bf16.gmra.mxu0 %v5889
    %v5900 = vpop.f32.mrf.mxu0
    %v5901 = vadd.f32 0.0, %v5900
    %v5902 = vpop.f32.mrf.mxu0
    %5903 = vdwg.mxu0
    %5904 = vmatpush.bf16.msra.mxu0 0
    %5905 = vmatpush.bf16.msra.mxu0 0
    %5906 = vmatpush.bf16.msra.mxu0 0
    %5907 = vmatpush.bf16.msra.mxu0 0
    %5908 = vmatpush.bf16.msra.mxu0 0
    %5909 = vmatpush.bf16.msra.mxu0 0
    %5910 = vmatpush.bf16.msra.mxu0 %v5572
    %5911 = vmatpush.bf16.msra.mxu0 %v5560
    %5912 = vmatmul.bf16.gmra.mxu0 %v5889
    %v5913 = vpop.f32.mrf.mxu0
    %v5914 = vadd.f32 0.0, %v5913
    %v5915 = vpop.f32.mrf.mxu0
    %5916 = vdwg.mxu0
    %v5917 = vpack.c.bf16 %v5901, %v5901
    %v5918 = vpack.c.bf16 %v5914, %v5914
    %s5919 = scalar_lea.vmem %s8, 192
    %v5920 = vld [vmem:[%s5919] sm:$0xf]
    %v5921 = vld [vmem:[%s5919 + $0x4] sm:$0xf]
    %v5922 = vld [vmem:[%s5919 + $0x8] sm:$0xf]
    %v5923 = vld [vmem:[%s5919 + $0xc] sm:$0xf]
    %v5924 = vld [vmem:[%s5919 + $0x10] sm:$0xf]
    %v5925 = vld [vmem:[%s5919 + $0x14] sm:$0xf]
    %v5926 = vld [vmem:[%s5919 + $0x18] sm:$0xf]
    %v5927 = vld [vmem:[%s5919 + $0x1c] sm:$0xf]
    %v5928 = vld [vmem:[%s5919 + $0x20] sm:$0xf]
    %v5929 = vld [vmem:[%s5919 + $0x24] sm:$0xf]
    %v5930 = vld [vmem:[%s5919 + $0x28] sm:$0xf]
    %v5931 = vld [vmem:[%s5919 + $0x2c] sm:$0xf]
    %v5932 = vld [vmem:[%s5919 + $0x30] sm:$0xf]
    %v5933 = vld [vmem:[%s5919 + $0x34] sm:$0xf]
    %v5934 = vld [vmem:[%s5919 + $0x38] sm:$0xf]
    %v5935 = vld [vmem:[%s5919 + $0x3c] sm:$0xf]
    %v5936 = vld [vmem:[%s5919 + $0x40] sm:$0xf]
    %v5937 = vld [vmem:[%s5919 + $0x44] sm:$0xf]
    %v5938 = vld [vmem:[%s5919 + $0x48] sm:$0xf]
    %v5939 = vld [vmem:[%s5919 + $0x4c] sm:$0xf]
    %v5940 = vld [vmem:[%s5919 + $0x50] sm:$0xf]
    %v5941 = vld [vmem:[%s5919 + $0x54] sm:$0xf]
    %v5942 = vld [vmem:[%s5919 + $0x58] sm:$0xf]
    %v5943 = vld [vmem:[%s5919 + $0x5c] sm:$0xf]
    %v5968 = vunpack.c.l.b16 %v5920
    %v5969 = vunpack.c.l.b16 %v5921
    %v5970 = vunpack.c.l.b16 %v5922
    %v5971 = vunpack.c.l.b16 %v5923
    %v5972 = vunpack.c.l.b16 %v5924
    %v5973 = vunpack.c.l.b16 %v5925
    %v5974 = vunpack.c.l.b16 %v5926
    %v5975 = vunpack.c.l.b16 %v5927
    %v5976 = vunpack.c.l.b16 %v5928
    %v5977 = vunpack.c.l.b16 %v5929
    %v5978 = vunpack.c.l.b16 %v5930
    %v5979 = vunpack.c.l.b16 %v5931
    %v5980 = vunpack.c.l.b16 %v5932
    %v5981 = vunpack.c.l.b16 %v5933
    %v5982 = vunpack.c.l.b16 %v5934
    %v5983 = vunpack.c.l.b16 %v5935
    %v5984 = vunpack.c.l.b16 %v5936
    %v5985 = vunpack.c.l.b16 %v5937
    %v5986 = vunpack.c.l.b16 %v5938
    %v5987 = vunpack.c.l.b16 %v5939
    %v5988 = vunpack.c.l.b16 %v5940
    %v5989 = vunpack.c.l.b16 %v5941
    %v5990 = vunpack.c.l.b16 %v5942
    %v5991 = vunpack.c.l.b16 %v5943
    %v5992 = vpack.c.b16 %v5969, %v5968
    %v5993 = vpack.c.b16 %v5971, %v5970
    %v5994 = vpack.c.b16 %v5973, %v5972
    %v5995 = vpack.c.b16 %v5975, %v5974
    %v5996 = vpack.c.b16 %v5977, %v5976
    %v5997 = vpack.c.b16 %v5979, %v5978
    %v5998 = vpack.c.b16 %v5981, %v5980
    %v5999 = vpack.c.b16 %v5983, %v5982
    %v6000 = vpack.c.b16 %v5985, %v5984
    %v6001 = vpack.c.b16 %v5987, %v5986
    %v6002 = vpack.c.b16 %v5989, %v5988
    %v6003 = vpack.c.b16 %v5991, %v5990
    %v6017 = vsel %vm348, %v5918, 0
    %6019 = vmatpush.bf16.msra.mxu0 %v5999
    %6020 = vmatpush.bf16.msra.mxu0 %v5998
    %6021 = vmatpush.bf16.msra.mxu0 %v5997
    %6022 = vmatpush.bf16.msra.mxu0 %v5996
    %6023 = vmatpush.bf16.msra.mxu0 %v5995
    %6024 = vmatpush.bf16.msra.mxu0 %v5994
    %6025 = vmatpush.bf16.msra.mxu0 %v5993
    %6026 = vmatpush.bf16.msra.mxu0 %v5992
    %6027 = vmatmul.bf16.gmra.mxu0 %v5917
    %v6028 = vpop.f32.mrf.mxu0
    %v6029 = vadd.f32 0.0, %v6028
    %v6030 = vpop.f32.mrf.mxu0
    %6031 = vdwg.mxu0
    %6032 = vmatpush.bf16.msra.mxu0 0
    %6033 = vmatpush.bf16.msra.mxu0 0
    %6034 = vmatpush.bf16.msra.mxu0 0
    %6035 = vmatpush.bf16.msra.mxu0 0
    %6036 = vmatpush.bf16.msra.mxu0 %v6003
    %6037 = vmatpush.bf16.msra.mxu0 %v6002
    %6038 = vmatpush.bf16.msra.mxu0 %v6001
    %6039 = vmatpush.bf16.msra.mxu0 %v6000
    %6040 = vmatmul.bf16.gmra.mxu0 %v6017
    %v6041 = vpop.f32.mrf.mxu0
    %v6042 = vadd.f32 %v6029, %v6041
    %v6043 = vpop.f32.mrf.mxu0
    %6044 = vdwg.mxu0
    %v6045 = vadd.f32 %v5883, %v6042
    %v6046 = vld [vmem:[%s9] sm:$0x1]
    %v6048 = vperm.slane %v6046, 0
    %v6050 = vadd.f32 %v6045, %v6048
    %v6051 = vmax.f32 %v6050, 0.0
    %v6052 = vpack.c.bf16 %v6051, %v6051
    %v6053 = vld [vmem:[%s11] sm:$0xf]
    %v6054 = vld [vmem:[%s11 + $0x4] sm:$0xf]
    %v6055 = vld [vmem:[%s11 + $0x8] sm:$0xf]
    %v6056 = vld [vmem:[%s11 + $0xc] sm:$0xf]
    %v6057 = vld [vmem:[%s11 + $0x10] sm:$0xf]
    %v6058 = vld [vmem:[%s11 + $0x14] sm:$0xf]
    %v6059 = vld [vmem:[%s11 + $0x18] sm:$0xf]
    %v6060 = vld [vmem:[%s11 + $0x1c] sm:$0xf]
    %v6061 = vld [vmem:[%s12] sm:$0x1]
    %v6063 = vperm.slane %v6061, 0
    %v6073 = vunpack.c.l.b16 %v6053
    %v6074 = vunpack.c.l.b16 %v6054
    %v6075 = vunpack.c.l.b16 %v6055
    %v6076 = vunpack.c.l.b16 %v6056
    %v6077 = vunpack.c.l.b16 %v6057
    %v6078 = vunpack.c.l.b16 %v6058
    %v6079 = vunpack.c.l.b16 %v6059
    %v6080 = vunpack.c.l.b16 %v6060
    %v6081 = vpack.c.b16 %v6074, %v6073
    %v6082 = vpack.c.b16 %v6076, %v6075
    %v6083 = vpack.c.b16 %v6078, %v6077
    %v6084 = vpack.c.b16 %v6080, %v6079
    %v6090 = vsel %vm348, %v6052, 0
    %6092 = vmatpush.bf16.msra.mxu0 0
    %6093 = vmatpush.bf16.msra.mxu0 0
    %6094 = vmatpush.bf16.msra.mxu0 0
    %6095 = vmatpush.bf16.msra.mxu0 0
    %6096 = vmatpush.bf16.msra.mxu0 %v6084
    %6097 = vmatpush.bf16.msra.mxu0 %v6083
    %6098 = vmatpush.bf16.msra.mxu0 %v6082
    %6099 = vmatpush.bf16.msra.mxu0 %v6081
    %6100 = vmatmul.bf16.gmra.mxu0 %v6090
    %v6101 = vpop.f32.mrf.mxu0
    %v6102 = vadd.f32 %v6063, %v6101
    %v6103 = vpop.f32.mrf.mxu0
    %6104 = vdwg.mxu0
    %v6105 = vmax.f32 %v6102, 0.0
    %v6106 = vld [vmem:[%s13] sm:$0x1]
    %v6108 = vperm.slane %v6106, 0
    %v6110 = vmul.f32 %v6105, %v6108
    %v6111 = vsel %vm348, %v6110, 0.0
    %6112 = vadd.xlane.f32.xlu0 %v6111
    %v6113 = vpop.xlane.xlu0 %6112
    %v6114 = vld [vmem:[#allocation2] sm:$0x1]
    %v6116 = vperm.slane %v6114, 0
    %v6118 = vadd.f32 %v6113, %v6116
    %v6119 = vxor.u32 %v6118, 2147483648
    %v6120 = vmul.f32 %v6119, 1.442695
    %v6121 = vpow.pop %v6120
    %v6122 = vadd.f32 %v6121, 1.0
    %v6123 = vrcp.pop %v6122
    %v6124 = vmul.f32 %v6122, %v6123
    %v6125 = vsub.f32 1.0, %v6124
    %v6126 = vmul.f32 %v6123, %v6125
    %v6127 = vadd.f32 %v6123, %v6126
    %vm6128 = vweird.f32 %v6122
    %vm6129 = vweird.f32 %v6123
    %vm6130 = vmor %vm6128, %vm6129
    %v6131 = vsel %vm6130, %v6123, %v6127
    %v6132 = vand.u32 2147483647, %v6122
    %vm6133 = vcmp.eq.f32.partialorder %v6132, 8.507059e+37
    %v6134 = vand.u32 %v6122, 2147483648
    %v6135 = vor.u32 1.1754944e-38, %v6134
    %v6136 = vsel %vm6133, %v6135, %v6131
    %v6137 = vmul.f32 1.0, %v6136
    %vm6138 = vcmask 7168
    %6139 = vst.msk [vmem:[%s15] sm:$0xff] %vm6138, %v6137
    // Predicated region
    $region74: #{_lambda_.1} parent=1 // pred_check
      _
    $region75: #{_lambda_.1} parent=1 // pred_check_branch
      %6141 = sbr.rel (0) target = $region77
    $region76: #{_lambda_.1} parent=1 // pred_region
      _
    $region77: #{_lambda_.1} parent=1 // pred_fallthru
      _
    // Predicated region
    $region78: #{_lambda_.1} parent=1 // pred_check
      _
    $region79: #{_lambda_.1} parent=1 // pred_check_branch
      %6143 = sbr.rel (0) target = $region81
    $region80: #{_lambda_.1} parent=1 // pred_region
      _
    $region81: #{_lambda_.1} parent=1 // pred_fallthru
      _
    %6144 = vsyncpa [#allocation4], 1
    %6145 = vsyncpa [#allocation6], 1

</llo_original>
